<compile_context>
chip_gen: v6e
topology: v6e:2x2x1
jax: 0.10.0
libtpu: 0.0.40
codegen_flags: <defaults>
</compile_context>

<pallas_src>
import functools

import jax
import jax.numpy as jnp
from jax import lax
from jax.experimental import pallas as pl
from jax.experimental.pallas import tpu as pltpu

# ----------------------------- model config (small synthetic BERT) -----------
HIDDEN = 32          # stands in for 768
HEADS = 4
HEAD_DIM = HIDDEN // HEADS
LAYERS = 2           # stands in for 12
INTERMEDIATE = 64
VOCAB = 100
MAX_POS = 16
TYPE_VOCAB = 2
MAX_SENTS = 50       # torch code pads the sentence scores to length 50
LN_EPS = 1e-12


# ----------------------------- small helper kernels --------------------------
def _linear_kernel(x_ref, w_ref, b_ref, o_ref, *, activation):
    y = jnp.dot(x_ref[...], w_ref[...], preferred_element_type=jnp.float32)
    y = y + b_ref[...]
    if activation == "sigmoid":
        y = jax.nn.sigmoid(y)
    o_ref[...] = y.astype(o_ref.dtype)


def linear(x, w, b, activation="none"):
    m, k = x.shape
    n = w.shape[1]
    return pl.pallas_call(
        functools.partial(_linear_kernel, activation=activation),
        grid=(1,),
        in_specs=[pl.BlockSpec((m, k), lambda i: (0, 0)),
                  pl.BlockSpec((k, n), lambda i: (0, 0)),
                  pl.BlockSpec((1, n), lambda i: (0, 0))],
        out_specs=pl.BlockSpec((m, n), lambda i: (0, 0)),
        out_shape=jax.ShapeDtypeStruct((m, n), jnp.float32),
    )(x, w, b.reshape(1, n))


def _add_ln_kernel(x_ref, r_ref, g_ref, b_ref, o_ref):
    x = x_ref[...] + r_ref[...]
    mu = jnp.mean(x, axis=-1, keepdims=True)
    var = jnp.mean(jnp.square(x - mu), axis=-1, keepdims=True)
    o_ref[...] = ((x - mu) * lax.rsqrt(var + LN_EPS)) * g_ref[...] + b_ref[...]


def add_layernorm(x, res, gamma, beta):
    m, h = x.shape
    row_spec = pl.BlockSpec((m, h), lambda i: (0, 0))
    vec_spec = pl.BlockSpec((1, h), lambda i: (0, 0))
    return pl.pallas_call(
        _add_ln_kernel,
        grid=(1,),
        in_specs=[row_spec, row_spec, vec_spec, vec_spec],
        out_specs=row_spec,
        out_shape=jax.ShapeDtypeStruct((m, h), jnp.float32),
    )(x, res, gamma.reshape(1, h), beta.reshape(1, h))


# ----------------------------- fused BERT layer kernel ------------------------
def _bert_layer_kernel(x_ref, bias_ref, wqkv_ref, bqkv_ref, wo_ref, bo_ref,
                       ln1g_ref, ln1b_ref, w1_ref, b1_ref, w2_ref, b2_ref,
                       ln2g_ref, ln2b_ref, o_ref, *,
                       batch, seq, heads, head_dim, scale):
    hidden = heads * head_dim
    x = x_ref[...]                                        # (B*S, H) f32

    def mm(a, b):                                         # bf16 operands, f32 acc
        return jnp.dot(a.astype(jnp.bfloat16), b.astype(jnp.bfloat16),
                       preferred_element_type=jnp.float32)

    def ln(v, g_ref, b_ref):
        mu = jnp.mean(v, axis=-1, keepdims=True)
        var = jnp.mean(jnp.square(v - mu), axis=-1, keepdims=True)
        return (v - mu) * lax.rsqrt(var + LN_EPS) * g_ref[...] + b_ref[...]

    # --- fused QKV projection: one (B*S, H) x (H, 3H) MXU matmul
    qkv = mm(x, wqkv_ref[...]) + bqkv_ref[...]            # (B*S, 3H)

    # --- attention: all batches and heads handled in this single grid step
    bias = bias_ref[...][:, None, :]                      # (B, 1, S) additive mask
    ctx_heads = []
    for hh in range(heads):
        lo = hh * head_dim
        q_h = qkv[:, lo:lo + head_dim].reshape(batch, seq, head_dim)
        k_h = qkv[:, hidden + lo:hidden + lo + head_dim].reshape(
            batch, seq, head_dim)
        v_h = qkv[:, 2 * hidden + lo:2 * hidden + lo + head_dim].reshape(
            batch, seq, head_dim)
        s = jnp.einsum("bqd,bkd->bqk", q_h.astype(jnp.bfloat16),
                       k_h.astype(jnp.bfloat16),
                       preferred_element_type=jnp.float32) * scale
        s = s + bias
        mx = jnp.max(s, axis=-1, keepdims=True)
        p = jnp.exp(s - mx)
        p = p * pl.reciprocal(jnp.sum(p, axis=-1, keepdims=True), approx=True)
        ctx_h = jnp.einsum("bqk,bkd->bqd", p.astype(jnp.bfloat16),
                           v_h.astype(jnp.bfloat16),
                           preferred_element_type=jnp.float32)
        ctx_heads.append(ctx_h.reshape(batch * seq, head_dim))
    ctx = jnp.concatenate(ctx_heads, axis=-1)             # (B*S, H)

    # --- attention output projection + residual LayerNorm (all in VMEM)
    attn_out = mm(ctx, wo_ref[...]) + bo_ref[...]
    x1 = ln(attn_out + x, ln1g_ref, ln1b_ref)

    # --- feed-forward + residual LayerNorm
    ff = mm(x1, w1_ref[...]) + b1_ref[...]
    # TODO(synk): BERT uses erf-GELU; tanh approximation kept for TPU lowering safety.
    ff = jax.nn.gelu(ff, approximate=True)
    ff = mm(ff, w2_ref[...]) + b2_ref[...]
    o_ref[...] = ln(ff + x1, ln2g_ref, ln2b_ref).astype(o_ref.dtype)


def bert_layer(lp, x, bias, batch, seq):
    m, h = x.shape                                        # (B*S, HIDDEN)

    def full(shape):
        return pl.BlockSpec(shape, lambda i, _z=(0,) * len(shape): _z)

    return pl.pallas_call(
        functools.partial(_bert_layer_kernel, batch=batch, seq=seq,
                          heads=HEADS, head_dim=HEAD_DIM,
                          scale=1.0 / float(HEAD_DIM) ** 0.5),
        grid=(1,),
        in_specs=[full((m, h)),                           # activation slab
                  full((batch, seq)),                     # additive mask
                  full((h, 3 * h)), full((1, 3 * h)),     # fused QKV
                  full((h, h)), full((1, h)),             # attn out proj
                  full((1, h)), full((1, h)),             # LN1
                  full((h, INTERMEDIATE)), full((1, INTERMEDIATE)),
                  full((INTERMEDIATE, h)), full((1, h)),
                  full((1, h)), full((1, h))],            # LN2
        out_specs=full((m, h)),
        out_shape=jax.ShapeDtypeStruct((m, h), jnp.float32),
    )(x, bias,
      lp["wqkv"], lp["bqkv"].reshape(1, 3 * h),
      lp["wo"], lp["bo"].reshape(1, h),
      lp["ln1_g"].reshape(1, h), lp["ln1_b"].reshape(1, h),
      lp["w1"], lp["b1"].reshape(1, INTERMEDIATE),
      lp["w2"], lp["b2"].reshape(1, h),
      lp["ln2_g"].reshape(1, h), lp["ln2_b"].reshape(1, h))


# ----------------------------- bidirectional LSTM kernel ----------------------
def _bilstm_kernel(x_ref, wih_ref, whh_ref, b_ref, o_ref, gx_scr, h_scr, c_scr):
    # One grid step = one direction. x_ref: (T, I)  wih: (I, 4H)  whh: (H, 4H)
    hsz = h_scr.shape[1]
    t_steps = x_ref.shape[0]

    # Hoist the input projection out of the recurrence: one (T,I)x(I,4H) matmul.
    gx_scr[...] = (jnp.dot(x_ref[...].astype(jnp.bfloat16),
                           wih_ref[...].astype(jnp.bfloat16),
                           preferred_element_type=jnp.float32)
                   + b_ref[...])
    whh = whh_ref[...].astype(jnp.bfloat16)               # loop invariant

    h_scr[...] = jnp.zeros_like(h_scr)
    c_scr[...] = jnp.zeros_like(c_scr)

    # Short static trip count -> fully unrolled recurrence (PyTorch gate order i,f,g,o).
    for t in range(t_steps):
        gates = gx_scr[pl.ds(t, 1), :] + jnp.dot(
            h_scr[...].astype(jnp.bfloat16), whh,
            preferred_element_type=jnp.float32)           # (1, 4H)
        i_g = jax.nn.sigmoid(gates[:, 0:hsz])
        f_g = jax.nn.sigmoid(gates[:, hsz:2 * hsz])
        g_g = jnp.tanh(gates[:, 2 * hsz:3 * hsz])
        o_g = jax.nn.sigmoid(gates[:, 3 * hsz:4 * hsz])
        c_new = f_g * c_scr[...] + i_g * g_g
        h_new = o_g * jnp.tanh(c_new)
        c_scr[...] = c_new
        h_scr[...] = h_new
        o_ref[pl.ds(t, 1), :] = h_new


def bilstm(x_both, w_ih, w_hh, b_both):
    # x_both: (2, T, I) — slot 0 forward order, slot 1 reversed order.
    _, t, i = x_both.shape
    hsz = w_hh.shape[1]
    return pl.pallas_call(
        _bilstm_kernel,
        grid=(2,),
        in_specs=[pl.BlockSpec((None, t, i), lambda d: (d, 0, 0)),
                  pl.BlockSpec((None, i, 4 * hsz), lambda d: (d, 0, 0)),
                  pl.BlockSpec((None, hsz, 4 * hsz), lambda d: (d, 0, 0)),
                  pl.BlockSpec((None, 1, 4 * hsz), lambda d: (d, 0, 0))],
        out_specs=pl.BlockSpec((None, t, hsz), lambda d: (d, 0, 0)),
        out_shape=jax.ShapeDtypeStruct((2, t, hsz), jnp.float32),
        scratch_shapes=[pltpu.VMEM((t, 4 * hsz), jnp.float32),
                        pltpu.VMEM((1, hsz), jnp.float32),
                        pltpu.VMEM((1, hsz), jnp.float32)],
        compiler_params=pltpu.CompilerParams(
            dimension_semantics=("parallel",)),
    )(x_both, w_ih, w_hh, b_both)


# ----------------------------- model glue -------------------------------------
def summarizer_forward(params, input_ids, token_type_ids, attention_mask):
    # mirror torch: squeeze(0).transpose(0, 1)  -> (num_sents, seq_len)
    input_ids = jnp.transpose(jnp.squeeze(input_ids, 0), (1, 0))
    token_type_ids = jnp.transpose(jnp.squeeze(token_type_ids, 0), (1, 0))
    attention_mask = jnp.transpose(jnp.squeeze(attention_mask, 0), (1, 0))
    batch, seq = input_ids.shape            # batch == num sentences

    # BERT embeddings (gather is glue; LN is a Pallas kernel)
    we = params["word_emb"][input_ids]                      # (B, S, H)
    pe = params["pos_emb"][jnp.arange(seq)][None, :, :]
    te = params["type_emb"][token_type_ids]
    x = add_layernorm((we + pe).reshape(batch * seq, HIDDEN),
                      te.reshape(batch * seq, HIDDEN),
                      params["emb_ln_g"], params["emb_ln_b"])

    # additive attention mask (HF uses dtype-min; equivalent for all-ones mask)
    bias = (1.0 - attention_mask.astype(jnp.float32)) * -1e9     # (B, S)

    for lp in params["layers"]:
        x = bert_layer(lp, x, bias, batch, seq)

    cls = x.reshape(batch, seq, HIDDEN)[:, 0, :]                 # per-sentence [CLS]

    # bidirectional LSTM over the sentence sequence: both directions in one call
    x_both = jnp.stack([cls, cls[::-1]], axis=0)                 # (2, B, H)
    lstm_b = (params["lstm_b_ih"] + params["lstm_b_hh"])[:, None, :]   # (2, 1, 4H)
    out_both = bilstm(x_both, params["lstm_w_ih"], params["lstm_w_hh"], lstm_b)
    enc = jnp.concatenate([out_both[0], out_both[1][::-1]], axis=-1)   # (B, 2H)

    # fc + sigmoid (Pallas), then pad with zeros to 50 like the torch code
    h = linear(enc, params["fc_w"], params["fc_b"], activation="sigmoid")[:, 0]
    h = jnp.concatenate([h, jnp.zeros((MAX_SENTS - batch,), jnp.float32)], axis=0)
    return h[None, :]                                            # (1, 50)


def init_params(key):
    keys = iter(jax.random.split(key, 32))

    def w(shape, scale=0.02):
        return scale * jax.random.normal(next(keys), shape, dtype=jnp.float32)

    def zeros(*shape):
        return jnp.zeros(shape, jnp.float32)

    def ones(*shape):
        return jnp.ones(shape, jnp.float32)

    params = {
        "word_emb": w((VOCAB, HIDDEN)),
        "pos_emb": w((MAX_POS, HIDDEN)),
        "type_emb": w((TYPE_VOCAB, HIDDEN)),
        "emb_ln_g": ones(HIDDEN), "emb_ln_b": zeros(HIDDEN),
        "layers": [],
    }
    for _ in range(LAYERS):
        params["layers"].append({
            "wqkv": w((HIDDEN, 3 * HIDDEN)), "bqkv": zeros(3 * HIDDEN),
            "wo": w((HIDDEN, HIDDEN)), "bo": zeros(HIDDEN),
            "ln1_g": ones(HIDDEN), "ln1_b": zeros(HIDDEN),
            "w1": w((HIDDEN, INTERMEDIATE)), "b1": zeros(INTERMEDIATE),
            "w2": w((INTERMEDIATE, HIDDEN)), "b2": zeros(HIDDEN),
            "ln2_g": ones(HIDDEN), "ln2_b": zeros(HIDDEN),
        })
    # LSTM (hidden == input == HIDDEN, mirrors 768 -> 768 bidirectional),
    # weights stacked [forward, backward]; PyTorch has separate b_ih and b_hh.
    params.update({
        "lstm_w_ih": w((2, HIDDEN, 4 * HIDDEN)),
        "lstm_w_hh": w((2, HIDDEN, 4 * HIDDEN)),
        "lstm_b_ih": w((2, 4 * HIDDEN)),
        "lstm_b_hh": w((2, 4 * HIDDEN)),
        "fc_w": w((2 * HIDDEN, 1)),
        "fc_b": zeros(1),
    })
    return params


if __name__ == "__main__":
    key = jax.random.PRNGKey(0)
    k_ids, k_type, k_param = jax.random.split(key, 3)

    NUM_SENTS, SEQ = 6, 8
    # torch-style input layout: (1, seq_len, num_sents); forward transposes it.
    input_ids = jax.random.randint(k_ids, (1, SEQ, NUM_SENTS), 0, VOCAB,
                                   dtype=jnp.int32)
    token_type_ids = jax.random.randint(k_type, (1, SEQ, NUM_SENTS), 0, TYPE_VOCAB,
                                        dtype=jnp.int32)
    attention_mask = jnp.ones((1, SEQ, NUM_SENTS), jnp.int32)

    params = init_params(k_param)
    forward = jax.jit(summarizer_forward)
    out = forward(params, input_ids, token_type_ids, attention_mask)
    out = jax.block_until_ready(out)

    assert out.shape == (1, MAX_SENTS), out.shape
    assert bool(jnp.all(jnp.isfinite(out)))
    # padded tail must be exactly zero, scores in (0, 1)
    assert bool(jnp.all(out[0, NUM_SENTS:] == 0.0))
    assert bool(jnp.all((out[0, :NUM_SENTS] > 0.0) & (out[0, :NUM_SENTS] < 1.0)))
    print("KERNEL_OK")
</pallas_src>

<mosaic_0001>
module attributes {stable_mosaic.version = 11 : i64} {
  func.func @_add_ln_kernel(%arg0: i32, %arg1: memref<48x32xf32, #tpu.memory_space<vmem>>, %arg2: memref<48x32xf32, #tpu.memory_space<vmem>>, %arg3: memref<1x32xf32, #tpu.memory_space<vmem>>, %arg4: memref<1x32xf32, #tpu.memory_space<vmem>>, %arg5: memref<48x32xf32, #tpu.memory_space<vmem>>) attributes {dimension_semantics = [#tpu.dimension_semantics<arbitrary>], iteration_bounds = array<i64: 1>, scalar_prefetch = 0 : i64, scratch_operands = 0 : i64, tpu.core_type = #tpu.core_type<tc>, window_params = [{pipeline_mode = #tpu.pipeline_mode<synchronous>, transform_indices = @transform_0, window_bounds = array<i64: 48, 32>}, {pipeline_mode = #tpu.pipeline_mode<synchronous>, transform_indices = @transform_1, window_bounds = array<i64: 48, 32>}, {pipeline_mode = #tpu.pipeline_mode<synchronous>, transform_indices = @transform_2, window_bounds = array<i64: 1, 32>}, {pipeline_mode = #tpu.pipeline_mode<synchronous>, transform_indices = @transform_3, window_bounds = array<i64: 1, 32>}, {pipeline_mode = #tpu.pipeline_mode<synchronous>, transform_indices = @transform_4, window_bounds = array<i64: 48, 32>}]} {
    %c0 = arith.constant 0 : index
    %c0_0 = arith.constant 0 : index
    %0 = vector.load %arg1[%c0, %c0_0] : memref<48x32xf32, #tpu.memory_space<vmem>>, vector<48x32xf32>
    %c0_1 = arith.constant 0 : index
    %c0_2 = arith.constant 0 : index
    %1 = vector.load %arg2[%c0_1, %c0_2] : memref<48x32xf32, #tpu.memory_space<vmem>>, vector<48x32xf32>
    %2 = arith.addf %0, %1 : vector<48x32xf32>
    %cst = arith.constant dense<0.000000e+00> : vector<48xf32>
    %3 = vector.multi_reduction <add>, %2, %cst [1] : vector<48x32xf32> to vector<48xf32>
    %4 = vector.shape_cast %3 : vector<48xf32> to vector<48x1xf32>
    %cst_3 = arith.constant 3.200000e+01 : f32
    %5 = vector.broadcast %cst_3 : f32 to vector<48x1xf32>
    %6 = arith.divf %4, %5 : vector<48x1xf32>
    %7 = vector.broadcast %6 : vector<48x1xf32> to vector<48x32xf32>
    %8 = arith.subf %2, %7 : vector<48x32xf32>
    %9 = arith.mulf %8, %8 : vector<48x32xf32>
    %cst_4 = arith.constant dense<0.000000e+00> : vector<48xf32>
    %10 = vector.multi_reduction <add>, %9, %cst_4 [1] : vector<48x32xf32> to vector<48xf32>
    %11 = vector.shape_cast %10 : vector<48xf32> to vector<48x1xf32>
    %cst_5 = arith.constant 3.200000e+01 : f32
    %12 = vector.broadcast %cst_5 : f32 to vector<48x1xf32>
    %13 = arith.divf %11, %12 : vector<48x1xf32>
    %14 = vector.broadcast %6 : vector<48x1xf32> to vector<48x32xf32>
    %15 = arith.subf %2, %14 : vector<48x32xf32>
    %cst_6 = arith.constant 9.99999996E-13 : f32
    %16 = vector.broadcast %cst_6 : f32 to vector<48x1xf32>
    %17 = arith.addf %13, %16 : vector<48x1xf32>
    %18 = math.rsqrt %17 : vector<48x1xf32>
    %19 = vector.broadcast %18 : vector<48x1xf32> to vector<48x32xf32>
    %20 = arith.mulf %15, %19 : vector<48x32xf32>
    %c0_7 = arith.constant 0 : index
    %c0_8 = arith.constant 0 : index
    %21 = vector.load %arg3[%c0_7, %c0_8] : memref<1x32xf32, #tpu.memory_space<vmem>>, vector<1x32xf32>
    %22 = vector.broadcast %21 : vector<1x32xf32> to vector<48x32xf32>
    %23 = arith.mulf %20, %22 : vector<48x32xf32>
    %c0_9 = arith.constant 0 : index
    %c0_10 = arith.constant 0 : index
    %24 = vector.load %arg4[%c0_9, %c0_10] : memref<1x32xf32, #tpu.memory_space<vmem>>, vector<1x32xf32>
    %25 = vector.broadcast %24 : vector<1x32xf32> to vector<48x32xf32>
    %26 = arith.addf %23, %25 : vector<48x32xf32>
    %c0_11 = arith.constant 0 : index
    %c0_12 = arith.constant 0 : index
    %27 = vector.load %arg5[%c0_11, %c0_12] : memref<48x32xf32, #tpu.memory_space<vmem>>, vector<48x32xf32>
    tpu.vector_store %arg5[%c0_11, %c0_12], %26 {strides = array<i32>} : memref<48x32xf32, #tpu.memory_space<vmem>>, vector<48x32xf32>,
    return
  }
  func.func @transform_0(%arg0: i32) -> (i32, i32) {
    %c0_i32 = arith.constant 0 : i32
    %c0_i32_0 = arith.constant 0 : i32
    %c0_i32_1 = arith.constant 0 : i32
    return %c0_i32, %c0_i32_0 : i32, i32
  }
  func.func @transform_1(%arg0: i32) -> (i32, i32) {
    %c0_i32 = arith.constant 0 : i32
    %c0_i32_0 = arith.constant 0 : i32
    %c0_i32_1 = arith.constant 0 : i32
    return %c0_i32, %c0_i32_0 : i32, i32
  }
  func.func @transform_2(%arg0: i32) -> (i32, i32) {
    %c0_i32 = arith.constant 0 : i32
    %c0_i32_0 = arith.constant 0 : i32
    %c0_i32_1 = arith.constant 0 : i32
    return %c0_i32, %c0_i32_0 : i32, i32
  }
  func.func @transform_3(%arg0: i32) -> (i32, i32) {
    %c0_i32 = arith.constant 0 : i32
    %c0_i32_0 = arith.constant 0 : i32
    %c0_i32_1 = arith.constant 0 : i32
    return %c0_i32, %c0_i32_0 : i32, i32
  }
  func.func @transform_4(%arg0: i32) -> (i32, i32) {
    %c0_i32 = arith.constant 0 : i32
    %c0_i32_0 = arith.constant 0 : i32
    %c0_i32_1 = arith.constant 0 : i32
    return %c0_i32, %c0_i32_0 : i32, i32
  }
}

module attributes {stable_mosaic.version = 11 : i64} {
  func.func @_bert_layer_kernel(%arg0: i32, %arg1: memref<48x32xf32, #tpu.memory_space<vmem>>, %arg2: memref<6x8xf32, #tpu.memory_space<vmem>>, %arg3: memref<32x96xf32, #tpu.memory_space<vmem>>, %arg4: memref<1x96xf32, #tpu.memory_space<vmem>>, %arg5: memref<32x32xf32, #tpu.memory_space<vmem>>, %arg6: memref<1x32xf32, #tpu.memory_space<vmem>>, %arg7: memref<1x32xf32, #tpu.memory_space<vmem>>, %arg8: memref<1x32xf32, #tpu.memory_space<vmem>>, %arg9: memref<32x64xf32, #tpu.memory_space<vmem>>, %arg10: memref<1x64xf32, #tpu.memory_space<vmem>>, %arg11: memref<64x32xf32, #tpu.memory_space<vmem>>, %arg12: memref<1x32xf32, #tpu.memory_space<vmem>>, %arg13: memref<1x32xf32, #tpu.memory_space<vmem>>, %arg14: memref<1x32xf32, #tpu.memory_space<vmem>>, %arg15: memref<48x32xf32, #tpu.memory_space<vmem>>) attributes {dimension_semantics = [#tpu.dimension_semantics<arbitrary>], iteration_bounds = array<i64: 1>, scalar_prefetch = 0 : i64, scratch_operands = 0 : i64, tpu.core_type = #tpu.core_type<tc>, window_params = [{pipeline_mode = #tpu.pipeline_mode<synchronous>, transform_indices = @transform_0, window_bounds = array<i64: 48, 32>}, {pipeline_mode = #tpu.pipeline_mode<synchronous>, transform_indices = @transform_1, window_bounds = array<i64: 6, 8>}, {pipeline_mode = #tpu.pipeline_mode<synchronous>, transform_indices = @transform_2, window_bounds = array<i64: 32, 96>}, {pipeline_mode = #tpu.pipeline_mode<synchronous>, transform_indices = @transform_3, window_bounds = array<i64: 1, 96>}, {pipeline_mode = #tpu.pipeline_mode<synchronous>, transform_indices = @transform_4, window_bounds = array<i64: 32, 32>}, {pipeline_mode = #tpu.pipeline_mode<synchronous>, transform_indices = @transform_5, window_bounds = array<i64: 1, 32>}, {pipeline_mode = #tpu.pipeline_mode<synchronous>, transform_indices = @transform_6, window_bounds = array<i64: 1, 32>}, {pipeline_mode = #tpu.pipeline_mode<synchronous>, transform_indices = @transform_7, window_bounds = array<i64: 1, 32>}, {pipeline_mode = #tpu.pipeline_mode<synchronous>, transform_indices = @transform_8, window_bounds = array<i64: 32, 64>}, {pipeline_mode = #tpu.pipeline_mode<synchronous>, transform_indices = @transform_9, window_bounds = array<i64: 1, 64>}, {pipeline_mode = #tpu.pipeline_mode<synchronous>, transform_indices = @transform_10, window_bounds = array<i64: 64, 32>}, {pipeline_mode = #tpu.pipeline_mode<synchronous>, transform_indices = @transform_11, window_bounds = array<i64: 1, 32>}, {pipeline_mode = #tpu.pipeline_mode<synchronous>, transform_indices = @transform_12, window_bounds = array<i64: 1, 32>}, {pipeline_mode = #tpu.pipeline_mode<synchronous>, transform_indices = @transform_13, window_bounds = array<i64: 1, 32>}, {pipeline_mode = #tpu.pipeline_mode<synchronous>, transform_indices = @transform_14, window_bounds = array<i64: 48, 32>}]} {
    %c0 = arith.constant 0 : index
    %c0_0 = arith.constant 0 : index
    %0 = vector.load %arg1[%c0, %c0_0] : memref<48x32xf32, #tpu.memory_space<vmem>>, vector<48x32xf32>
    %c0_1 = arith.constant 0 : index
    %c0_2 = arith.constant 0 : index
    %1 = vector.load %arg3[%c0_1, %c0_2] : memref<32x96xf32, #tpu.memory_space<vmem>>, vector<32x96xf32>
    %2 = arith.truncf %0 : vector<48x32xf32> to vector<48x32xbf16>
    %3 = arith.truncf %1 : vector<32x96xf32> to vector<32x96xbf16>
    %cst = arith.constant dense<0.000000e+00> : vector<48x96xf32>
    %4 = tpu.matmul %2, %3, %cst {dimension_numbers = #tpu.dot_dimension_numbers<[1], [0], [0], [1], [0, 0, 1, 1], [], []>} : vector<48x32xbf16>, vector<32x96xbf16>, vector<48x96xf32> -> vector<48x96xf32>
    %c0_3 = arith.constant 0 : index
    %c0_4 = arith.constant 0 : index
    %5 = vector.load %arg4[%c0_3, %c0_4] : memref<1x96xf32, #tpu.memory_space<vmem>>, vector<1x96xf32>
    %6 = vector.broadcast %5 : vector<1x96xf32> to vector<48x96xf32>
    %7 = arith.addf %4, %6 : vector<48x96xf32>
    %c0_5 = arith.constant 0 : index
    %c0_6 = arith.constant 0 : index
    %8 = vector.load %arg2[%c0_5, %c0_6] : memref<6x8xf32, #tpu.memory_space<vmem>>, vector<6x8xf32>
    %9 = vector.shape_cast %8 : vector<6x8xf32> to vector<6x1x8xf32>
    %10 = vector.extract_strided_slice %7 {offsets = [0, 0], sizes = [48, 8], strides = [1, 1]} : vector<48x96xf32> to vector<48x8xf32>
    %11 = vector.shape_cast %10 : vector<48x8xf32> to vector<6x8x8xf32>
    %12 = vector.extract_strided_slice %7 {offsets = [0, 32], sizes = [48, 8], strides = [1, 1]} : vector<48x96xf32> to vector<48x8xf32>
    %13 = vector.shape_cast %12 : vector<48x8xf32> to vector<6x8x8xf32>
    %14 = vector.extract_strided_slice %7 {offsets = [0, 64], sizes = [48, 8], strides = [1, 1]} : vector<48x96xf32> to vector<48x8xf32>
    %15 = vector.shape_cast %14 : vector<48x8xf32> to vector<6x8x8xf32>
    %16 = arith.truncf %11 : vector<6x8x8xf32> to vector<6x8x8xbf16>
    %17 = arith.truncf %13 : vector<6x8x8xf32> to vector<6x8x8xbf16>
    "tpu.trace_start"() <{level = 10 : i32, message = "bqd,bkd->bqk"}> : () -> ()
    %cst_7 = arith.constant dense<0.000000e+00> : vector<6x8x8xf32>
    %18 = tpu.matmul %16, %17, %cst_7 {dimension_numbers = #tpu.dot_dimension_numbers<[2], [2], [1], [1], [0, 0, 0, 1, 1, 1], [0], [0]>} : vector<6x8x8xbf16>, vector<6x8x8xbf16>, vector<6x8x8xf32> -> vector<6x8x8xf32>
    "tpu.trace_stop"() : () -> ()
    %cst_8 = arith.constant 0.353553385 : f32
    %19 = vector.broadcast %cst_8 : f32 to vector<6x8x8xf32>
    %20 = arith.mulf %18, %19 : vector<6x8x8xf32>
    %21 = vector.broadcast %9 : vector<6x1x8xf32> to vector<6x8x8xf32>
    %22 = arith.addf %20, %21 : vector<6x8x8xf32>
    %cst_9 = arith.constant dense<0xFF800000> : vector<6x8xf32>
    %23 = vector.multi_reduction <maximumf>, %22, %cst_9 [2] : vector<6x8x8xf32> to vector<6x8xf32>
    %24 = vector.shape_cast %23 : vector<6x8xf32> to vector<6x8x1xf32>
    %25 = vector.broadcast %24 : vector<6x8x1xf32> to vector<6x8x8xf32>
    %26 = arith.subf %22, %25 : vector<6x8x8xf32>
    %27 = math.exp %26 : vector<6x8x8xf32>
    %cst_10 = arith.constant dense<0.000000e+00> : vector<6x8xf32>
    %28 = vector.multi_reduction <add>, %27, %cst_10 [2] : vector<6x8x8xf32> to vector<6x8xf32>
    %29 = vector.shape_cast %28 : vector<6x8xf32> to vector<6x8x1xf32>
    %30 = tpu.reciprocal %29 {approx = true} : vector<6x8x1xf32> -> vector<6x8x1xf32>
    %31 = vector.broadcast %30 : vector<6x8x1xf32> to vector<6x8x8xf32>
    %32 = arith.mulf %27, %31 : vector<6x8x8xf32>
    %33 = arith.truncf %32 : vector<6x8x8xf32> to vector<6x8x8xbf16>
    %34 = arith.truncf %15 : vector<6x8x8xf32> to vector<6x8x8xbf16>
    "tpu.trace_start"() <{level = 10 : i32, message = "bqk,bkd->bqd"}> : () -> ()
    %cst_11 = arith.constant dense<0.000000e+00> : vector<6x8x8xf32>
    %35 = tpu.matmul %33, %34, %cst_11 {dimension_numbers = #tpu.dot_dimension_numbers<[2], [1], [1], [2], [0, 0, 0, 1, 1, 2], [0], [0]>} : vector<6x8x8xbf16>, vector<6x8x8xbf16>, vector<6x8x8xf32> -> vector<6x8x8xf32>
    "tpu.trace_stop"() : () -> ()
    %36 = vector.shape_cast %35 : vector<6x8x8xf32> to vector<48x8xf32>
    %37 = vector.extract_strided_slice %7 {offsets = [0, 8], sizes = [48, 8], strides = [1, 1]} : vector<48x96xf32> to vector<48x8xf32>
    %38 = vector.shape_cast %37 : vector<48x8xf32> to vector<6x8x8xf32>
    %39 = vector.extract_strided_slice %7 {offsets = [0, 40], sizes = [48, 8], strides = [1, 1]} : vector<48x96xf32> to vector<48x8xf32>
    %40 = vector.shape_cast %39 : vector<48x8xf32> to vector<6x8x8xf32>
    %41 = vector.extract_strided_slice %7 {offsets = [0, 72], sizes = [48, 8], strides = [1, 1]} : vector<48x96xf32> to vector<48x8xf32>
    %42 = vector.shape_cast %41 : vector<48x8xf32> to vector<6x8x8xf32>
    %43 = arith.truncf %38 : vector<6x8x8xf32> to vector<6x8x8xbf16>
    %44 = arith.truncf %40 : vector<6x8x8xf32> to vector<6x8x8xbf16>
    "tpu.trace_start"() <{level = 10 : i32, message = "bqd,bkd->bqk"}> : () -> ()
    %cst_12 = arith.constant dense<0.000000e+00> : vector<6x8x8xf32>
    %45 = tpu.matmul %43, %44, %cst_12 {dimension_numbers = #tpu.dot_dimension_numbers<[2], [2], [1], [1], [0, 0, 0, 1, 1, 1], [0], [0]>} : vector<6x8x8xbf16>, vector<6x8x8xbf16>, vector<6x8x8xf32> -> vector<6x8x8xf32>
    "tpu.trace_stop"() : () -> ()
    %cst_13 = arith.constant 0.353553385 : f32
    %46 = vector.broadcast %cst_13 : f32 to vector<6x8x8xf32>
    %47 = arith.mulf %45, %46 : vector<6x8x8xf32>
    %48 = vector.broadcast %9 : vector<6x1x8xf32> to vector<6x8x8xf32>
    %49 = arith.addf %47, %48 : vector<6x8x8xf32>
    %cst_14 = arith.constant dense<0xFF800000> : vector<6x8xf32>
    %50 = vector.multi_reduction <maximumf>, %49, %cst_14 [2] : vector<6x8x8xf32> to vector<6x8xf32>
    %51 = vector.shape_cast %50 : vector<6x8xf32> to vector<6x8x1xf32>
    %52 = vector.broadcast %51 : vector<6x8x1xf32> to vector<6x8x8xf32>
    %53 = arith.subf %49, %52 : vector<6x8x8xf32>
    %54 = math.exp %53 : vector<6x8x8xf32>
    %cst_15 = arith.constant dense<0.000000e+00> : vector<6x8xf32>
    %55 = vector.multi_reduction <add>, %54, %cst_15 [2] : vector<6x8x8xf32> to vector<6x8xf32>
    %56 = vector.shape_cast %55 : vector<6x8xf32> to vector<6x8x1xf32>
    %57 = tpu.reciprocal %56 {approx = true} : vector<6x8x1xf32> -> vector<6x8x1xf32>
    %58 = vector.broadcast %57 : vector<6x8x1xf32> to vector<6x8x8xf32>
    %59 = arith.mulf %54, %58 : vector<6x8x8xf32>
    %60 = arith.truncf %59 : vector<6x8x8xf32> to vector<6x8x8xbf16>
    %61 = arith.truncf %42 : vector<6x8x8xf32> to vector<6x8x8xbf16>
    "tpu.trace_start"() <{level = 10 : i32, message = "bqk,bkd->bqd"}> : () -> ()
    %cst_16 = arith.constant dense<0.000000e+00> : vector<6x8x8xf32>
    %62 = tpu.matmul %60, %61, %cst_16 {dimension_numbers = #tpu.dot_dimension_numbers<[2], [1], [1], [2], [0, 0, 0, 1, 1, 2], [0], [0]>} : vector<6x8x8xbf16>, vector<6x8x8xbf16>, vector<6x8x8xf32> -> vector<6x8x8xf32>
    "tpu.trace_stop"() : () -> ()
    %63 = vector.shape_cast %62 : vector<6x8x8xf32> to vector<48x8xf32>
    %64 = vector.extract_strided_slice %7 {offsets = [0, 16], sizes = [48, 8], strides = [1, 1]} : vector<48x96xf32> to vector<48x8xf32>
    %65 = vector.shape_cast %64 : vector<48x8xf32> to vector<6x8x8xf32>
    %66 = vector.extract_strided_slice %7 {offsets = [0, 48], sizes = [48, 8], strides = [1, 1]} : vector<48x96xf32> to vector<48x8xf32>
    %67 = vector.shape_cast %66 : vector<48x8xf32> to vector<6x8x8xf32>
    %68 = vector.extract_strided_slice %7 {offsets = [0, 80], sizes = [48, 8], strides = [1, 1]} : vector<48x96xf32> to vector<48x8xf32>
    %69 = vector.shape_cast %68 : vector<48x8xf32> to vector<6x8x8xf32>
    %70 = arith.truncf %65 : vector<6x8x8xf32> to vector<6x8x8xbf16>
    %71 = arith.truncf %67 : vector<6x8x8xf32> to vector<6x8x8xbf16>
    "tpu.trace_start"() <{level = 10 : i32, message = "bqd,bkd->bqk"}> : () -> ()
    %cst_17 = arith.constant dense<0.000000e+00> : vector<6x8x8xf32>
    %72 = tpu.matmul %70, %71, %cst_17 {dimension_numbers = #tpu.dot_dimension_numbers<[2], [2], [1], [1], [0, 0, 0, 1, 1, 1], [0], [0]>} : vector<6x8x8xbf16>, vector<6x8x8xbf16>, vector<6x8x8xf32> -> vector<6x8x8xf32>
    "tpu.trace_stop"() : () -> ()
    %cst_18 = arith.constant 0.353553385 : f32
    %73 = vector.broadcast %cst_18 : f32 to vector<6x8x8xf32>
    %74 = arith.mulf %72, %73 : vector<6x8x8xf32>
    %75 = vector.broadcast %9 : vector<6x1x8xf32> to vector<6x8x8xf32>
    %76 = arith.addf %74, %75 : vector<6x8x8xf32>
    %cst_19 = arith.constant dense<0xFF800000> : vector<6x8xf32>
    %77 = vector.multi_reduction <maximumf>, %76, %cst_19 [2] : vector<6x8x8xf32> to vector<6x8xf32>
    %78 = vector.shape_cast %77 : vector<6x8xf32> to vector<6x8x1xf32>
    %79 = vector.broadcast %78 : vector<6x8x1xf32> to vector<6x8x8xf32>
    %80 = arith.subf %76, %79 : vector<6x8x8xf32>
    %81 = math.exp %80 : vector<6x8x8xf32>
    %cst_20 = arith.constant dense<0.000000e+00> : vector<6x8xf32>
    %82 = vector.multi_reduction <add>, %81, %cst_20 [2] : vector<6x8x8xf32> to vector<6x8xf32>
    %83 = vector.shape_cast %82 : vector<6x8xf32> to vector<6x8x1xf32>
    %84 = tpu.reciprocal %83 {approx = true} : vector<6x8x1xf32> -> vector<6x8x1xf32>
    %85 = vector.broadcast %84 : vector<6x8x1xf32> to vector<6x8x8xf32>
    %86 = arith.mulf %81, %85 : vector<6x8x8xf32>
    %87 = arith.truncf %86 : vector<6x8x8xf32> to vector<6x8x8xbf16>
    %88 = arith.truncf %69 : vector<6x8x8xf32> to vector<6x8x8xbf16>
    "tpu.trace_start"() <{level = 10 : i32, message = "bqk,bkd->bqd"}> : () -> ()
    %cst_21 = arith.constant dense<0.000000e+00> : vector<6x8x8xf32>
    %89 = tpu.matmul %87, %88, %cst_21 {dimension_numbers = #tpu.dot_dimension_numbers<[2], [1], [1], [2], [0, 0, 0, 1, 1, 2], [0], [0]>} : vector<6x8x8xbf16>, vector<6x8x8xbf16>, vector<6x8x8xf32> -> vector<6x8x8xf32>
    "tpu.trace_stop"() : () -> ()
    %90 = vector.shape_cast %89 : vector<6x8x8xf32> to vector<48x8xf32>
    %91 = vector.extract_strided_slice %7 {offsets = [0, 24], sizes = [48, 8], strides = [1, 1]} : vector<48x96xf32> to vector<48x8xf32>
    %92 = vector.shape_cast %91 : vector<48x8xf32> to vector<6x8x8xf32>
    %93 = vector.extract_strided_slice %7 {offsets = [0, 56], sizes = [48, 8], strides = [1, 1]} : vector<48x96xf32> to vector<48x8xf32>
    %94 = vector.shape_cast %93 : vector<48x8xf32> to vector<6x8x8xf32>
    %95 = vector.extract_strided_slice %7 {offsets = [0, 88], sizes = [48, 8], strides = [1, 1]} : vector<48x96xf32> to vector<48x8xf32>
    %96 = vector.shape_cast %95 : vector<48x8xf32> to vector<6x8x8xf32>
    %97 = arith.truncf %92 : vector<6x8x8xf32> to vector<6x8x8xbf16>
    %98 = arith.truncf %94 : vector<6x8x8xf32> to vector<6x8x8xbf16>
    "tpu.trace_start"() <{level = 10 : i32, message = "bqd,bkd->bqk"}> : () -> ()
    %cst_22 = arith.constant dense<0.000000e+00> : vector<6x8x8xf32>
    %99 = tpu.matmul %97, %98, %cst_22 {dimension_numbers = #tpu.dot_dimension_numbers<[2], [2], [1], [1], [0, 0, 0, 1, 1, 1], [0], [0]>} : vector<6x8x8xbf16>, vector<6x8x8xbf16>, vector<6x8x8xf32> -> vector<6x8x8xf32>
    "tpu.trace_stop"() : () -> ()
    %cst_23 = arith.constant 0.353553385 : f32
    %100 = vector.broadcast %cst_23 : f32 to vector<6x8x8xf32>
    %101 = arith.mulf %99, %100 : vector<6x8x8xf32>
    %102 = vector.broadcast %9 : vector<6x1x8xf32> to vector<6x8x8xf32>
    %103 = arith.addf %101, %102 : vector<6x8x8xf32>
    %cst_24 = arith.constant dense<0xFF800000> : vector<6x8xf32>
    %104 = vector.multi_reduction <maximumf>, %103, %cst_24 [2] : vector<6x8x8xf32> to vector<6x8xf32>
    %105 = vector.shape_cast %104 : vector<6x8xf32> to vector<6x8x1xf32>
    %106 = vector.broadcast %105 : vector<6x8x1xf32> to vector<6x8x8xf32>
    %107 = arith.subf %103, %106 : vector<6x8x8xf32>
    %108 = math.exp %107 : vector<6x8x8xf32>
    %cst_25 = arith.constant dense<0.000000e+00> : vector<6x8xf32>
    %109 = vector.multi_reduction <add>, %108, %cst_25 [2] : vector<6x8x8xf32> to vector<6x8xf32>
    %110 = vector.shape_cast %109 : vector<6x8xf32> to vector<6x8x1xf32>
    %111 = tpu.reciprocal %110 {approx = true} : vector<6x8x1xf32> -> vector<6x8x1xf32>
    %112 = vector.broadcast %111 : vector<6x8x1xf32> to vector<6x8x8xf32>
    %113 = arith.mulf %108, %112 : vector<6x8x8xf32>
    %114 = arith.truncf %113 : vector<6x8x8xf32> to vector<6x8x8xbf16>
    %115 = arith.truncf %96 : vector<6x8x8xf32> to vector<6x8x8xbf16>
    "tpu.trace_start"() <{level = 10 : i32, message = "bqk,bkd->bqd"}> : () -> ()
    %cst_26 = arith.constant dense<0.000000e+00> : vector<6x8x8xf32>
    %116 = tpu.matmul %114, %115, %cst_26 {dimension_numbers = #tpu.dot_dimension_numbers<[2], [1], [1], [2], [0, 0, 0, 1, 1, 2], [0], [0]>} : vector<6x8x8xbf16>, vector<6x8x8xbf16>, vector<6x8x8xf32> -> vector<6x8x8xf32>
    "tpu.trace_stop"() : () -> ()
    %117 = vector.shape_cast %116 : vector<6x8x8xf32> to vector<48x8xf32>
    %118 = tpu.concatenate %36, %63, %90, %117 in 1 : vector<48x8xf32>, vector<48x8xf32>, vector<48x8xf32>, vector<48x8xf32> -> vector<48x32xf32>
    %c0_27 = arith.constant 0 : index
    %c0_28 = arith.constant 0 : index
    %119 = vector.load %arg5[%c0_27, %c0_28] : memref<32x32xf32, #tpu.memory_space<vmem>>, vector<32x32xf32>
    %120 = arith.truncf %118 : vector<48x32xf32> to vector<48x32xbf16>
    %121 = arith.truncf %119 : vector<32x32xf32> to vector<32x32xbf16>
    %cst_29 = arith.constant dense<0.000000e+00> : vector<48x32xf32>
    %122 = tpu.matmul %120, %121, %cst_29 {dimension_numbers = #tpu.dot_dimension_numbers<[1], [0], [0], [1], [0, 0, 1, 1], [], []>} : vector<48x32xbf16>, vector<32x32xbf16>, vector<48x32xf32> -> vector<48x32xf32>
    %c0_30 = arith.constant 0 : index
    %c0_31 = arith.constant 0 : index
    %123 = vector.load %arg6[%c0_30, %c0_31] : memref<1x32xf32, #tpu.memory_space<vmem>>, vector<1x32xf32>
    %124 = vector.broadcast %123 : vector<1x32xf32> to vector<48x32xf32>
    %125 = arith.addf %122, %124 : vector<48x32xf32>
    %126 = arith.addf %125, %0 : vector<48x32xf32>
    %cst_32 = arith.constant dense<0.000000e+00> : vector<48xf32>
    %127 = vector.multi_reduction <add>, %126, %cst_32 [1] : vector<48x32xf32> to vector<48xf32>
    %128 = vector.shape_cast %127 : vector<48xf32> to vector<48x1xf32>
    %cst_33 = arith.constant 3.200000e+01 : f32
    %129 = vector.broadcast %cst_33 : f32 to vector<48x1xf32>
    %130 = arith.divf %128, %129 : vector<48x1xf32>
    %131 = vector.broadcast %130 : vector<48x1xf32> to vector<48x32xf32>
    %132 = arith.subf %126, %131 : vector<48x32xf32>
    %133 = arith.mulf %132, %132 : vector<48x32xf32>
    %cst_34 = arith.constant dense<0.000000e+00> : vector<48xf32>
    %134 = vector.multi_reduction <add>, %133, %cst_34 [1] : vector<48x32xf32> to vector<48xf32>
    %135 = vector.shape_cast %134 : vector<48xf32> to vector<48x1xf32>
    %cst_35 = arith.constant 3.200000e+01 : f32
    %136 = vector.broadcast %cst_35 : f32 to vector<48x1xf32>
    %137 = arith.divf %135, %136 : vector<48x1xf32>
    %138 = vector.broadcast %130 : vector<48x1xf32> to vector<48x32xf32>
    %139 = arith.subf %126, %138 : vector<48x32xf32>
    %cst_36 = arith.constant 9.99999996E-13 : f32
    %140 = vector.broadcast %cst_36 : f32 to vector<48x1xf32>
    %141 = arith.addf %137, %140 : vector<48x1xf32>
    %142 = math.rsqrt %141 : vector<48x1xf32>
    %143 = vector.broadcast %142 : vector<48x1xf32> to vector<48x32xf32>
    %144 = arith.mulf %139, %143 : vector<48x32xf32>
    %c0_37 = arith.constant 0 : index
    %c0_38 = arith.constant 0 : index
    %145 = vector.load %arg7[%c0_37, %c0_38] : memref<1x32xf32, #tpu.memory_space<vmem>>, vector<1x32xf32>
    %146 = vector.broadcast %145 : vector<1x32xf32> to vector<48x32xf32>
    %147 = arith.mulf %144, %146 : vector<48x32xf32>
    %c0_39 = arith.constant 0 : index
    %c0_40 = arith.constant 0 : index
    %148 = vector.load %arg8[%c0_39, %c0_40] : memref<1x32xf32, #tpu.memory_space<vmem>>, vector<1x32xf32>
    %149 = vector.broadcast %148 : vector<1x32xf32> to vector<48x32xf32>
    %150 = arith.addf %147, %149 : vector<48x32xf32>
    %c0_41 = arith.constant 0 : index
    %c0_42 = arith.constant 0 : index
    %151 = vector.load %arg9[%c0_41, %c0_42] : memref<32x64xf32, #tpu.memory_space<vmem>>, vector<32x64xf32>
    %152 = arith.truncf %150 : vector<48x32xf32> to vector<48x32xbf16>
    %153 = arith.truncf %151 : vector<32x64xf32> to vector<32x64xbf16>
    %cst_43 = arith.constant dense<0.000000e+00> : vector<48x64xf32>
    %154 = tpu.matmul %152, %153, %cst_43 {dimension_numbers = #tpu.dot_dimension_numbers<[1], [0], [0], [1], [0, 0, 1, 1], [], []>} : vector<48x32xbf16>, vector<32x64xbf16>, vector<48x64xf32> -> vector<48x64xf32>
    %c0_44 = arith.constant 0 : index
    %c0_45 = arith.constant 0 : index
    %155 = vector.load %arg10[%c0_44, %c0_45] : memref<1x64xf32, #tpu.memory_space<vmem>>, vector<1x64xf32>
    %156 = vector.broadcast %155 : vector<1x64xf32> to vector<48x64xf32>
    %157 = arith.addf %154, %156 : vector<48x64xf32>
    %158 = arith.mulf %157, %157 : vector<48x64xf32>
    %159 = arith.mulf %157, %158 : vector<48x64xf32>
    %cst_46 = arith.constant 4.471500e-02 : f32
    %160 = vector.broadcast %cst_46 : f32 to vector<48x64xf32>
    %161 = arith.mulf %160, %159 : vector<48x64xf32>
    %162 = arith.addf %157, %161 : vector<48x64xf32>
    %cst_47 = arith.constant 0.797884583 : f32
    %163 = vector.broadcast %cst_47 : f32 to vector<48x64xf32>
    %164 = arith.mulf %163, %162 : vector<48x64xf32>
    %165 = math.tanh %164 : vector<48x64xf32>
    %cst_48 = arith.constant 1.000000e+00 : f32
    %166 = vector.broadcast %cst_48 : f32 to vector<48x64xf32>
    %167 = arith.addf %166, %165 : vector<48x64xf32>
    %cst_49 = arith.constant 5.000000e-01 : f32
    %168 = vector.broadcast %cst_49 : f32 to vector<48x64xf32>
    %169 = arith.mulf %168, %167 : vector<48x64xf32>
    %170 = arith.mulf %157, %169 : vector<48x64xf32>
    %c0_50 = arith.constant 0 : index
    %c0_51 = arith.constant 0 : index
    %171 = vector.load %arg11[%c0_50, %c0_51] : memref<64x32xf32, #tpu.memory_space<vmem>>, vector<64x32xf32>
    %172 = arith.truncf %170 : vector<48x64xf32> to vector<48x64xbf16>
    %173 = arith.truncf %171 : vector<64x32xf32> to vector<64x32xbf16>
    %cst_52 = arith.constant dense<0.000000e+00> : vector<48x32xf32>
    %174 = tpu.matmul %172, %173, %cst_52 {dimension_numbers = #tpu.dot_dimension_numbers<[1], [0], [0], [1], [0, 0, 1, 1], [], []>} : vector<48x64xbf16>, vector<64x32xbf16>, vector<48x32xf32> -> vector<48x32xf32>
    %c0_53 = arith.constant 0 : index
    %c0_54 = arith.constant 0 : index
    %175 = vector.load %arg12[%c0_53, %c0_54] : memref<1x32xf32, #tpu.memory_space<vmem>>, vector<1x32xf32>
    %176 = vector.broadcast %175 : vector<1x32xf32> to vector<48x32xf32>
    %177 = arith.addf %174, %176 : vector<48x32xf32>
    %178 = arith.addf %177, %150 : vector<48x32xf32>
    %cst_55 = arith.constant dense<0.000000e+00> : vector<48xf32>
    %179 = vector.multi_reduction <add>, %178, %cst_55 [1] : vector<48x32xf32> to vector<48xf32>
    %180 = vector.shape_cast %179 : vector<48xf32> to vector<48x1xf32>
    %cst_56 = arith.constant 3.200000e+01 : f32
    %181 = vector.broadcast %cst_56 : f32 to vector<48x1xf32>
    %182 = arith.divf %180, %181 : vector<48x1xf32>
    %183 = vector.broadcast %182 : vector<48x1xf32> to vector<48x32xf32>
    %184 = arith.subf %178, %183 : vector<48x32xf32>
    %185 = arith.mulf %184, %184 : vector<48x32xf32>
    %cst_57 = arith.constant dense<0.000000e+00> : vector<48xf32>
    %186 = vector.multi_reduction <add>, %185, %cst_57 [1] : vector<48x32xf32> to vector<48xf32>
    %187 = vector.shape_cast %186 : vector<48xf32> to vector<48x1xf32>
    %cst_58 = arith.constant 3.200000e+01 : f32
    %188 = vector.broadcast %cst_58 : f32 to vector<48x1xf32>
    %189 = arith.divf %187, %188 : vector<48x1xf32>
    %190 = vector.broadcast %182 : vector<48x1xf32> to vector<48x32xf32>
    %191 = arith.subf %178, %190 : vector<48x32xf32>
    %cst_59 = arith.constant 9.99999996E-13 : f32
    %192 = vector.broadcast %cst_59 : f32 to vector<48x1xf32>
    %193 = arith.addf %189, %192 : vector<48x1xf32>
    %194 = math.rsqrt %193 : vector<48x1xf32>
    %195 = vector.broadcast %194 : vector<48x1xf32> to vector<48x32xf32>
    %196 = arith.mulf %191, %195 : vector<48x32xf32>
    %c0_60 = arith.constant 0 : index
    %c0_61 = arith.constant 0 : index
    %197 = vector.load %arg13[%c0_60, %c0_61] : memref<1x32xf32, #tpu.memory_space<vmem>>, vector<1x32xf32>
    %198 = vector.broadcast %197 : vector<1x32xf32> to vector<48x32xf32>
    %199 = arith.mulf %196, %198 : vector<48x32xf32>
    %c0_62 = arith.constant 0 : index
    %c0_63 = arith.constant 0 : index
    %200 = vector.load %arg14[%c0_62, %c0_63] : memref<1x32xf32, #tpu.memory_space<vmem>>, vector<1x32xf32>
    %201 = vector.broadcast %200 : vector<1x32xf32> to vector<48x32xf32>
    %202 = arith.addf %199, %201 : vector<48x32xf32>
    %c0_64 = arith.constant 0 : index
    %c0_65 = arith.constant 0 : index
    %203 = vector.load %arg15[%c0_64, %c0_65] : memref<48x32xf32, #tpu.memory_space<vmem>>, vector<48x32xf32>
    tpu.vector_store %arg15[%c0_64, %c0_65], %202 {strides = array<i32>} : memref<48x32xf32, #tpu.memory_space<vmem>>, vector<48x32xf32>,
    return
  }
  func.func @transform_0(%arg0: i32) -> (i32, i32) {
    %c0_i32 = arith.constant 0 : i32
    %c0_i32_0 = arith.constant 0 : i32
    %c0_i32_1 = arith.constant 0 : i32
    return %c0_i32, %c0_i32_0 : i32, i32
  }
  func.func @transform_1(%arg0: i32) -> (i32, i32) {
    %c0_i32 = arith.constant 0 : i32
    %c0_i32_0 = arith.constant 0 : i32
    %c0_i32_1 = arith.constant 0 : i32
    return %c0_i32, %c0_i32_0 : i32, i32
  }
  func.func @transform_2(%arg0: i32) -> (i32, i32) {
    %c0_i32 = arith.constant 0 : i32
    %c0_i32_0 = arith.constant 0 : i32
    %c0_i32_1 = arith.constant 0 : i32
    return %c0_i32, %c0_i32_0 : i32, i32
  }
  func.func @transform_3(%arg0: i32) -> (i32, i32) {
    %c0_i32 = arith.constant 0 : i32
    %c0_i32_0 = arith.constant 0 : i32
    %c0_i32_1 = arith.constant 0 : i32
    return %c0_i32, %c0_i32_0 : i32, i32
  }
  func.func @transform_4(%arg0: i32) -> (i32, i32) {
    %c0_i32 = arith.constant 0 : i32
    %c0_i32_0 = arith.constant 0 : i32
    %c0_i32_1 = arith.constant 0 : i32
    return %c0_i32, %c0_i32_0 : i32, i32
  }
  func.func @transform_5(%arg0: i32) -> (i32, i32) {
    %c0_i32 = arith.constant 0 : i32
    %c0_i32_0 = arith.constant 0 : i32
    %c0_i32_1 = arith.constant 0 : i32
    return %c0_i32, %c0_i32_0 : i32, i32
  }
  func.func @transform_6(%arg0: i32) -> (i32, i32) {
    %c0_i32 = arith.constant 0 : i32
    %c0_i32_0 = arith.constant 0 : i32
    %c0_i32_1 = arith.constant 0 : i32
    return %c0_i32, %c0_i32_0 : i32, i32
  }
  func.func @transform_7(%arg0: i32) -> (i32, i32) {
    %c0_i32 = arith.constant 0 : i32
    %c0_i32_0 = arith.constant 0 : i32
    %c0_i32_1 = arith.constant 0 : i32
    return %c0_i32, %c0_i32_0 : i32, i32
  }
  func.func @transform_8(%arg0: i32) -> (i32, i32) {
    %c0_i32 = arith.constant 0 : i32
    %c0_i32_0 = arith.constant 0 : i32
    %c0_i32_1 = arith.constant 0 : i32
    return %c0_i32, %c0_i32_0 : i32, i32
  }
  func.func @transform_9(%arg0: i32) -> (i32, i32) {
    %c0_i32 = arith.constant 0 : i32
    %c0_i32_0 = arith.constant 0 : i32
    %c0_i32_1 = arith.constant 0 : i32
    return %c0_i32, %c0_i32_0 : i32, i32
  }
  func.func @transform_10(%arg0: i32) -> (i32, i32) {
    %c0_i32 = arith.constant 0 : i32
    %c0_i32_0 = arith.constant 0 : i32
    %c0_i32_1 = arith.constant 0 : i32
    return %c0_i32, %c0_i32_0 : i32, i32
  }
  func.func @transform_11(%arg0: i32) -> (i32, i32) {
    %c0_i32 = arith.constant 0 : i32
    %c0_i32_0 = arith.constant 0 : i32
    %c0_i32_1 = arith.constant 0 : i32
    return %c0_i32, %c0_i32_0 : i32, i32
  }
  func.func @transform_12(%arg0: i32) -> (i32, i32) {
    %c0_i32 = arith.constant 0 : i32
    %c0_i32_0 = arith.constant 0 : i32
    %c0_i32_1 = arith.constant 0 : i32
    return %c0_i32, %c0_i32_0 : i32, i32
  }
  func.func @transform_13(%arg0: i32) -> (i32, i32) {
    %c0_i32 = arith.constant 0 : i32
    %c0_i32_0 = arith.constant 0 : i32
    %c0_i32_1 = arith.constant 0 : i32
    return %c0_i32, %c0_i32_0 : i32, i32
  }
  func.func @transform_14(%arg0: i32) -> (i32, i32) {
    %c0_i32 = arith.constant 0 : i32
    %c0_i32_0 = arith.constant 0 : i32
    %c0_i32_1 = arith.constant 0 : i32
    return %c0_i32, %c0_i32_0 : i32, i32
  }
}

module attributes {stable_mosaic.version = 11 : i64} {
  func.func @_bilstm_kernel(%arg0: i32, %arg1: memref<1x6x32xf32, #tpu.memory_space<vmem>>, %arg2: memref<1x32x128xf32, #tpu.memory_space<vmem>>, %arg3: memref<1x32x128xf32, #tpu.memory_space<vmem>>, %arg4: memref<1x1x128xf32, #tpu.memory_space<vmem>>, %arg5: memref<1x6x32xf32, #tpu.memory_space<vmem>>, %arg6: memref<6x128xf32, #tpu.memory_space<vmem>>, %arg7: memref<1x32xf32, #tpu.memory_space<vmem>>, %arg8: memref<1x32xf32, #tpu.memory_space<vmem>>) attributes {dimension_semantics = [#tpu.dimension_semantics<parallel>], iteration_bounds = array<i64: 2>, scalar_prefetch = 0 : i64, scratch_operands = 3 : i64, tpu.core_type = #tpu.core_type<tc>, window_params = [{transform_indices = @transform_0, window_bounds = array<i64: 1, 6, 32>}, {transform_indices = @transform_1, window_bounds = array<i64: 1, 32, 128>}, {transform_indices = @transform_2, window_bounds = array<i64: 1, 32, 128>}, {transform_indices = @transform_3, window_bounds = array<i64: 1, 1, 128>}, {transform_indices = @transform_4, window_bounds = array<i64: 1, 6, 32>}]} {
    %c0 = arith.constant 0 : index
    %c0_0 = arith.constant 0 : index
    %c0_1 = arith.constant 0 : index
    %0 = vector.load %arg1[%c0, %c0_0, %c0_1] : memref<1x6x32xf32, #tpu.memory_space<vmem>>, vector<1x6x32xf32>
    %1 = vector.shape_cast %0 : vector<1x6x32xf32> to vector<6x32xf32>
    %2 = arith.truncf %1 : vector<6x32xf32> to vector<6x32xbf16>
    %c0_2 = arith.constant 0 : index
    %c0_3 = arith.constant 0 : index
    %c0_4 = arith.constant 0 : index
    %3 = vector.load %arg2[%c0_2, %c0_3, %c0_4] : memref<1x32x128xf32, #tpu.memory_space<vmem>>, vector<1x32x128xf32>
    %4 = vector.shape_cast %3 : vector<1x32x128xf32> to vector<32x128xf32>
    %5 = arith.truncf %4 : vector<32x128xf32> to vector<32x128xbf16>
    %cst = arith.constant dense<0.000000e+00> : vector<6x128xf32>
    %6 = tpu.matmul %2, %5, %cst {dimension_numbers = #tpu.dot_dimension_numbers<[1], [0], [0], [1], [0, 0, 1, 1], [], []>} : vector<6x32xbf16>, vector<32x128xbf16>, vector<6x128xf32> -> vector<6x128xf32>
    %c0_5 = arith.constant 0 : index
    %c0_6 = arith.constant 0 : index
    %c0_7 = arith.constant 0 : index
    %7 = vector.load %arg4[%c0_5, %c0_6, %c0_7] : memref<1x1x128xf32, #tpu.memory_space<vmem>>, vector<1x1x128xf32>
    %8 = vector.shape_cast %7 : vector<1x1x128xf32> to vector<1x128xf32>
    %9 = vector.broadcast %8 : vector<1x128xf32> to vector<6x128xf32>
    %10 = arith.addf %6, %9 : vector<6x128xf32>
    %c0_8 = arith.constant 0 : index
    %c0_9 = arith.constant 0 : index
    %11 = vector.load %arg6[%c0_8, %c0_9] : memref<6x128xf32, #tpu.memory_space<vmem>>, vector<6x128xf32>
    tpu.vector_store %arg6[%c0_8, %c0_9], %10 {strides = array<i32>} : memref<6x128xf32, #tpu.memory_space<vmem>>, vector<6x128xf32>,
    %c0_10 = arith.constant 0 : index
    %c0_11 = arith.constant 0 : index
    %c0_12 = arith.constant 0 : index
    %12 = vector.load %arg3[%c0_10, %c0_11, %c0_12] : memref<1x32x128xf32, #tpu.memory_space<vmem>>, vector<1x32x128xf32>
    %13 = vector.shape_cast %12 : vector<1x32x128xf32> to vector<32x128xf32>
    %14 = arith.truncf %13 : vector<32x128xf32> to vector<32x128xbf16>
    %cst_13 = arith.constant 0.000000e+00 : f32
    %15 = vector.broadcast %cst_13 : f32 to vector<1x32xf32>
    %c0_14 = arith.constant 0 : index
    %c0_15 = arith.constant 0 : index
    %16 = vector.load %arg7[%c0_14, %c0_15] : memref<1x32xf32, #tpu.memory_space<vmem>>, vector<1x32xf32>
    tpu.vector_store %arg7[%c0_14, %c0_15], %15 {strides = array<i32>} : memref<1x32xf32, #tpu.memory_space<vmem>>, vector<1x32xf32>,
    %cst_16 = arith.constant 0.000000e+00 : f32
    %17 = vector.broadcast %cst_16 : f32 to vector<1x32xf32>
    %c0_17 = arith.constant 0 : index
    %c0_18 = arith.constant 0 : index
    %18 = vector.load %arg8[%c0_17, %c0_18] : memref<1x32xf32, #tpu.memory_space<vmem>>, vector<1x32xf32>
    tpu.vector_store %arg8[%c0_17, %c0_18], %17 {strides = array<i32>} : memref<1x32xf32, #tpu.memory_space<vmem>>, vector<1x32xf32>,
    %c0_19 = arith.constant 0 : index
    %c0_20 = arith.constant 0 : index
    %19 = vector.load %arg6[%c0_19, %c0_20] : memref<6x128xf32, #tpu.memory_space<vmem>>, vector<1x128xf32>
    %c0_21 = arith.constant 0 : index
    %c0_22 = arith.constant 0 : index
    %20 = vector.load %arg7[%c0_21, %c0_22] : memref<1x32xf32, #tpu.memory_space<vmem>>, vector<1x32xf32>
    %21 = arith.truncf %20 : vector<1x32xf32> to vector<1x32xbf16>
    %cst_23 = arith.constant dense<0.000000e+00> : vector<1x128xf32>
    %22 = tpu.matmul %21, %14, %cst_23 {dimension_numbers = #tpu.dot_dimension_numbers<[1], [0], [0], [1], [0, 0, 1, 1], [], []>} : vector<1x32xbf16>, vector<32x128xbf16>, vector<1x128xf32> -> vector<1x128xf32>
    %23 = arith.addf %19, %22 : vector<1x128xf32>
    %24 = vector.extract_strided_slice %23 {offsets = [0, 0], sizes = [1, 32], strides = [1, 1]} : vector<1x128xf32> to vector<1x32xf32>
    %25 = arith.negf %24 : vector<1x32xf32>
    %26 = math.exp %25 : vector<1x32xf32>
    %cst_24 = arith.constant 1.000000e+00 : f32
    %27 = vector.broadcast %cst_24 : f32 to vector<1x32xf32>
    %28 = arith.addf %27, %26 : vector<1x32xf32>
    %29 = arith.divf %27, %28 : vector<1x32xf32>
    %30 = vector.extract_strided_slice %23 {offsets = [0, 32], sizes = [1, 32], strides = [1, 1]} : vector<1x128xf32> to vector<1x32xf32>
    %31 = arith.negf %30 : vector<1x32xf32>
    %32 = math.exp %31 : vector<1x32xf32>
    %cst_25 = arith.constant 1.000000e+00 : f32
    %33 = vector.broadcast %cst_25 : f32 to vector<1x32xf32>
    %34 = arith.addf %33, %32 : vector<1x32xf32>
    %35 = arith.divf %33, %34 : vector<1x32xf32>
    %36 = vector.extract_strided_slice %23 {offsets = [0, 64], sizes = [1, 32], strides = [1, 1]} : vector<1x128xf32> to vector<1x32xf32>
    %37 = math.tanh %36 : vector<1x32xf32>
    %38 = vector.extract_strided_slice %23 {offsets = [0, 96], sizes = [1, 32], strides = [1, 1]} : vector<1x128xf32> to vector<1x32xf32>
    %39 = arith.negf %38 : vector<1x32xf32>
    %40 = math.exp %39 : vector<1x32xf32>
    %cst_26 = arith.constant 1.000000e+00 : f32
    %41 = vector.broadcast %cst_26 : f32 to vector<1x32xf32>
    %42 = arith.addf %41, %40 : vector<1x32xf32>
    %43 = arith.divf %41, %42 : vector<1x32xf32>
    %c0_27 = arith.constant 0 : index
    %c0_28 = arith.constant 0 : index
    %44 = vector.load %arg8[%c0_27, %c0_28] : memref<1x32xf32, #tpu.memory_space<vmem>>, vector<1x32xf32>
    %45 = arith.mulf %35, %44 : vector<1x32xf32>
    %46 = arith.mulf %29, %37 : vector<1x32xf32>
    %47 = arith.addf %45, %46 : vector<1x32xf32>
    %48 = math.tanh %47 : vector<1x32xf32>
    %49 = arith.mulf %43, %48 : vector<1x32xf32>
    %c0_29 = arith.constant 0 : index
    %c0_30 = arith.constant 0 : index
    %50 = vector.load %arg8[%c0_29, %c0_30] : memref<1x32xf32, #tpu.memory_space<vmem>>, vector<1x32xf32>
    tpu.vector_store %arg8[%c0_29, %c0_30], %47 {strides = array<i32>} : memref<1x32xf32, #tpu.memory_space<vmem>>, vector<1x32xf32>,
    %c0_31 = arith.constant 0 : index
    %c0_32 = arith.constant 0 : index
    %51 = vector.load %arg7[%c0_31, %c0_32] : memref<1x32xf32, #tpu.memory_space<vmem>>, vector<1x32xf32>
    tpu.vector_store %arg7[%c0_31, %c0_32], %49 {strides = array<i32>} : memref<1x32xf32, #tpu.memory_space<vmem>>, vector<1x32xf32>,
    %c0_33 = arith.constant 0 : index
    %c0_34 = arith.constant 0 : index
    %c0_35 = arith.constant 0 : index
    %52 = vector.load %arg5[%c0_33, %c0_34, %c0_35] : memref<1x6x32xf32, #tpu.memory_space<vmem>>, vector<1x1x32xf32>
    %53 = vector.shape_cast %52 : vector<1x1x32xf32> to vector<1x32xf32>
    %54 = vector.shape_cast %49 : vector<1x32xf32> to vector<1x1x32xf32>
    tpu.vector_store %arg5[%c0_33, %c0_34, %c0_35], %54 {strides = array<i32>} : memref<1x6x32xf32, #tpu.memory_space<vmem>>, vector<1x1x32xf32>,
    %c1 = arith.constant 1 : index
    %c0_36 = arith.constant 0 : index
    %55 = vector.load %arg6[%c1, %c0_36] : memref<6x128xf32, #tpu.memory_space<vmem>>, vector<1x128xf32>
    %c0_37 = arith.constant 0 : index
    %c0_38 = arith.constant 0 : index
    %56 = vector.load %arg7[%c0_37, %c0_38] : memref<1x32xf32, #tpu.memory_space<vmem>>, vector<1x32xf32>
    %57 = arith.truncf %56 : vector<1x32xf32> to vector<1x32xbf16>
    %cst_39 = arith.constant dense<0.000000e+00> : vector<1x128xf32>
    %58 = tpu.matmul %57, %14, %cst_39 {dimension_numbers = #tpu.dot_dimension_numbers<[1], [0], [0], [1], [0, 0, 1, 1], [], []>} : vector<1x32xbf16>, vector<32x128xbf16>, vector<1x128xf32> -> vector<1x128xf32>
    %59 = arith.addf %55, %58 : vector<1x128xf32>
    %60 = vector.extract_strided_slice %59 {offsets = [0, 0], sizes = [1, 32], strides = [1, 1]} : vector<1x128xf32> to vector<1x32xf32>
    %61 = arith.negf %60 : vector<1x32xf32>
    %62 = math.exp %61 : vector<1x32xf32>
    %cst_40 = arith.constant 1.000000e+00 : f32
    %63 = vector.broadcast %cst_40 : f32 to vector<1x32xf32>
    %64 = arith.addf %63, %62 : vector<1x32xf32>
    %65 = arith.divf %63, %64 : vector<1x32xf32>
    %66 = vector.extract_strided_slice %59 {offsets = [0, 32], sizes = [1, 32], strides = [1, 1]} : vector<1x128xf32> to vector<1x32xf32>
    %67 = arith.negf %66 : vector<1x32xf32>
    %68 = math.exp %67 : vector<1x32xf32>
    %cst_41 = arith.constant 1.000000e+00 : f32
    %69 = vector.broadcast %cst_41 : f32 to vector<1x32xf32>
    %70 = arith.addf %69, %68 : vector<1x32xf32>
    %71 = arith.divf %69, %70 : vector<1x32xf32>
    %72 = vector.extract_strided_slice %59 {offsets = [0, 64], sizes = [1, 32], strides = [1, 1]} : vector<1x128xf32> to vector<1x32xf32>
    %73 = math.tanh %72 : vector<1x32xf32>
    %74 = vector.extract_strided_slice %59 {offsets = [0, 96], sizes = [1, 32], strides = [1, 1]} : vector<1x128xf32> to vector<1x32xf32>
    %75 = arith.negf %74 : vector<1x32xf32>
    %76 = math.exp %75 : vector<1x32xf32>
    %cst_42 = arith.constant 1.000000e+00 : f32
    %77 = vector.broadcast %cst_42 : f32 to vector<1x32xf32>
    %78 = arith.addf %77, %76 : vector<1x32xf32>
    %79 = arith.divf %77, %78 : vector<1x32xf32>
    %c0_43 = arith.constant 0 : index
    %c0_44 = arith.constant 0 : index
    %80 = vector.load %arg8[%c0_43, %c0_44] : memref<1x32xf32, #tpu.memory_space<vmem>>, vector<1x32xf32>
    %81 = arith.mulf %71, %80 : vector<1x32xf32>
    %82 = arith.mulf %65, %73 : vector<1x32xf32>
    %83 = arith.addf %81, %82 : vector<1x32xf32>
    %84 = math.tanh %83 : vector<1x32xf32>
    %85 = arith.mulf %79, %84 : vector<1x32xf32>
    %c0_45 = arith.constant 0 : index
    %c0_46 = arith.constant 0 : index
    %86 = vector.load %arg8[%c0_45, %c0_46] : memref<1x32xf32, #tpu.memory_space<vmem>>, vector<1x32xf32>
    tpu.vector_store %arg8[%c0_45, %c0_46], %83 {strides = array<i32>} : memref<1x32xf32, #tpu.memory_space<vmem>>, vector<1x32xf32>,
    %c0_47 = arith.constant 0 : index
    %c0_48 = arith.constant 0 : index
    %87 = vector.load %arg7[%c0_47, %c0_48] : memref<1x32xf32, #tpu.memory_space<vmem>>, vector<1x32xf32>
    tpu.vector_store %arg7[%c0_47, %c0_48], %85 {strides = array<i32>} : memref<1x32xf32, #tpu.memory_space<vmem>>, vector<1x32xf32>,
    %c0_49 = arith.constant 0 : index
    %c1_50 = arith.constant 1 : index
    %c0_51 = arith.constant 0 : index
    %88 = vector.load %arg5[%c0_49, %c1_50, %c0_51] : memref<1x6x32xf32, #tpu.memory_space<vmem>>, vector<1x1x32xf32>
    %89 = vector.shape_cast %88 : vector<1x1x32xf32> to vector<1x32xf32>
    %90 = vector.shape_cast %85 : vector<1x32xf32> to vector<1x1x32xf32>
    tpu.vector_store %arg5[%c0_49, %c1_50, %c0_51], %90 {strides = array<i32>} : memref<1x6x32xf32, #tpu.memory_space<vmem>>, vector<1x1x32xf32>,
    %c2 = arith.constant 2 : index
    %c0_52 = arith.constant 0 : index
    %91 = vector.load %arg6[%c2, %c0_52] : memref<6x128xf32, #tpu.memory_space<vmem>>, vector<1x128xf32>
    %c0_53 = arith.constant 0 : index
    %c0_54 = arith.constant 0 : index
    %92 = vector.load %arg7[%c0_53, %c0_54] : memref<1x32xf32, #tpu.memory_space<vmem>>, vector<1x32xf32>
    %93 = arith.truncf %92 : vector<1x32xf32> to vector<1x32xbf16>
    %cst_55 = arith.constant dense<0.000000e+00> : vector<1x128xf32>
    %94 = tpu.matmul %93, %14, %cst_55 {dimension_numbers = #tpu.dot_dimension_numbers<[1], [0], [0], [1], [0, 0, 1, 1], [], []>} : vector<1x32xbf16>, vector<32x128xbf16>, vector<1x128xf32> -> vector<1x128xf32>
    %95 = arith.addf %91, %94 : vector<1x128xf32>
    %96 = vector.extract_strided_slice %95 {offsets = [0, 0], sizes = [1, 32], strides = [1, 1]} : vector<1x128xf32> to vector<1x32xf32>
    %97 = arith.negf %96 : vector<1x32xf32>
    %98 = math.exp %97 : vector<1x32xf32>
    %cst_56 = arith.constant 1.000000e+00 : f32
    %99 = vector.broadcast %cst_56 : f32 to vector<1x32xf32>
    %100 = arith.addf %99, %98 : vector<1x32xf32>
    %101 = arith.divf %99, %100 : vector<1x32xf32>
    %102 = vector.extract_strided_slice %95 {offsets = [0, 32], sizes = [1, 32], strides = [1, 1]} : vector<1x128xf32> to vector<1x32xf32>
    %103 = arith.negf %102 : vector<1x32xf32>
    %104 = math.exp %103 : vector<1x32xf32>
    %cst_57 = arith.constant 1.000000e+00 : f32
    %105 = vector.broadcast %cst_57 : f32 to vector<1x32xf32>
    %106 = arith.addf %105, %104 : vector<1x32xf32>
    %107 = arith.divf %105, %106 : vector<1x32xf32>
    %108 = vector.extract_strided_slice %95 {offsets = [0, 64], sizes = [1, 32], strides = [1, 1]} : vector<1x128xf32> to vector<1x32xf32>
    %109 = math.tanh %108 : vector<1x32xf32>
    %110 = vector.extract_strided_slice %95 {offsets = [0, 96], sizes = [1, 32], strides = [1, 1]} : vector<1x128xf32> to vector<1x32xf32>
    %111 = arith.negf %110 : vector<1x32xf32>
    %112 = math.exp %111 : vector<1x32xf32>
    %cst_58 = arith.constant 1.000000e+00 : f32
    %113 = vector.broadcast %cst_58 : f32 to vector<1x32xf32>
    %114 = arith.addf %113, %112 : vector<1x32xf32>
    %115 = arith.divf %113, %114 : vector<1x32xf32>
    %c0_59 = arith.constant 0 : index
    %c0_60 = arith.constant 0 : index
    %116 = vector.load %arg8[%c0_59, %c0_60] : memref<1x32xf32, #tpu.memory_space<vmem>>, vector<1x32xf32>
    %117 = arith.mulf %107, %116 : vector<1x32xf32>
    %118 = arith.mulf %101, %109 : vector<1x32xf32>
    %119 = arith.addf %117, %118 : vector<1x32xf32>
    %120 = math.tanh %119 : vector<1x32xf32>
    %121 = arith.mulf %115, %120 : vector<1x32xf32>
    %c0_61 = arith.constant 0 : index
    %c0_62 = arith.constant 0 : index
    %122 = vector.load %arg8[%c0_61, %c0_62] : memref<1x32xf32, #tpu.memory_space<vmem>>, vector<1x32xf32>
    tpu.vector_store %arg8[%c0_61, %c0_62], %119 {strides = array<i32>} : memref<1x32xf32, #tpu.memory_space<vmem>>, vector<1x32xf32>,
    %c0_63 = arith.constant 0 : index
    %c0_64 = arith.constant 0 : index
    %123 = vector.load %arg7[%c0_63, %c0_64] : memref<1x32xf32, #tpu.memory_space<vmem>>, vector<1x32xf32>
    tpu.vector_store %arg7[%c0_63, %c0_64], %121 {strides = array<i32>} : memref<1x32xf32, #tpu.memory_space<vmem>>, vector<1x32xf32>,
    %c0_65 = arith.constant 0 : index
    %c2_66 = arith.constant 2 : index
    %c0_67 = arith.constant 0 : index
    %124 = vector.load %arg5[%c0_65, %c2_66, %c0_67] : memref<1x6x32xf32, #tpu.memory_space<vmem>>, vector<1x1x32xf32>
    %125 = vector.shape_cast %124 : vector<1x1x32xf32> to vector<1x32xf32>
    %126 = vector.shape_cast %121 : vector<1x32xf32> to vector<1x1x32xf32>
    tpu.vector_store %arg5[%c0_65, %c2_66, %c0_67], %126 {strides = array<i32>} : memref<1x6x32xf32, #tpu.memory_space<vmem>>, vector<1x1x32xf32>,
    %c3 = arith.constant 3 : index
    %c0_68 = arith.constant 0 : index
    %127 = vector.load %arg6[%c3, %c0_68] : memref<6x128xf32, #tpu.memory_space<vmem>>, vector<1x128xf32>
    %c0_69 = arith.constant 0 : index
    %c0_70 = arith.constant 0 : index
    %128 = vector.load %arg7[%c0_69, %c0_70] : memref<1x32xf32, #tpu.memory_space<vmem>>, vector<1x32xf32>
    %129 = arith.truncf %128 : vector<1x32xf32> to vector<1x32xbf16>
    %cst_71 = arith.constant dense<0.000000e+00> : vector<1x128xf32>
    %130 = tpu.matmul %129, %14, %cst_71 {dimension_numbers = #tpu.dot_dimension_numbers<[1], [0], [0], [1], [0, 0, 1, 1], [], []>} : vector<1x32xbf16>, vector<32x128xbf16>, vector<1x128xf32> -> vector<1x128xf32>
    %131 = arith.addf %127, %130 : vector<1x128xf32>
    %132 = vector.extract_strided_slice %131 {offsets = [0, 0], sizes = [1, 32], strides = [1, 1]} : vector<1x128xf32> to vector<1x32xf32>
    %133 = arith.negf %132 : vector<1x32xf32>
    %134 = math.exp %133 : vector<1x32xf32>
    %cst_72 = arith.constant 1.000000e+00 : f32
    %135 = vector.broadcast %cst_72 : f32 to vector<1x32xf32>
    %136 = arith.addf %135, %134 : vector<1x32xf32>
    %137 = arith.divf %135, %136 : vector<1x32xf32>
    %138 = vector.extract_strided_slice %131 {offsets = [0, 32], sizes = [1, 32], strides = [1, 1]} : vector<1x128xf32> to vector<1x32xf32>
    %139 = arith.negf %138 : vector<1x32xf32>
    %140 = math.exp %139 : vector<1x32xf32>
    %cst_73 = arith.constant 1.000000e+00 : f32
    %141 = vector.broadcast %cst_73 : f32 to vector<1x32xf32>
    %142 = arith.addf %141, %140 : vector<1x32xf32>
    %143 = arith.divf %141, %142 : vector<1x32xf32>
    %144 = vector.extract_strided_slice %131 {offsets = [0, 64], sizes = [1, 32], strides = [1, 1]} : vector<1x128xf32> to vector<1x32xf32>
    %145 = math.tanh %144 : vector<1x32xf32>
    %146 = vector.extract_strided_slice %131 {offsets = [0, 96], sizes = [1, 32], strides = [1, 1]} : vector<1x128xf32> to vector<1x32xf32>
    %147 = arith.negf %146 : vector<1x32xf32>
    %148 = math.exp %147 : vector<1x32xf32>
    %cst_74 = arith.constant 1.000000e+00 : f32
    %149 = vector.broadcast %cst_74 : f32 to vector<1x32xf32>
    %150 = arith.addf %149, %148 : vector<1x32xf32>
    %151 = arith.divf %149, %150 : vector<1x32xf32>
    %c0_75 = arith.constant 0 : index
    %c0_76 = arith.constant 0 : index
    %152 = vector.load %arg8[%c0_75, %c0_76] : memref<1x32xf32, #tpu.memory_space<vmem>>, vector<1x32xf32>
    %153 = arith.mulf %143, %152 : vector<1x32xf32>
    %154 = arith.mulf %137, %145 : vector<1x32xf32>
    %155 = arith.addf %153, %154 : vector<1x32xf32>
    %156 = math.tanh %155 : vector<1x32xf32>
    %157 = arith.mulf %151, %156 : vector<1x32xf32>
    %c0_77 = arith.constant 0 : index
    %c0_78 = arith.constant 0 : index
    %158 = vector.load %arg8[%c0_77, %c0_78] : memref<1x32xf32, #tpu.memory_space<vmem>>, vector<1x32xf32>
    tpu.vector_store %arg8[%c0_77, %c0_78], %155 {strides = array<i32>} : memref<1x32xf32, #tpu.memory_space<vmem>>, vector<1x32xf32>,
    %c0_79 = arith.constant 0 : index
    %c0_80 = arith.constant 0 : index
    %159 = vector.load %arg7[%c0_79, %c0_80] : memref<1x32xf32, #tpu.memory_space<vmem>>, vector<1x32xf32>
    tpu.vector_store %arg7[%c0_79, %c0_80], %157 {strides = array<i32>} : memref<1x32xf32, #tpu.memory_space<vmem>>, vector<1x32xf32>,
    %c0_81 = arith.constant 0 : index
    %c3_82 = arith.constant 3 : index
    %c0_83 = arith.constant 0 : index
    %160 = vector.load %arg5[%c0_81, %c3_82, %c0_83] : memref<1x6x32xf32, #tpu.memory_space<vmem>>, vector<1x1x32xf32>
    %161 = vector.shape_cast %160 : vector<1x1x32xf32> to vector<1x32xf32>
    %162 = vector.shape_cast %157 : vector<1x32xf32> to vector<1x1x32xf32>
    tpu.vector_store %arg5[%c0_81, %c3_82, %c0_83], %162 {strides = array<i32>} : memref<1x6x32xf32, #tpu.memory_space<vmem>>, vector<1x1x32xf32>,
    %c4 = arith.constant 4 : index
    %c0_84 = arith.constant 0 : index
    %163 = vector.load %arg6[%c4, %c0_84] : memref<6x128xf32, #tpu.memory_space<vmem>>, vector<1x128xf32>
    %c0_85 = arith.constant 0 : index
    %c0_86 = arith.constant 0 : index
    %164 = vector.load %arg7[%c0_85, %c0_86] : memref<1x32xf32, #tpu.memory_space<vmem>>, vector<1x32xf32>
    %165 = arith.truncf %164 : vector<1x32xf32> to vector<1x32xbf16>
    %cst_87 = arith.constant dense<0.000000e+00> : vector<1x128xf32>
    %166 = tpu.matmul %165, %14, %cst_87 {dimension_numbers = #tpu.dot_dimension_numbers<[1], [0], [0], [1], [0, 0, 1, 1], [], []>} : vector<1x32xbf16>, vector<32x128xbf16>, vector<1x128xf32> -> vector<1x128xf32>
    %167 = arith.addf %163, %166 : vector<1x128xf32>
    %168 = vector.extract_strided_slice %167 {offsets = [0, 0], sizes = [1, 32], strides = [1, 1]} : vector<1x128xf32> to vector<1x32xf32>
    %169 = arith.negf %168 : vector<1x32xf32>
    %170 = math.exp %169 : vector<1x32xf32>
    %cst_88 = arith.constant 1.000000e+00 : f32
    %171 = vector.broadcast %cst_88 : f32 to vector<1x32xf32>
    %172 = arith.addf %171, %170 : vector<1x32xf32>
    %173 = arith.divf %171, %172 : vector<1x32xf32>
    %174 = vector.extract_strided_slice %167 {offsets = [0, 32], sizes = [1, 32], strides = [1, 1]} : vector<1x128xf32> to vector<1x32xf32>
    %175 = arith.negf %174 : vector<1x32xf32>
    %176 = math.exp %175 : vector<1x32xf32>
    %cst_89 = arith.constant 1.000000e+00 : f32
    %177 = vector.broadcast %cst_89 : f32 to vector<1x32xf32>
    %178 = arith.addf %177, %176 : vector<1x32xf32>
    %179 = arith.divf %177, %178 : vector<1x32xf32>
    %180 = vector.extract_strided_slice %167 {offsets = [0, 64], sizes = [1, 32], strides = [1, 1]} : vector<1x128xf32> to vector<1x32xf32>
    %181 = math.tanh %180 : vector<1x32xf32>
    %182 = vector.extract_strided_slice %167 {offsets = [0, 96], sizes = [1, 32], strides = [1, 1]} : vector<1x128xf32> to vector<1x32xf32>
    %183 = arith.negf %182 : vector<1x32xf32>
    %184 = math.exp %183 : vector<1x32xf32>
    %cst_90 = arith.constant 1.000000e+00 : f32
    %185 = vector.broadcast %cst_90 : f32 to vector<1x32xf32>
    %186 = arith.addf %185, %184 : vector<1x32xf32>
    %187 = arith.divf %185, %186 : vector<1x32xf32>
    %c0_91 = arith.constant 0 : index
    %c0_92 = arith.constant 0 : index
    %188 = vector.load %arg8[%c0_91, %c0_92] : memref<1x32xf32, #tpu.memory_space<vmem>>, vector<1x32xf32>
    %189 = arith.mulf %179, %188 : vector<1x32xf32>
    %190 = arith.mulf %173, %181 : vector<1x32xf32>
    %191 = arith.addf %189, %190 : vector<1x32xf32>
    %192 = math.tanh %191 : vector<1x32xf32>
    %193 = arith.mulf %187, %192 : vector<1x32xf32>
    %c0_93 = arith.constant 0 : index
    %c0_94 = arith.constant 0 : index
    %194 = vector.load %arg8[%c0_93, %c0_94] : memref<1x32xf32, #tpu.memory_space<vmem>>, vector<1x32xf32>
    tpu.vector_store %arg8[%c0_93, %c0_94], %191 {strides = array<i32>} : memref<1x32xf32, #tpu.memory_space<vmem>>, vector<1x32xf32>,
    %c0_95 = arith.constant 0 : index
    %c0_96 = arith.constant 0 : index
    %195 = vector.load %arg7[%c0_95, %c0_96] : memref<1x32xf32, #tpu.memory_space<vmem>>, vector<1x32xf32>
    tpu.vector_store %arg7[%c0_95, %c0_96], %193 {strides = array<i32>} : memref<1x32xf32, #tpu.memory_space<vmem>>, vector<1x32xf32>,
    %c0_97 = arith.constant 0 : index
    %c4_98 = arith.constant 4 : index
    %c0_99 = arith.constant 0 : index
    %196 = vector.load %arg5[%c0_97, %c4_98, %c0_99] : memref<1x6x32xf32, #tpu.memory_space<vmem>>, vector<1x1x32xf32>
    %197 = vector.shape_cast %196 : vector<1x1x32xf32> to vector<1x32xf32>
    %198 = vector.shape_cast %193 : vector<1x32xf32> to vector<1x1x32xf32>
    tpu.vector_store %arg5[%c0_97, %c4_98, %c0_99], %198 {strides = array<i32>} : memref<1x6x32xf32, #tpu.memory_space<vmem>>, vector<1x1x32xf32>,
    %c5 = arith.constant 5 : index
    %c0_100 = arith.constant 0 : index
    %199 = vector.load %arg6[%c5, %c0_100] : memref<6x128xf32, #tpu.memory_space<vmem>>, vector<1x128xf32>
    %c0_101 = arith.constant 0 : index
    %c0_102 = arith.constant 0 : index
    %200 = vector.load %arg7[%c0_101, %c0_102] : memref<1x32xf32, #tpu.memory_space<vmem>>, vector<1x32xf32>
    %201 = arith.truncf %200 : vector<1x32xf32> to vector<1x32xbf16>
    %cst_103 = arith.constant dense<0.000000e+00> : vector<1x128xf32>
    %202 = tpu.matmul %201, %14, %cst_103 {dimension_numbers = #tpu.dot_dimension_numbers<[1], [0], [0], [1], [0, 0, 1, 1], [], []>} : vector<1x32xbf16>, vector<32x128xbf16>, vector<1x128xf32> -> vector<1x128xf32>
    %203 = arith.addf %199, %202 : vector<1x128xf32>
    %204 = vector.extract_strided_slice %203 {offsets = [0, 0], sizes = [1, 32], strides = [1, 1]} : vector<1x128xf32> to vector<1x32xf32>
    %205 = arith.negf %204 : vector<1x32xf32>
    %206 = math.exp %205 : vector<1x32xf32>
    %cst_104 = arith.constant 1.000000e+00 : f32
    %207 = vector.broadcast %cst_104 : f32 to vector<1x32xf32>
    %208 = arith.addf %207, %206 : vector<1x32xf32>
    %209 = arith.divf %207, %208 : vector<1x32xf32>
    %210 = vector.extract_strided_slice %203 {offsets = [0, 32], sizes = [1, 32], strides = [1, 1]} : vector<1x128xf32> to vector<1x32xf32>
    %211 = arith.negf %210 : vector<1x32xf32>
    %212 = math.exp %211 : vector<1x32xf32>
    %cst_105 = arith.constant 1.000000e+00 : f32
    %213 = vector.broadcast %cst_105 : f32 to vector<1x32xf32>
    %214 = arith.addf %213, %212 : vector<1x32xf32>
    %215 = arith.divf %213, %214 : vector<1x32xf32>
    %216 = vector.extract_strided_slice %203 {offsets = [0, 64], sizes = [1, 32], strides = [1, 1]} : vector<1x128xf32> to vector<1x32xf32>
    %217 = math.tanh %216 : vector<1x32xf32>
    %218 = vector.extract_strided_slice %203 {offsets = [0, 96], sizes = [1, 32], strides = [1, 1]} : vector<1x128xf32> to vector<1x32xf32>
    %219 = arith.negf %218 : vector<1x32xf32>
    %220 = math.exp %219 : vector<1x32xf32>
    %cst_106 = arith.constant 1.000000e+00 : f32
    %221 = vector.broadcast %cst_106 : f32 to vector<1x32xf32>
    %222 = arith.addf %221, %220 : vector<1x32xf32>
    %223 = arith.divf %221, %222 : vector<1x32xf32>
    %c0_107 = arith.constant 0 : index
    %c0_108 = arith.constant 0 : index
    %224 = vector.load %arg8[%c0_107, %c0_108] : memref<1x32xf32, #tpu.memory_space<vmem>>, vector<1x32xf32>
    %225 = arith.mulf %215, %224 : vector<1x32xf32>
    %226 = arith.mulf %209, %217 : vector<1x32xf32>
    %227 = arith.addf %225, %226 : vector<1x32xf32>
    %228 = math.tanh %227 : vector<1x32xf32>
    %229 = arith.mulf %223, %228 : vector<1x32xf32>
    %c0_109 = arith.constant 0 : index
    %c0_110 = arith.constant 0 : index
    %230 = vector.load %arg8[%c0_109, %c0_110] : memref<1x32xf32, #tpu.memory_space<vmem>>, vector<1x32xf32>
    tpu.vector_store %arg8[%c0_109, %c0_110], %227 {strides = array<i32>} : memref<1x32xf32, #tpu.memory_space<vmem>>, vector<1x32xf32>,
    %c0_111 = arith.constant 0 : index
    %c0_112 = arith.constant 0 : index
    %231 = vector.load %arg7[%c0_111, %c0_112] : memref<1x32xf32, #tpu.memory_space<vmem>>, vector<1x32xf32>
    tpu.vector_store %arg7[%c0_111, %c0_112], %229 {strides = array<i32>} : memref<1x32xf32, #tpu.memory_space<vmem>>, vector<1x32xf32>,
    %c0_113 = arith.constant 0 : index
    %c5_114 = arith.constant 5 : index
    %c0_115 = arith.constant 0 : index
    %232 = vector.load %arg5[%c0_113, %c5_114, %c0_115] : memref<1x6x32xf32, #tpu.memory_space<vmem>>, vector<1x1x32xf32>
    %233 = vector.shape_cast %232 : vector<1x1x32xf32> to vector<1x32xf32>
    %234 = vector.shape_cast %229 : vector<1x32xf32> to vector<1x1x32xf32>
    tpu.vector_store %arg5[%c0_113, %c5_114, %c0_115], %234 {strides = array<i32>} : memref<1x6x32xf32, #tpu.memory_space<vmem>>, vector<1x1x32xf32>,
    return
  }
  func.func @transform_0(%arg0: i32) -> (i32, i32, i32) {
    %c0_i32 = arith.constant 0 : i32
    %c0_i32_0 = arith.constant 0 : i32
    %c0_i32_1 = arith.constant 0 : i32
    return %arg0, %c0_i32, %c0_i32_0 : i32, i32, i32
  }
  func.func @transform_1(%arg0: i32) -> (i32, i32, i32) {
    %c0_i32 = arith.constant 0 : i32
    %c0_i32_0 = arith.constant 0 : i32
    %c0_i32_1 = arith.constant 0 : i32
    return %arg0, %c0_i32, %c0_i32_0 : i32, i32, i32
  }
  func.func @transform_2(%arg0: i32) -> (i32, i32, i32) {
    %c0_i32 = arith.constant 0 : i32
    %c0_i32_0 = arith.constant 0 : i32
    %c0_i32_1 = arith.constant 0 : i32
    return %arg0, %c0_i32, %c0_i32_0 : i32, i32, i32
  }
  func.func @transform_3(%arg0: i32) -> (i32, i32, i32) {
    %c0_i32 = arith.constant 0 : i32
    %c0_i32_0 = arith.constant 0 : i32
    %c0_i32_1 = arith.constant 0 : i32
    return %arg0, %c0_i32, %c0_i32_0 : i32, i32, i32
  }
  func.func @transform_4(%arg0: i32) -> (i32, i32, i32) {
    %c0_i32 = arith.constant 0 : i32
    %c0_i32_0 = arith.constant 0 : i32
    %c0_i32_1 = arith.constant 0 : i32
    return %arg0, %c0_i32, %c0_i32_0 : i32, i32, i32
  }
}

module attributes {stable_mosaic.version = 11 : i64} {
  func.func @_linear_kernel(%arg0: i32, %arg1: memref<6x64xf32, #tpu.memory_space<vmem>>, %arg2: memref<64x1xf32, #tpu.memory_space<vmem>>, %arg3: memref<1x1xf32, #tpu.memory_space<vmem>>, %arg4: memref<6x1xf32, #tpu.memory_space<vmem>>) attributes {dimension_semantics = [#tpu.dimension_semantics<arbitrary>], iteration_bounds = array<i64: 1>, scalar_prefetch = 0 : i64, scratch_operands = 0 : i64, tpu.core_type = #tpu.core_type<tc>, window_params = [{pipeline_mode = #tpu.pipeline_mode<synchronous>, transform_indices = @transform_0, window_bounds = array<i64: 6, 64>}, {pipeline_mode = #tpu.pipeline_mode<synchronous>, transform_indices = @transform_1, window_bounds = array<i64: 64, 1>}, {pipeline_mode = #tpu.pipeline_mode<synchronous>, transform_indices = @transform_2, window_bounds = array<i64: 1, 1>}, {pipeline_mode = #tpu.pipeline_mode<synchronous>, transform_indices = @transform_3, window_bounds = array<i64: 6, 1>}]} {
    %c0 = arith.constant 0 : index
    %c0_0 = arith.constant 0 : index
    %0 = vector.load %arg1[%c0, %c0_0] : memref<6x64xf32, #tpu.memory_space<vmem>>, vector<6x64xf32>
    %c0_1 = arith.constant 0 : index
    %c0_2 = arith.constant 0 : index
    %1 = vector.load %arg2[%c0_1, %c0_2] : memref<64x1xf32, #tpu.memory_space<vmem>>, vector<64x1xf32>
    %cst = arith.constant dense<0.000000e+00> : vector<6x1xf32>
    %2 = tpu.matmul %0, %1, %cst {dimension_numbers = #tpu.dot_dimension_numbers<[1], [0], [0], [1], [0, 0, 1, 1], [], []>} : vector<6x64xf32>, vector<64x1xf32>, vector<6x1xf32> -> vector<6x1xf32>
    %c0_3 = arith.constant 0 : index
    %c0_4 = arith.constant 0 : index
    %3 = vector.load %arg3[%c0_3, %c0_4] : memref<1x1xf32, #tpu.memory_space<vmem>>, vector<1x1xf32>
    %4 = vector.broadcast %3 : vector<1x1xf32> to vector<6x1xf32>
    %5 = arith.addf %2, %4 : vector<6x1xf32>
    %6 = arith.negf %5 : vector<6x1xf32>
    %7 = math.exp %6 : vector<6x1xf32>
    %cst_5 = arith.constant 1.000000e+00 : f32
    %8 = vector.broadcast %cst_5 : f32 to vector<6x1xf32>
    %9 = arith.addf %8, %7 : vector<6x1xf32>
    %10 = arith.divf %8, %9 : vector<6x1xf32>
    %c0_6 = arith.constant 0 : index
    %c0_7 = arith.constant 0 : index
    %11 = vector.load %arg4[%c0_6, %c0_7] : memref<6x1xf32, #tpu.memory_space<vmem>>, vector<6x1xf32>
    tpu.vector_store %arg4[%c0_6, %c0_7], %10 {strides = array<i32>} : memref<6x1xf32, #tpu.memory_space<vmem>>, vector<6x1xf32>,
    return
  }
  func.func @transform_0(%arg0: i32) -> (i32, i32) {
    %c0_i32 = arith.constant 0 : i32
    %c0_i32_0 = arith.constant 0 : i32
    %c0_i32_1 = arith.constant 0 : i32
    return %c0_i32, %c0_i32_0 : i32, i32
  }
  func.func @transform_1(%arg0: i32) -> (i32, i32) {
    %c0_i32 = arith.constant 0 : i32
    %c0_i32_0 = arith.constant 0 : i32
    %c0_i32_1 = arith.constant 0 : i32
    return %c0_i32, %c0_i32_0 : i32, i32
  }
  func.func @transform_2(%arg0: i32) -> (i32, i32) {
    %c0_i32 = arith.constant 0 : i32
    %c0_i32_0 = arith.constant 0 : i32
    %c0_i32_1 = arith.constant 0 : i32
    return %c0_i32, %c0_i32_0 : i32, i32
  }
  func.func @transform_3(%arg0: i32) -> (i32, i32) {
    %c0_i32 = arith.constant 0 : i32
    %c0_i32_0 = arith.constant 0 : i32
    %c0_i32_1 = arith.constant 0 : i32
    return %c0_i32, %c0_i32_0 : i32, i32
  }
}

</mosaic_0001>

<llo_original>
// kernel: summarizer_forward.5
$region0: #{summarizer_forward.5}
  #allocation0 [shape = 'u32[]', space=smem, size = 0x4, offset = 0x4, fixed_abs, tag = 'smem constant byte address 0x4 - core index']
  #allocation1 [shape = 'u32[144,128]{1,0:T(1,128)}', space=vmem, size = 0x12000, scoped, tag = 'internal scratch']
  %s0 = inlined_call_operand.vmem [shape: f32[48,32], index: 0, kind: input, shape index: {}]
  %s1 = inlined_call_operand.vmem [shape: f32[48,32], index: 1, kind: input, shape index: {}]
  %s2 = inlined_call_operand.vmem [shape: f32[1,32], index: 2, kind: input, shape index: {}]
  %s3 = inlined_call_operand.vmem [shape: f32[1,32], index: 3, kind: input, shape index: {}]
  %s4 = inlined_call_operand.vmem [shape: f32[48,32], index: 4, kind: output, shape index: {}]
  %s5 = sld [smem:[#allocation0]]
  $region26: #{summarizer_forward.5} parent=0
    _
  %s7 = ssub.s32 1, %s5
  %s8 = scalar_select 0, %s7, %s5
  // Predicated region
  $region2: #{summarizer_forward.5} parent=0 // pred_check
    _
  $region3: #{summarizer_forward.5} parent=0 // pred_check_branch
    %10 = sbr.rel (0) target = $region5
  $region4: #{summarizer_forward.5} parent=0 // pred_region
    _
  $region5: #{summarizer_forward.5} parent=0 // pred_fallthru
    _
  // Predicated region
  $region6: #{summarizer_forward.5} parent=0 // pred_check
    _
  $region7: #{summarizer_forward.5} parent=0 // pred_check_branch
    %12 = sbr.rel (0) target = $region9
  $region8: #{summarizer_forward.5} parent=0 // pred_region
    _
  $region9: #{summarizer_forward.5} parent=0 // pred_fallthru
    _
  // Predicated region
  $region10: #{summarizer_forward.5} parent=0 // pred_check
    _
  $region11: #{summarizer_forward.5} parent=0 // pred_check_branch
    %14 = sbr.rel (0) target = $region13
  $region12: #{summarizer_forward.5} parent=0 // pred_region
    _
  $region13: #{summarizer_forward.5} parent=0 // pred_fallthru
    _
  // Predicated region
  $region14: #{summarizer_forward.5} parent=0 // pred_check
    _
  $region15: #{summarizer_forward.5} parent=0 // pred_check_branch
    %16 = sbr.rel (0) target = $region17
  $region16: #{summarizer_forward.5} parent=0 // pred_region
    _
  $region17: #{summarizer_forward.5} parent=0 // pred_fallthru
    _
  %v17 = vld [vmem:[%s0] sm:$0xff]
  %v18 = vld [vmem:[%s0 + $0x8] sm:$0xff]
  %v19 = vld [vmem:[%s0 + $0x10] sm:$0xff]
  %v20 = vld [vmem:[%s0 + $0x18] sm:$0xff]
  %v21 = vld [vmem:[%s0 + $0x20] sm:$0xff]
  %v22 = vld [vmem:[%s0 + $0x28] sm:$0xff]
  %v23 = vld [vmem:[%s1] sm:$0xff]
  %v24 = vld [vmem:[%s1 + $0x8] sm:$0xff]
  %v25 = vld [vmem:[%s1 + $0x10] sm:$0xff]
  %v26 = vld [vmem:[%s1 + $0x18] sm:$0xff]
  %v27 = vld [vmem:[%s1 + $0x20] sm:$0xff]
  %v28 = vld [vmem:[%s1 + $0x28] sm:$0xff]
  %v29 = vadd.f32 %v17, %v23
  %v30 = vadd.f32 %v18, %v24
  %v31 = vadd.f32 %v19, %v25
  %v32 = vadd.f32 %v20, %v26
  %v33 = vadd.f32 %v21, %v27
  %v34 = vadd.f32 %v22, %v28
  %vm35 = vcmask 261120
  %v36 = vsel %vm35, %v29, 0.0
  %37 = vadd.xlane.f32.xlu0 %v36
  %v38 = vpop.xlane.xlu0 %37
  %v39 = vsel %vm35, %v30, 0.0
  %40 = vadd.xlane.f32.xlu0 %v39
  %v41 = vpop.xlane.xlu0 %40
  %v42 = vsel %vm35, %v31, 0.0
  %43 = vadd.xlane.f32.xlu0 %v42
  %v44 = vpop.xlane.xlu0 %43
  %v45 = vsel %vm35, %v32, 0.0
  %46 = vadd.xlane.f32.xlu0 %v45
  %v47 = vpop.xlane.xlu0 %46
  %v48 = vsel %vm35, %v33, 0.0
  %49 = vadd.xlane.f32.xlu0 %v48
  %v50 = vpop.xlane.xlu0 %49
  %v51 = vsel %vm35, %v34, 0.0
  %52 = vadd.xlane.f32.xlu0 %v51
  %v53 = vpop.xlane.xlu0 %52
  %v54 = vrcp.pop 32.0
  %v55 = vmul.f32 %v38, %v54
  %v56 = vmul.f32 %v41, %v54
  %v57 = vmul.f32 %v44, %v54
  %v58 = vmul.f32 %v47, %v54
  %v59 = vmul.f32 %v50, %v54
  %v60 = vmul.f32 %v53, %v54
  %v61 = vsub.f32 %v29, %v55
  %v62 = vsub.f32 %v30, %v56
  %v63 = vsub.f32 %v31, %v57
  %v64 = vsub.f32 %v32, %v58
  %v65 = vsub.f32 %v33, %v59
  %v66 = vsub.f32 %v34, %v60
  %v67 = vmul.f32 %v61, %v61
  %v68 = vmul.f32 %v62, %v62
  %v69 = vmul.f32 %v63, %v63
  %v70 = vmul.f32 %v64, %v64
  %v71 = vmul.f32 %v65, %v65
  %v72 = vmul.f32 %v66, %v66
  %v73 = vsel %vm35, %v67, 0.0
  %74 = vadd.xlane.f32.xlu0 %v73
  %v75 = vpop.xlane.xlu0 %74
  %v76 = vsel %vm35, %v68, 0.0
  %77 = vadd.xlane.f32.xlu0 %v76
  %v78 = vpop.xlane.xlu0 %77
  %v79 = vsel %vm35, %v69, 0.0
  %80 = vadd.xlane.f32.xlu0 %v79
  %v81 = vpop.xlane.xlu0 %80
  %v82 = vsel %vm35, %v70, 0.0
  %83 = vadd.xlane.f32.xlu0 %v82
  %v84 = vpop.xlane.xlu0 %83
  %v85 = vsel %vm35, %v71, 0.0
  %86 = vadd.xlane.f32.xlu0 %v85
  %v87 = vpop.xlane.xlu0 %86
  %v88 = vsel %vm35, %v72, 0.0
  %89 = vadd.xlane.f32.xlu0 %v88
  %v90 = vpop.xlane.xlu0 %89
  %v91 = vmul.f32 %v75, %v54
  %v92 = vmul.f32 %v78, %v54
  %v93 = vmul.f32 %v81, %v54
  %v94 = vmul.f32 %v84, %v54
  %v95 = vmul.f32 %v87, %v54
  %v96 = vmul.f32 %v90, %v54
  %v97 = vadd.f32 %v91, 1e-12
  %v98 = vadd.f32 %v92, 1e-12
  %v99 = vadd.f32 %v93, 1e-12
  %v100 = vadd.f32 %v94, 1e-12
  %v101 = vadd.f32 %v95, 1e-12
  %v102 = vadd.f32 %v96, 1e-12
  %v103 = vrsqrt.pop %v97
  %v104 = vrsqrt.pop %v98
  %v105 = vrsqrt.pop %v99
  %v106 = vrsqrt.pop %v100
  %v107 = vrsqrt.pop %v101
  %v108 = vrsqrt.pop %v102
  %v109 = vmul.f32 %v61, %v103
  %v110 = vmul.f32 %v62, %v104
  %v111 = vmul.f32 %v63, %v105
  %v112 = vmul.f32 %v64, %v106
  %v113 = vmul.f32 %v65, %v107
  %v114 = vmul.f32 %v66, %v108
  %v115 = vld [vmem:[%s2] sm:$0x1]
  %v117 = vlaneseq
  %v118 = vshrl.u32 %v117, 7
  %v119 = vsub.s32 0, %v118
  %v120 = vrot.slane %v115, %v119
  %v122 = vmul.f32 %v109, %v120
  %v123 = vmul.f32 %v110, %v120
  %v124 = vmul.f32 %v111, %v120
  %v125 = vmul.f32 %v112, %v120
  %v126 = vmul.f32 %v113, %v120
  %v127 = vmul.f32 %v114, %v120
  %v128 = vld [vmem:[%s3] sm:$0x1]
  %v130 = vlaneseq
  %v131 = vshrl.u32 %v130, 7
  %v132 = vsub.s32 0, %v131
  %v133 = vrot.slane %v128, %v132
  %v135 = vadd.f32 %v122, %v133
  %v136 = vadd.f32 %v123, %v133
  %v137 = vadd.f32 %v124, %v133
  %v138 = vadd.f32 %v125, %v133
  %v139 = vadd.f32 %v126, %v133
  %v140 = vadd.f32 %v127, %v133
  %141 = vst.msk [vmem:[%s4] sm:$0xff] %vm35, %v135
  %142 = vst.msk [vmem:[%s4 + $0x8] sm:$0xff] %vm35, %v136
  %143 = vst.msk [vmem:[%s4 + $0x10] sm:$0xff] %vm35, %v137
  %144 = vst.msk [vmem:[%s4 + $0x18] sm:$0xff] %vm35, %v138
  %145 = vst.msk [vmem:[%s4 + $0x20] sm:$0xff] %vm35, %v139
  %146 = vst.msk [vmem:[%s4 + $0x28] sm:$0xff] %vm35, %v140
  // Predicated region
  $region18: #{summarizer_forward.5} parent=0 // pred_check
    _
  $region19: #{summarizer_forward.5} parent=0 // pred_check_branch
    %148 = sbr.rel (0) target = $region21
  $region20: #{summarizer_forward.5} parent=0 // pred_region
    _
  $region21: #{summarizer_forward.5} parent=0 // pred_fallthru
    _
  // Predicated region
  $region22: #{summarizer_forward.5} parent=0 // pred_check
    _
  $region23: #{summarizer_forward.5} parent=0 // pred_check_branch
    %150 = sbr.rel (0) target = $region25
  $region24: #{summarizer_forward.5} parent=0 // pred_region
    _
  $region25: #{summarizer_forward.5} parent=0 // pred_fallthru
    _

// kernel: summarizer_forward.9
$region0: #{summarizer_forward.9}
  #allocation0 [shape = 'u32[]', space=smem, size = 0x4, offset = 0x4, fixed_abs, tag = 'smem constant byte address 0x4 - core index']
  #allocation1 [shape = 'u32[144,128]{1,0:T(1,128)}', space=vmem, size = 0x12000, scoped, tag = 'internal scratch']
  #allocation2 [shape = 'f32[1,1]{1,0:T(1,128)S(1)}', space=vmem, size = 0x200, scoped, tag = 'scoped memory for summarizer_forward.9']
  %s0 = inlined_call_operand.vmem [shape: f32[6,64], index: 0, kind: input, shape index: {}]
  %s1 = inlined_call_operand.vmem [shape: f32[64,1], index: 1, kind: input, shape index: {}]
  %s2 = inlined_call_operand.<no memory space> [shape: f32[1,1], index: 2, kind: input, shape index: {}]
  %s3 = inlined_call_operand.vmem [shape: f32[6,1], index: 3, kind: output, shape index: {}]
  %s4 = sld [smem:[#allocation0]]
  $region22: #{summarizer_forward.9} parent=0
    _
  %s6 = ssub.s32 1, %s4
  %s7 = scalar_select 0, %s6, %s4
  %v8 = vstv %s2
  %9 = vst [vmem:[#allocation2] sm:$0x1] %v8
  // Predicated region
  $region2: #{summarizer_forward.9} parent=0 // pred_check
    _
  $region3: #{summarizer_forward.9} parent=0 // pred_check_branch
    %11 = sbr.rel (0) target = $region5
  $region4: #{summarizer_forward.9} parent=0 // pred_region
    _
  $region5: #{summarizer_forward.9} parent=0 // pred_fallthru
    _
  // Predicated region
  $region6: #{summarizer_forward.9} parent=0 // pred_check
    _
  $region7: #{summarizer_forward.9} parent=0 // pred_check_branch
    %13 = sbr.rel (0) target = $region9
  $region8: #{summarizer_forward.9} parent=0 // pred_region
    _
  $region9: #{summarizer_forward.9} parent=0 // pred_fallthru
    _
  // Predicated region
  $region10: #{summarizer_forward.9} parent=0 // pred_check
    _
  $region11: #{summarizer_forward.9} parent=0 // pred_check_branch
    %15 = sbr.rel (0) target = $region13
  $region12: #{summarizer_forward.9} parent=0 // pred_region
    _
  $region13: #{summarizer_forward.9} parent=0 // pred_fallthru
    _
  %v16 = vld [vmem:[%s0] sm:$0x3f]
  %v17 = vld [vmem:[%s1] sm:$0xff]
  %v18 = vld [vmem:[%s1 + $0x8] sm:$0xff]
  %v19 = vld [vmem:[%s1 + $0x10] sm:$0xff]
  %v20 = vld [vmem:[%s1 + $0x18] sm:$0xff]
  %v21 = vld [vmem:[%s1 + $0x20] sm:$0xff]
  %v22 = vld [vmem:[%s1 + $0x28] sm:$0xff]
  %v23 = vld [vmem:[%s1 + $0x30] sm:$0xff]
  %v24 = vld [vmem:[%s1 + $0x38] sm:$0xff]
  %v25 = vld [vmem:[#allocation2] sm:$0x1]
  %v27 = vlaneseq
  %v28 = vshrl.u32 %v27, 7
  %v29 = vsub.s32 0, %v28
  %v30 = vrot.slane %v25, %v29
  %vm32 = vcmask 523264
  %v34 = vsel %vm32, %v16, 0
  %36 = vmatprep.subr.mxu0 0.0
  %37 = vmatpush1.msra.mxu0 0.0
  %38 = vmatprep.subr.mxu0 0.0
  %39 = vmatpush1.msra.mxu0 0.0
  %40 = vmatprep.subr.mxu0 0.0
  %41 = vmatpush1.msra.mxu0 0.0
  %42 = vmatprep.subr.mxu0 0.0
  %43 = vmatpush1.msra.mxu0 0.0
  %44 = vmatprep.subr.mxu0 0.0
  %45 = vmatpush1.msra.mxu0 0.0
  %46 = vmatprep.subr.mxu0 0.0
  %47 = vmatpush1.msra.mxu0 0.0
  %48 = vmatprep.subr.mxu0 0.0
  %49 = vmatpush1.msra.mxu0 0.0
  %50 = vmatprep.subr.mxu0 0.0
  %51 = vmatpush1.msra.mxu0 0.0
  %52 = vmatprep.subr.mxu0 0.0
  %53 = vmatpush1.msra.mxu0 %v24
  %54 = vmatprep.subr.mxu0 0.0
  %55 = vmatpush1.msra.mxu0 %v23
  %56 = vmatprep.subr.mxu0 0.0
  %57 = vmatpush1.msra.mxu0 %v22
  %58 = vmatprep.subr.mxu0 0.0
  %59 = vmatpush1.msra.mxu0 %v21
  %60 = vmatprep.subr.mxu0 0.0
  %61 = vmatpush1.msra.mxu0 %v20
  %62 = vmatprep.subr.mxu0 0.0
  %63 = vmatpush1.msra.mxu0 %v19
  %64 = vmatprep.subr.mxu0 0.0
  %65 = vmatpush1.msra.mxu0 %v18
  %66 = vmatprep.subr.mxu0 0.0
  %67 = vmatpush1.msra.mxu0 %v17
  %68 = vmatprep.subr.mxu0 0.0
  %69 = vmatpush2.msra.mxu0 0.0
  %70 = vmatprep.subr.mxu0 0.0
  %71 = vmatpush2.msra.mxu0 0.0
  %72 = vmatprep.subr.mxu0 0.0
  %73 = vmatpush2.msra.mxu0 0.0
  %74 = vmatprep.subr.mxu0 0.0
  %75 = vmatpush2.msra.mxu0 0.0
  %76 = vmatprep.subr.mxu0 0.0
  %77 = vmatpush2.msra.mxu0 0.0
  %78 = vmatprep.subr.mxu0 0.0
  %79 = vmatpush2.msra.mxu0 0.0
  %80 = vmatprep.subr.mxu0 0.0
  %81 = vmatpush2.msra.mxu0 0.0
  %82 = vmatprep.subr.mxu0 0.0
  %83 = vmatpush2.msra.mxu0 0.0
  %84 = vmatprep.subr.mxu0 0.0
  %85 = vmatpush2.msra.mxu0 0.0
  %86 = vmatprep.subr.mxu0 0.0
  %87 = vmatpush2.msra.mxu0 0.0
  %88 = vmatprep.subr.mxu0 0.0
  %89 = vmatpush2.msra.mxu0 0.0
  %90 = vmatprep.subr.mxu0 0.0
  %91 = vmatpush2.msra.mxu0 0.0
  %92 = vmatprep.subr.mxu0 0.0
  %93 = vmatpush2.msra.mxu0 0.0
  %94 = vmatprep.subr.mxu0 0.0
  %95 = vmatpush2.msra.mxu0 0.0
  %96 = vmatprep.subr.mxu0 0.0
  %97 = vmatpush2.msra.mxu0 0.0
  %98 = vmatprep.subr.mxu0 0.0
  %99 = vmatpush2.msra.mxu0 0.0
  %100 = vmatprep.mubr.f32.mxu0 0.0
  %101 = vmatmul.mubr.f32.gmra.mxu0 %v34
  %v102 = vpop.f32.mrf.mxu0
  %v103 = vadd.f32 %v30, %v102
  %v104 = vpop.f32.mrf.mxu0
  %105 = vdwg.mxu0
  %v106 = vxor.u32 %v103, 2147483648
  %v107 = vmul.f32 %v106, 1.442695
  %v108 = vpow.pop %v107
  %v109 = vadd.f32 %v108, 1.0
  %v110 = vrcp.pop %v109
  %v111 = vmul.f32 1.0, %v110
  %vm112 = vcmask 5120
  %113 = vst.msk [vmem:[%s3] sm:$0x3f] %vm112, %v111
  // Predicated region
  $region14: #{summarizer_forward.9} parent=0 // pred_check
    _
  $region15: #{summarizer_forward.9} parent=0 // pred_check_branch
    %115 = sbr.rel (0) target = $region17
  $region16: #{summarizer_forward.9} parent=0 // pred_region
    _
  $region17: #{summarizer_forward.9} parent=0 // pred_fallthru
    _
  // Predicated region
  $region18: #{summarizer_forward.9} parent=0 // pred_check
    _
  $region19: #{summarizer_forward.9} parent=0 // pred_check_branch
    %117 = sbr.rel (0) target = $region21
  $region20: #{summarizer_forward.9} parent=0 // pred_region
    _
  $region21: #{summarizer_forward.9} parent=0 // pred_fallthru
    _

// kernel: summarizer_forward.8
$region0: #{summarizer_forward.8}
  #allocation0 [shape = 'u32[]', space=smem, size = 0x4, offset = 0x4, fixed_abs, tag = 'smem constant byte address 0x4 - core index']
  #allocation1 [shape = 'u32[144,128]{1,0:T(1,128)}', space=vmem, size = 0x12000, scoped, tag = 'internal scratch']
  #allocation2 [shape = 'f32[6,128]{1,0:T(8,128)}', space=vmem, size = 0x1000, scoped, tag = 'scratch operand']
  #allocation3 [shape = 'f32[1,32]{1,0:T(1,128)}', space=vmem, size = 0x200, scoped, tag = 'scratch operand']
  #allocation4 [shape = 'f32[1,32]{1,0:T(1,128)}', space=vmem, size = 0x200, scoped, tag = 'scratch operand']
  %s0 = inlined_call_operand.vmem [shape: f32[2,6,32], index: 0, kind: input, shape index: {}]
  %s1 = inlined_call_operand.vmem [shape: f32[2,32,128], index: 1, kind: input, shape index: {}]
  %s2 = inlined_call_operand.vmem [shape: f32[2,32,128], index: 2, kind: input, shape index: {}]
  %s3 = inlined_call_operand.vmem [shape: f32[2,1,128], index: 3, kind: input, shape index: {}]
  %s4 = inlined_call_operand.vmem [shape: f32[2,6,32], index: 4, kind: output, shape index: {}]
  %s5 = sld [smem:[#allocation0]]
  $region49: #{summarizer_forward.8} parent=0
    _
  %s7 = ssub.s32 1, %s5
  %s8 = scalar_select 0, %s7, %s5
  loop: start=0, step=1, limit=4
  $region2: #{summarizer_forward.8} parent=0 // loop_pre_header
    _
  $region3: #{summarizer_forward.8} parent=0 // loop_header
    %s10 = sphi 0, %s14
    %p11 = scmp.ge.s32.totalorder %s10, 4
    %s20 = sphi 0, %s22
    %s23 = sphi 0, %s20
    %s24 = sphi 0, %s23
    %s40 = sphi 0, %s24
    %s46 = sphi 0, %s48
    %s49 = sphi 0, %s46
    %s50 = sphi 0, %s49
    %s66 = sphi 0, %s50
    %s72 = sphi 0, %s74
    %s75 = sphi 0, %s72
    %s76 = sphi 0, %s75
    %s92 = sphi 0, %s76
    %s98 = sphi 0, %s100
    %s101 = sphi 0, %s98
    %s102 = sphi 0, %s101
    %s118 = sphi 0, %s102
    %s124 = sphi 0, %s126
    %s127 = sphi 0, %s124
    %s128 = sphi 0, %s127
    %s144 = sphi 0, %s128
  $region4: #{summarizer_forward.8} parent=0 // loop_header_branch
    %13 = sbr.rel (%p11) target = $region8
  $region5: #{summarizer_forward.8} parent=0 // loop_body
    %s15 = ssub.s32 %s10, 1
    %s16 = ssub.s32 %s10, 2
    %s17 = sadd.s32 %s10, 1
    %s18 = ssub.s32 %s10, %s17
    %p19 = scmp.eq.s32.totalorder %s18, 0
    %s21 = sadd.s32 %s20, 1
    %s22 = scalar_select %p19, %s20, %s21
    %p25 = pneg %p19
    %p26 = scmp.eq.s32.totalorder %s10, 1
    %p27 = por %p25, %p26
    %p28 = scmp.ne.s32.totalorder %s20, %s23
    %p29 = scmp.eq.s32.totalorder %s10, 0
    %p30 = por %p28, %p29
    %p31 = scmp.ne.s32.totalorder %s20, %s23
    %p32 = scmp.eq.s32.totalorder %s15, 1
    %p33 = por %p31, %p32
    %p34 = scmp.ne.s32.totalorder %s23, %s24
    %p35 = scmp.eq.s32.totalorder %s15, 0
    %p36 = por %p34, %p35
    %p37 = scmp.ne.s32.totalorder %s23, %s24
    %p38 = scmp.eq.s32.totalorder %s16, 1
    %p39 = por %p37, %p38
    %p41 = scmp.ne.s32.totalorder %s24, %s40
    %p42 = scmp.eq.s32.totalorder %s16, 0
    %p43 = por %p41, %p42
    %s44 = ssub.s32 %s10, %s17
    %p45 = scmp.eq.s32.totalorder %s44, 0
    %s47 = sadd.s32 %s46, 1
    %s48 = scalar_select %p45, %s46, %s47
    %p51 = pneg %p45
    %p52 = scmp.eq.s32.totalorder %s10, 1
    %p53 = por %p51, %p52
    %p54 = scmp.ne.s32.totalorder %s46, %s49
    %p55 = scmp.eq.s32.totalorder %s10, 0
    %p56 = por %p54, %p55
    %p57 = scmp.ne.s32.totalorder %s46, %s49
    %p58 = scmp.eq.s32.totalorder %s15, 1
    %p59 = por %p57, %p58
    %p60 = scmp.ne.s32.totalorder %s49, %s50
    %p61 = scmp.eq.s32.totalorder %s15, 0
    %p62 = por %p60, %p61
    %p63 = scmp.ne.s32.totalorder %s49, %s50
    %p64 = scmp.eq.s32.totalorder %s16, 1
    %p65 = por %p63, %p64
    %p67 = scmp.ne.s32.totalorder %s50, %s66
    %p68 = scmp.eq.s32.totalorder %s16, 0
    %p69 = por %p67, %p68
    %s70 = ssub.s32 %s10, %s17
    %p71 = scmp.eq.s32.totalorder %s70, 0
    %s73 = sadd.s32 %s72, 1
    %s74 = scalar_select %p71, %s72, %s73
    %p77 = pneg %p71
    %p78 = scmp.eq.s32.totalorder %s10, 1
    %p79 = por %p77, %p78
    %p80 = scmp.ne.s32.totalorder %s72, %s75
    %p81 = scmp.eq.s32.totalorder %s10, 0
    %p82 = por %p80, %p81
    %p83 = scmp.ne.s32.totalorder %s72, %s75
    %p84 = scmp.eq.s32.totalorder %s15, 1
    %p85 = por %p83, %p84
    %p86 = scmp.ne.s32.totalorder %s75, %s76
    %p87 = scmp.eq.s32.totalorder %s15, 0
    %p88 = por %p86, %p87
    %p89 = scmp.ne.s32.totalorder %s75, %s76
    %p90 = scmp.eq.s32.totalorder %s16, 1
    %p91 = por %p89, %p90
    %p93 = scmp.ne.s32.totalorder %s76, %s92
    %p94 = scmp.eq.s32.totalorder %s16, 0
    %p95 = por %p93, %p94
    %s96 = ssub.s32 %s10, %s17
    %p97 = scmp.eq.s32.totalorder %s96, 0
    %s99 = sadd.s32 %s98, 1
    %s100 = scalar_select %p97, %s98, %s99
    %p103 = pneg %p97
    %p104 = scmp.eq.s32.totalorder %s10, 1
    %p105 = por %p103, %p104
    %p106 = scmp.ne.s32.totalorder %s98, %s101
    %p107 = scmp.eq.s32.totalorder %s10, 0
    %p108 = por %p106, %p107
    %p109 = scmp.ne.s32.totalorder %s98, %s101
    %p110 = scmp.eq.s32.totalorder %s15, 1
    %p111 = por %p109, %p110
    %p112 = scmp.ne.s32.totalorder %s101, %s102
    %p113 = scmp.eq.s32.totalorder %s15, 0
    %p114 = por %p112, %p113
    %p115 = scmp.ne.s32.totalorder %s101, %s102
    %p116 = scmp.eq.s32.totalorder %s16, 1
    %p117 = por %p115, %p116
    %p119 = scmp.ne.s32.totalorder %s102, %s118
    %p120 = scmp.eq.s32.totalorder %s16, 0
    %p121 = por %p119, %p120
    %s122 = ssub.s32 %s10, %s17
    %p123 = scmp.eq.s32.totalorder %s122, 0
    %s125 = sadd.s32 %s124, 1
    %s126 = scalar_select %p123, %s124, %s125
    %p129 = pneg %p123
    %p130 = scmp.eq.s32.totalorder %s10, 1
    %p131 = por %p129, %p130
    %p132 = scmp.ne.s32.totalorder %s124, %s127
    %p133 = scmp.eq.s32.totalorder %s10, 0
    %p134 = por %p132, %p133
    %p135 = scmp.ne.s32.totalorder %s124, %s127
    %p136 = scmp.eq.s32.totalorder %s15, 1
    %p137 = por %p135, %p136
    %p138 = scmp.ne.s32.totalorder %s127, %s128
    %p139 = scmp.eq.s32.totalorder %s15, 0
    %p140 = por %p138, %p139
    %p141 = scmp.ne.s32.totalorder %s127, %s128
    %p142 = scmp.eq.s32.totalorder %s16, 1
    %p143 = por %p141, %p142
    %p145 = scmp.ne.s32.totalorder %s128, %s144
    %p146 = scmp.eq.s32.totalorder %s16, 0
    %p147 = por %p145, %p146
    %p148 = scmp.le.s32.totalorder 1, %s10
    %p149 = scmp.lt.s32.totalorder %s10, 3
    %p150 = pnand %p148, %p149
    %p151 = pneg %p150
    // Predicated region
    $region9: #{summarizer_forward.8} parent=5 // pred_check
      _
    $region10: #{summarizer_forward.8} parent=5 // pred_check_branch
      %153 = sbr.rel (%p150) target = $region12
    $region11: #{summarizer_forward.8} parent=5 // pred_region
      %s154 = ssub.s32 %s10, 1
    $region12: #{summarizer_forward.8} parent=5 // pred_fallthru
      _
    %p155 = scmp.lt.s32.totalorder %s10, 2
    // Predicated region
    $region13: #{summarizer_forward.8} parent=5 // pred_check
      %p156 = pneg %p155
    $region14: #{summarizer_forward.8} parent=5 // pred_check_branch
      %158 = sbr.rel (%p156) target = $region16
    $region15: #{summarizer_forward.8} parent=5 // pred_region
      // Predicated region
      $region17: #{summarizer_forward.8} parent=15 // pred_check
        %p159 = pneg %p30
      $region18: #{summarizer_forward.8} parent=15 // pred_check_branch
        %161 = sbr.rel (%p159) target = $region20
      $region19: #{summarizer_forward.8} parent=15 // pred_region
        %p162 = scmp.lt.s32.totalorder %s10, 1
        %s163 = scalar_select %p162, %s10, 1
        %s164 = smul.addr %s163, 8
        %s165 = scalar_lea.vmem %s0, %s164
      $region20: #{summarizer_forward.8} parent=15 // pred_fallthru
        _
      // Predicated region
      $region21: #{summarizer_forward.8} parent=15 // pred_check
        %p166 = pneg %p56
      $region22: #{summarizer_forward.8} parent=15 // pred_check_branch
        %168 = sbr.rel (%p166) target = $region24
      $region23: #{summarizer_forward.8} parent=15 // pred_region
        %p169 = scmp.lt.s32.totalorder %s10, 1
        %s170 = scalar_select %p169, %s10, 1
        %s171 = smul.addr %s170, 4
        %s172 = smul.addr %s171, 8
        %s173 = scalar_lea.vmem %s1, %s172
      $region24: #{summarizer_forward.8} parent=15 // pred_fallthru
        _
      // Predicated region
      $region25: #{summarizer_forward.8} parent=15 // pred_check
        %p174 = pneg %p82
      $region26: #{summarizer_forward.8} parent=15 // pred_check_branch
        %176 = sbr.rel (%p174) target = $region28
      $region27: #{summarizer_forward.8} parent=15 // pred_region
        %p177 = scmp.lt.s32.totalorder %s10, 1
        %s178 = scalar_select %p177, %s10, 1
        %s179 = smul.addr %s178, 4
        %s180 = smul.addr %s179, 8
        %s181 = scalar_lea.vmem %s2, %s180
      $region28: #{summarizer_forward.8} parent=15 // pred_fallthru
        _
      // Predicated region
      $region29: #{summarizer_forward.8} parent=15 // pred_check
        %p182 = pneg %p108
      $region30: #{summarizer_forward.8} parent=15 // pred_check_branch
        %184 = sbr.rel (%p182) target = $region32
      $region31: #{summarizer_forward.8} parent=15 // pred_region
        %p185 = scmp.lt.s32.totalorder %s10, 1
        %s186 = scalar_select %p185, %s10, 1
        %s187 = scalar_lea.vmem %s3, %s186
      $region32: #{summarizer_forward.8} parent=15 // pred_fallthru
        _
    $region16: #{summarizer_forward.8} parent=5 // pred_fallthru
      _
    %p188 = scmp.le.s32.totalorder 1, %s10
    %p189 = scmp.lt.s32.totalorder %s10, 3
    %p190 = pnand %p188, %p189
    %p191 = pneg %p190
    // Predicated region
    $region33: #{summarizer_forward.8} parent=5 // pred_check
      _
    $region34: #{summarizer_forward.8} parent=5 // pred_check_branch
      %193 = sbr.rel (%p190) target = $region36
    $region35: #{summarizer_forward.8} parent=5 // pred_region
      %s194 = ssub.s32 %s10, 1
      %p195 = scmp.lt.s32.totalorder %s15, 1
      %s196 = scalar_select %p195, %s15, 1
      %s197 = smul.addr %s196, 8
      %s198 = scalar_lea.vmem %s0, %s197
      %p199 = pneg %p36
      %p200 = pneg %p33
      %p201 = scmp.lt.s32.totalorder %s15, 1
      %s202 = scalar_select %p201, %s15, 1
      %s203 = smul.addr %s202, 4
      %s204 = smul.addr %s203, 8
      %s205 = scalar_lea.vmem %s1, %s204
      %p206 = pneg %p62
      %p207 = pneg %p59
      %p208 = scmp.lt.s32.totalorder %s15, 1
      %s209 = scalar_select %p208, %s15, 1
      %s210 = smul.addr %s209, 4
      %s211 = smul.addr %s210, 8
      %s212 = scalar_lea.vmem %s2, %s211
      %p213 = pneg %p88
      %p214 = pneg %p85
      %p215 = scmp.lt.s32.totalorder %s15, 1
      %s216 = scalar_select %p215, %s15, 1
      %s217 = scalar_lea.vmem %s3, %s216
      %p218 = pneg %p114
      %p219 = pneg %p111
      %p220 = pneg %p140
      %p221 = pneg %p137
      %p222 = scmp.lt.s32.totalorder %s15, 1
      %s223 = scalar_select %p222, %s15, 1
      %s224 = smul.addr %s223, 8
      %s225 = scalar_lea.vmem %s4, %s224
      %p226 = scmp.lt.s32.totalorder %s15, 1
      %s227 = scalar_select %p226, %s15, 1
      %s228 = smul.addr %s227, 8
      %s229 = scalar_lea.vmem %s0, %s228
      %p230 = scmp.lt.s32.totalorder %s15, 1
      %s231 = scalar_select %p230, %s15, 1
      %s232 = smul.addr %s231, 4
      %s233 = smul.addr %s232, 8
      %s234 = scalar_lea.vmem %s1, %s233
      %p235 = scmp.lt.s32.totalorder %s15, 1
      %s236 = scalar_select %p235, %s15, 1
      %s237 = smul.addr %s236, 4
      %s238 = smul.addr %s237, 8
      %s239 = scalar_lea.vmem %s2, %s238
      %p240 = scmp.lt.s32.totalorder %s15, 1
      %s241 = scalar_select %p240, %s15, 1
      %s242 = scalar_lea.vmem %s3, %s241
      %p243 = scmp.lt.s32.totalorder %s15, 1
      %s244 = scalar_select %p243, %s15, 1
      %s245 = smul.addr %s244, 8
      %s246 = scalar_lea.vmem %s4, %s245
      %v248 = vld [vmem:[%s229] sm:$0x3f]
      %v249 = vpack.c.bf16 %v248, %v248
      %v250 = vld [vmem:[%s234] sm:$0xff]
      %v251 = vld [vmem:[%s234 + $0x8] sm:$0xff]
      %v252 = vld [vmem:[%s234 + $0x10] sm:$0xff]
      %v253 = vld [vmem:[%s234 + $0x18] sm:$0xff]
      %v254 = vpack.c.bf16 %v251, %v250
      %v255 = vpack.c.bf16 %v253, %v252
      %v256 = vld [vmem:[%s242] sm:$0x1]
      %v258 = vlaneseq
      %v259 = vshrl.u32 %v258, 7
      %v260 = vsub.s32 0, %v259
      %v261 = vrot.slane %v256, %v260
      %vm263 = vcmask 261120
      %v265 = vsel %vm263, %v249, 0
      %267 = vmatprep.subr.bf16.mxu0 0
      %268 = vmatpush1.bf16.msra.mxu0 0
      %269 = vmatprep.subr.bf16.mxu0 0
      %270 = vmatpush1.bf16.msra.mxu0 0
      %271 = vmatprep.subr.bf16.mxu0 0
      %272 = vmatpush1.bf16.msra.mxu0 0
      %273 = vmatprep.subr.bf16.mxu0 0
      %274 = vmatpush1.bf16.msra.mxu0 0
      %275 = vmatprep.subr.bf16.mxu0 0
      %276 = vmatpush1.bf16.msra.mxu0 0
      %277 = vmatprep.subr.bf16.mxu0 0
      %278 = vmatpush1.bf16.msra.mxu0 0
      %279 = vmatprep.subr.bf16.mxu0 0
      %280 = vmatpush1.bf16.msra.mxu0 %v255
      %281 = vmatprep.subr.bf16.mxu0 0
      %282 = vmatpush1.bf16.msra.mxu0 %v254
      %283 = vmatprep.subr.bf16.mxu0 0
      %284 = vmatpush2.bf16.msra.mxu0 0
      %285 = vmatprep.subr.bf16.mxu0 0
      %286 = vmatpush2.bf16.msra.mxu0 0
      %287 = vmatprep.subr.bf16.mxu0 0
      %288 = vmatpush2.bf16.msra.mxu0 0
      %289 = vmatprep.subr.bf16.mxu0 0
      %290 = vmatpush2.bf16.msra.mxu0 0
      %291 = vmatprep.subr.bf16.mxu0 0
      %292 = vmatpush2.bf16.msra.mxu0 0
      %293 = vmatprep.subr.bf16.mxu0 0
      %294 = vmatpush2.bf16.msra.mxu0 0
      %295 = vmatprep.subr.bf16.mxu0 0
      %296 = vmatpush2.bf16.msra.mxu0 0
      %297 = vmatprep.subr.bf16.mxu0 0
      %298 = vmatpush2.bf16.msra.mxu0 0
      %299 = vmatprep.mubr.bf16.mxu0 0
      %300 = vmatmul.mubr.bf16.gmra.mxu0 %v265
      %v301 = vpop.f32.mrf.mxu0
      %v302 = vadd.f32 %v261, %v301
      %v303 = vpop.f32.mrf.mxu0
      %v304 = vpop.f32.mrf.mxu0
      %v305 = vpop.f32.mrf.mxu0
      %306 = vdwg.mxu0
      %307 = vst [vmem:[#allocation2] sm:$0x3f] %v302
      %v308 = vld [vmem:[%s239] sm:$0xff]
      %v309 = vld [vmem:[%s239 + $0x8] sm:$0xff]
      %v310 = vld [vmem:[%s239 + $0x10] sm:$0xff]
      %v311 = vld [vmem:[%s239 + $0x18] sm:$0xff]
      %v312 = vpack.c.bf16 %v309, %v308
      %v313 = vpack.c.bf16 %v311, %v310
      %vm314 = vcmask 253952
      %315 = vst.msk [vmem:[#allocation3] sm:$0x1] %vm314, 0.0
      %316 = vst.msk [vmem:[#allocation4] sm:$0x1] %vm314, 0.0
      %v317 = vld [vmem:[#allocation2] sm:$0x1]
      %v318 = vld [vmem:[#allocation3] sm:$0x1]
      %v319 = vpack.c.bf16 %v318, %v318
      %v321 = vsel %vm263, %v319, 0
      %323 = vmatprep.subr.bf16.mxu0 0
      %324 = vmatpush1.bf16.msra.mxu0 0
      %325 = vmatprep.subr.bf16.mxu0 0
      %326 = vmatpush1.bf16.msra.mxu0 0
      %327 = vmatprep.subr.bf16.mxu0 0
      %328 = vmatpush1.bf16.msra.mxu0 0
      %329 = vmatprep.subr.bf16.mxu0 0
      %330 = vmatpush1.bf16.msra.mxu0 0
      %331 = vmatprep.subr.bf16.mxu0 0
      %332 = vmatpush1.bf16.msra.mxu0 0
      %333 = vmatprep.subr.bf16.mxu0 0
      %334 = vmatpush1.bf16.msra.mxu0 0
      %335 = vmatprep.subr.bf16.mxu0 0
      %336 = vmatpush1.bf16.msra.mxu0 %v313
      %337 = vmatprep.subr.bf16.mxu0 0
      %338 = vmatpush1.bf16.msra.mxu0 %v312
      %339 = vmatprep.subr.bf16.mxu0 0
      %340 = vmatpush2.bf16.msra.mxu0 0
      %341 = vmatprep.subr.bf16.mxu0 0
      %342 = vmatpush2.bf16.msra.mxu0 0
      %343 = vmatprep.subr.bf16.mxu0 0
      %344 = vmatpush2.bf16.msra.mxu0 0
      %345 = vmatprep.subr.bf16.mxu0 0
      %346 = vmatpush2.bf16.msra.mxu0 0
      %347 = vmatprep.subr.bf16.mxu0 0
      %348 = vmatpush2.bf16.msra.mxu0 0
      %349 = vmatprep.subr.bf16.mxu0 0
      %350 = vmatpush2.bf16.msra.mxu0 0
      %351 = vmatprep.subr.bf16.mxu0 0
      %352 = vmatpush2.bf16.msra.mxu0 0
      %353 = vmatprep.subr.bf16.mxu0 0
      %354 = vmatpush2.bf16.msra.mxu0 0
      %355 = vmatprep.mubr.bf16.mxu0 0
      %356 = vmatmul.mubr.bf16.gmra.mxu0 %v321
      %v357 = vpop.f32.mrf.mxu0
      %v358 = vadd.f32 0.0, %v357
      %v359 = vpop.f32.mrf.mxu0
      %v360 = vpop.f32.mrf.mxu0
      %v361 = vpop.f32.mrf.mxu0
      %362 = vdwg.mxu0
      %v363 = vadd.f32 %v317, %v358
      %v364 = vxor.u32 %v363, 2147483648
      %v365 = vmul.f32 %v364, 1.442695
      %v366 = vpow.pop %v365
      %v367 = vadd.f32 %v366, 1.0
      %v368 = vrcp.pop %v367
      %v369 = vmul.f32 1.0, %v368
      %v370 = vtanh.pop %v363
      %v371 = vld [vmem:[#allocation4] sm:$0x1]
      %v373 = vlaneseq
      %v374 = vshrl.u32 %v373, 7
      %v375 = vsub.s32 0, %v374
      %v376 = vrot.slane %v371, %v375
      %377 = vrot.lane.b32.xlu0 %v376, 32
      %v378 = vpop.permute.xlu0 %377
      %v380 = vmul.f32 %v369, %v378
      %382 = vrot.lane.b32.xlu0 %v370, 64
      %v383 = vpop.permute.xlu0 %382
      %v385 = vmul.f32 %v369, %v383
      %387 = vrot.lane.b32.xlu0 %v385, 32
      %v388 = vpop.permute.xlu0 %387
      %v390 = vadd.f32 %v380, %v388
      %v391 = vtanh.pop %v390
      %393 = vrot.lane.b32.xlu0 %v391, 64
      %v394 = vpop.permute.xlu0 %393
      %v396 = vmul.f32 %v369, %v394
      %398 = vrot.lane.b32.xlu0 %v390, 96
      %v399 = vpop.permute.xlu0 %398
      %401 = vst.msk [vmem:[#allocation4] sm:$0x1] %vm314, %v399
      %403 = vrot.lane.b32.xlu0 %v396, 32
      %v404 = vpop.permute.xlu0 %403
      %406 = vst.msk [vmem:[#allocation3] sm:$0x1] %vm314, %v404
      %407 = vst.msk [vmem:[%s246] sm:$0x1] %vm314, %v404
      %v408 = vld [vmem:[#allocation2 + $0x1] sm:$0x1]
      %v409 = vld [vmem:[#allocation3] sm:$0x1]
      %v410 = vpack.c.bf16 %v409, %v409
      %v412 = vsel %vm263, %v410, 0
      %414 = vmatprep.subr.bf16.mxu0 0
      %415 = vmatpush1.bf16.msra.mxu0 0
      %416 = vmatprep.subr.bf16.mxu0 0
      %417 = vmatpush1.bf16.msra.mxu0 0
      %418 = vmatprep.subr.bf16.mxu0 0
      %419 = vmatpush1.bf16.msra.mxu0 0
      %420 = vmatprep.subr.bf16.mxu0 0
      %421 = vmatpush1.bf16.msra.mxu0 0
      %422 = vmatprep.subr.bf16.mxu0 0
      %423 = vmatpush1.bf16.msra.mxu0 0
      %424 = vmatprep.subr.bf16.mxu0 0
      %425 = vmatpush1.bf16.msra.mxu0 0
      %426 = vmatprep.subr.bf16.mxu0 0
      %427 = vmatpush1.bf16.msra.mxu0 %v313
      %428 = vmatprep.subr.bf16.mxu0 0
      %429 = vmatpush1.bf16.msra.mxu0 %v312
      %430 = vmatprep.subr.bf16.mxu0 0
      %431 = vmatpush2.bf16.msra.mxu0 0
      %432 = vmatprep.subr.bf16.mxu0 0
      %433 = vmatpush2.bf16.msra.mxu0 0
      %434 = vmatprep.subr.bf16.mxu0 0
      %435 = vmatpush2.bf16.msra.mxu0 0
      %436 = vmatprep.subr.bf16.mxu0 0
      %437 = vmatpush2.bf16.msra.mxu0 0
      %438 = vmatprep.subr.bf16.mxu0 0
      %439 = vmatpush2.bf16.msra.mxu0 0
      %440 = vmatprep.subr.bf16.mxu0 0
      %441 = vmatpush2.bf16.msra.mxu0 0
      %442 = vmatprep.subr.bf16.mxu0 0
      %443 = vmatpush2.bf16.msra.mxu0 0
      %444 = vmatprep.subr.bf16.mxu0 0
      %445 = vmatpush2.bf16.msra.mxu0 0
      %446 = vmatprep.mubr.bf16.mxu0 0
      %447 = vmatmul.mubr.bf16.gmra.mxu0 %v412
      %v448 = vpop.f32.mrf.mxu0
      %v449 = vadd.f32 0.0, %v448
      %v450 = vpop.f32.mrf.mxu0
      %v451 = vpop.f32.mrf.mxu0
      %v452 = vpop.f32.mrf.mxu0
      %453 = vdwg.mxu0
      %v454 = vadd.f32 %v408, %v449
      %v455 = vxor.u32 %v454, 2147483648
      %v456 = vmul.f32 %v455, 1.442695
      %v457 = vpow.pop %v456
      %v458 = vadd.f32 %v457, 1.0
      %v459 = vrcp.pop %v458
      %v460 = vmul.f32 1.0, %v459
      %v461 = vtanh.pop %v454
      %v462 = vld [vmem:[#allocation4] sm:$0x1]
      %v464 = vlaneseq
      %v465 = vshrl.u32 %v464, 7
      %v466 = vsub.s32 0, %v465
      %v467 = vrot.slane %v462, %v466
      %468 = vrot.lane.b32.xlu0 %v467, 32
      %v469 = vpop.permute.xlu0 %468
      %v471 = vmul.f32 %v460, %v469
      %473 = vrot.lane.b32.xlu0 %v461, 64
      %v474 = vpop.permute.xlu0 %473
      %v476 = vmul.f32 %v460, %v474
      %478 = vrot.lane.b32.xlu0 %v476, 32
      %v479 = vpop.permute.xlu0 %478
      %v481 = vadd.f32 %v471, %v479
      %v482 = vtanh.pop %v481
      %484 = vrot.lane.b32.xlu0 %v482, 64
      %v485 = vpop.permute.xlu0 %484
      %v487 = vmul.f32 %v460, %v485
      %489 = vrot.lane.b32.xlu0 %v481, 96
      %v490 = vpop.permute.xlu0 %489
      %492 = vst.msk [vmem:[#allocation4] sm:$0x1] %vm314, %v490
      %494 = vrot.lane.b32.xlu0 %v487, 32
      %v495 = vpop.permute.xlu0 %494
      %497 = vst.msk [vmem:[#allocation3] sm:$0x1] %vm314, %v495
      %498 = vst.msk [vmem:[%s246 + $0x1] sm:$0x1] %vm314, %v495
      %v499 = vld [vmem:[#allocation2 + $0x2] sm:$0x1]
      %v500 = vld [vmem:[#allocation3] sm:$0x1]
      %v501 = vpack.c.bf16 %v500, %v500
      %v503 = vsel %vm263, %v501, 0
      %505 = vmatprep.subr.bf16.mxu0 0
      %506 = vmatpush1.bf16.msra.mxu0 0
      %507 = vmatprep.subr.bf16.mxu0 0
      %508 = vmatpush1.bf16.msra.mxu0 0
      %509 = vmatprep.subr.bf16.mxu0 0
      %510 = vmatpush1.bf16.msra.mxu0 0
      %511 = vmatprep.subr.bf16.mxu0 0
      %512 = vmatpush1.bf16.msra.mxu0 0
      %513 = vmatprep.subr.bf16.mxu0 0
      %514 = vmatpush1.bf16.msra.mxu0 0
      %515 = vmatprep.subr.bf16.mxu0 0
      %516 = vmatpush1.bf16.msra.mxu0 0
      %517 = vmatprep.subr.bf16.mxu0 0
      %518 = vmatpush1.bf16.msra.mxu0 %v313
      %519 = vmatprep.subr.bf16.mxu0 0
      %520 = vmatpush1.bf16.msra.mxu0 %v312
      %521 = vmatprep.subr.bf16.mxu0 0
      %522 = vmatpush2.bf16.msra.mxu0 0
      %523 = vmatprep.subr.bf16.mxu0 0
      %524 = vmatpush2.bf16.msra.mxu0 0
      %525 = vmatprep.subr.bf16.mxu0 0
      %526 = vmatpush2.bf16.msra.mxu0 0
      %527 = vmatprep.subr.bf16.mxu0 0
      %528 = vmatpush2.bf16.msra.mxu0 0
      %529 = vmatprep.subr.bf16.mxu0 0
      %530 = vmatpush2.bf16.msra.mxu0 0
      %531 = vmatprep.subr.bf16.mxu0 0
      %532 = vmatpush2.bf16.msra.mxu0 0
      %533 = vmatprep.subr.bf16.mxu0 0
      %534 = vmatpush2.bf16.msra.mxu0 0
      %535 = vmatprep.subr.bf16.mxu0 0
      %536 = vmatpush2.bf16.msra.mxu0 0
      %537 = vmatprep.mubr.bf16.mxu0 0
      %538 = vmatmul.mubr.bf16.gmra.mxu0 %v503
      %v539 = vpop.f32.mrf.mxu0
      %v540 = vadd.f32 0.0, %v539
      %v541 = vpop.f32.mrf.mxu0
      %v542 = vpop.f32.mrf.mxu0
      %v543 = vpop.f32.mrf.mxu0
      %544 = vdwg.mxu0
      %v545 = vadd.f32 %v499, %v540
      %v546 = vxor.u32 %v545, 2147483648
      %v547 = vmul.f32 %v546, 1.442695
      %v548 = vpow.pop %v547
      %v549 = vadd.f32 %v548, 1.0
      %v550 = vrcp.pop %v549
      %v551 = vmul.f32 1.0, %v550
      %v552 = vtanh.pop %v545
      %v553 = vld [vmem:[#allocation4] sm:$0x1]
      %v555 = vlaneseq
      %v556 = vshrl.u32 %v555, 7
      %v557 = vsub.s32 0, %v556
      %v558 = vrot.slane %v553, %v557
      %559 = vrot.lane.b32.xlu0 %v558, 32
      %v560 = vpop.permute.xlu0 %559
      %v562 = vmul.f32 %v551, %v560
      %564 = vrot.lane.b32.xlu0 %v552, 64
      %v565 = vpop.permute.xlu0 %564
      %v567 = vmul.f32 %v551, %v565
      %569 = vrot.lane.b32.xlu0 %v567, 32
      %v570 = vpop.permute.xlu0 %569
      %v572 = vadd.f32 %v562, %v570
      %v573 = vtanh.pop %v572
      %575 = vrot.lane.b32.xlu0 %v573, 64
      %v576 = vpop.permute.xlu0 %575
      %v578 = vmul.f32 %v551, %v576
      %580 = vrot.lane.b32.xlu0 %v572, 96
      %v581 = vpop.permute.xlu0 %580
      %583 = vst.msk [vmem:[#allocation4] sm:$0x1] %vm314, %v581
      %585 = vrot.lane.b32.xlu0 %v578, 32
      %v586 = vpop.permute.xlu0 %585
      %588 = vst.msk [vmem:[#allocation3] sm:$0x1] %vm314, %v586
      %589 = vst.msk [vmem:[%s246 + $0x2] sm:$0x1] %vm314, %v586
      %v590 = vld [vmem:[#allocation2 + $0x3] sm:$0x1]
      %v591 = vld [vmem:[#allocation3] sm:$0x1]
      %v592 = vpack.c.bf16 %v591, %v591
      %v594 = vsel %vm263, %v592, 0
      %596 = vmatprep.subr.bf16.mxu0 0
      %597 = vmatpush1.bf16.msra.mxu0 0
      %598 = vmatprep.subr.bf16.mxu0 0
      %599 = vmatpush1.bf16.msra.mxu0 0
      %600 = vmatprep.subr.bf16.mxu0 0
      %601 = vmatpush1.bf16.msra.mxu0 0
      %602 = vmatprep.subr.bf16.mxu0 0
      %603 = vmatpush1.bf16.msra.mxu0 0
      %604 = vmatprep.subr.bf16.mxu0 0
      %605 = vmatpush1.bf16.msra.mxu0 0
      %606 = vmatprep.subr.bf16.mxu0 0
      %607 = vmatpush1.bf16.msra.mxu0 0
      %608 = vmatprep.subr.bf16.mxu0 0
      %609 = vmatpush1.bf16.msra.mxu0 %v313
      %610 = vmatprep.subr.bf16.mxu0 0
      %611 = vmatpush1.bf16.msra.mxu0 %v312
      %612 = vmatprep.subr.bf16.mxu0 0
      %613 = vmatpush2.bf16.msra.mxu0 0
      %614 = vmatprep.subr.bf16.mxu0 0
      %615 = vmatpush2.bf16.msra.mxu0 0
      %616 = vmatprep.subr.bf16.mxu0 0
      %617 = vmatpush2.bf16.msra.mxu0 0
      %618 = vmatprep.subr.bf16.mxu0 0
      %619 = vmatpush2.bf16.msra.mxu0 0
      %620 = vmatprep.subr.bf16.mxu0 0
      %621 = vmatpush2.bf16.msra.mxu0 0
      %622 = vmatprep.subr.bf16.mxu0 0
      %623 = vmatpush2.bf16.msra.mxu0 0
      %624 = vmatprep.subr.bf16.mxu0 0
      %625 = vmatpush2.bf16.msra.mxu0 0
      %626 = vmatprep.subr.bf16.mxu0 0
      %627 = vmatpush2.bf16.msra.mxu0 0
      %628 = vmatprep.mubr.bf16.mxu0 0
      %629 = vmatmul.mubr.bf16.gmra.mxu0 %v594
      %v630 = vpop.f32.mrf.mxu0
      %v631 = vadd.f32 0.0, %v630
      %v632 = vpop.f32.mrf.mxu0
      %v633 = vpop.f32.mrf.mxu0
      %v634 = vpop.f32.mrf.mxu0
      %635 = vdwg.mxu0
      %v636 = vadd.f32 %v590, %v631
      %v637 = vxor.u32 %v636, 2147483648
      %v638 = vmul.f32 %v637, 1.442695
      %v639 = vpow.pop %v638
      %v640 = vadd.f32 %v639, 1.0
      %v641 = vrcp.pop %v640
      %v642 = vmul.f32 1.0, %v641
      %v643 = vtanh.pop %v636
      %v644 = vld [vmem:[#allocation4] sm:$0x1]
      %v646 = vlaneseq
      %v647 = vshrl.u32 %v646, 7
      %v648 = vsub.s32 0, %v647
      %v649 = vrot.slane %v644, %v648
      %650 = vrot.lane.b32.xlu0 %v649, 32
      %v651 = vpop.permute.xlu0 %650
      %v653 = vmul.f32 %v642, %v651
      %655 = vrot.lane.b32.xlu0 %v643, 64
      %v656 = vpop.permute.xlu0 %655
      %v658 = vmul.f32 %v642, %v656
      %660 = vrot.lane.b32.xlu0 %v658, 32
      %v661 = vpop.permute.xlu0 %660
      %v663 = vadd.f32 %v653, %v661
      %v664 = vtanh.pop %v663
      %666 = vrot.lane.b32.xlu0 %v664, 64
      %v667 = vpop.permute.xlu0 %666
      %v669 = vmul.f32 %v642, %v667
      %671 = vrot.lane.b32.xlu0 %v663, 96
      %v672 = vpop.permute.xlu0 %671
      %674 = vst.msk [vmem:[#allocation4] sm:$0x1] %vm314, %v672
      %676 = vrot.lane.b32.xlu0 %v669, 32
      %v677 = vpop.permute.xlu0 %676
      %679 = vst.msk [vmem:[#allocation3] sm:$0x1] %vm314, %v677
      %680 = vst.msk [vmem:[%s246 + $0x3] sm:$0x1] %vm314, %v677
      %v681 = vld [vmem:[#allocation2 + $0x4] sm:$0x1]
      %v682 = vld [vmem:[#allocation3] sm:$0x1]
      %v683 = vpack.c.bf16 %v682, %v682
      %v685 = vsel %vm263, %v683, 0
      %687 = vmatprep.subr.bf16.mxu0 0
      %688 = vmatpush1.bf16.msra.mxu0 0
      %689 = vmatprep.subr.bf16.mxu0 0
      %690 = vmatpush1.bf16.msra.mxu0 0
      %691 = vmatprep.subr.bf16.mxu0 0
      %692 = vmatpush1.bf16.msra.mxu0 0
      %693 = vmatprep.subr.bf16.mxu0 0
      %694 = vmatpush1.bf16.msra.mxu0 0
      %695 = vmatprep.subr.bf16.mxu0 0
      %696 = vmatpush1.bf16.msra.mxu0 0
      %697 = vmatprep.subr.bf16.mxu0 0
      %698 = vmatpush1.bf16.msra.mxu0 0
      %699 = vmatprep.subr.bf16.mxu0 0
      %700 = vmatpush1.bf16.msra.mxu0 %v313
      %701 = vmatprep.subr.bf16.mxu0 0
      %702 = vmatpush1.bf16.msra.mxu0 %v312
      %703 = vmatprep.subr.bf16.mxu0 0
      %704 = vmatpush2.bf16.msra.mxu0 0
      %705 = vmatprep.subr.bf16.mxu0 0
      %706 = vmatpush2.bf16.msra.mxu0 0
      %707 = vmatprep.subr.bf16.mxu0 0
      %708 = vmatpush2.bf16.msra.mxu0 0
      %709 = vmatprep.subr.bf16.mxu0 0
      %710 = vmatpush2.bf16.msra.mxu0 0
      %711 = vmatprep.subr.bf16.mxu0 0
      %712 = vmatpush2.bf16.msra.mxu0 0
      %713 = vmatprep.subr.bf16.mxu0 0
      %714 = vmatpush2.bf16.msra.mxu0 0
      %715 = vmatprep.subr.bf16.mxu0 0
      %716 = vmatpush2.bf16.msra.mxu0 0
      %717 = vmatprep.subr.bf16.mxu0 0
      %718 = vmatpush2.bf16.msra.mxu0 0
      %719 = vmatprep.mubr.bf16.mxu0 0
      %720 = vmatmul.mubr.bf16.gmra.mxu0 %v685
      %v721 = vpop.f32.mrf.mxu0
      %v722 = vadd.f32 0.0, %v721
      %v723 = vpop.f32.mrf.mxu0
      %v724 = vpop.f32.mrf.mxu0
      %v725 = vpop.f32.mrf.mxu0
      %726 = vdwg.mxu0
      %v727 = vadd.f32 %v681, %v722
      %v728 = vxor.u32 %v727, 2147483648
      %v729 = vmul.f32 %v728, 1.442695
      %v730 = vpow.pop %v729
      %v731 = vadd.f32 %v730, 1.0
      %v732 = vrcp.pop %v731
      %v733 = vmul.f32 1.0, %v732
      %v734 = vtanh.pop %v727
      %v735 = vld [vmem:[#allocation4] sm:$0x1]
      %v737 = vlaneseq
      %v738 = vshrl.u32 %v737, 7
      %v739 = vsub.s32 0, %v738
      %v740 = vrot.slane %v735, %v739
      %741 = vrot.lane.b32.xlu0 %v740, 32
      %v742 = vpop.permute.xlu0 %741
      %v744 = vmul.f32 %v733, %v742
      %746 = vrot.lane.b32.xlu0 %v734, 64
      %v747 = vpop.permute.xlu0 %746
      %v749 = vmul.f32 %v733, %v747
      %751 = vrot.lane.b32.xlu0 %v749, 32
      %v752 = vpop.permute.xlu0 %751
      %v754 = vadd.f32 %v744, %v752
      %v755 = vtanh.pop %v754
      %757 = vrot.lane.b32.xlu0 %v755, 64
      %v758 = vpop.permute.xlu0 %757
      %v760 = vmul.f32 %v733, %v758
      %762 = vrot.lane.b32.xlu0 %v754, 96
      %v763 = vpop.permute.xlu0 %762
      %765 = vst.msk [vmem:[#allocation4] sm:$0x1] %vm314, %v763
      %767 = vrot.lane.b32.xlu0 %v760, 32
      %v768 = vpop.permute.xlu0 %767
      %770 = vst.msk [vmem:[#allocation3] sm:$0x1] %vm314, %v768
      %771 = vst.msk [vmem:[%s246 + $0x4] sm:$0x1] %vm314, %v768
      %v772 = vld [vmem:[#allocation2 + $0x5] sm:$0x1]
      %v773 = vld [vmem:[#allocation3] sm:$0x1]
      %v774 = vpack.c.bf16 %v773, %v773
      %v776 = vsel %vm263, %v774, 0
      %778 = vmatprep.subr.bf16.mxu0 0
      %779 = vmatpush1.bf16.msra.mxu0 0
      %780 = vmatprep.subr.bf16.mxu0 0
      %781 = vmatpush1.bf16.msra.mxu0 0
      %782 = vmatprep.subr.bf16.mxu0 0
      %783 = vmatpush1.bf16.msra.mxu0 0
      %784 = vmatprep.subr.bf16.mxu0 0
      %785 = vmatpush1.bf16.msra.mxu0 0
      %786 = vmatprep.subr.bf16.mxu0 0
      %787 = vmatpush1.bf16.msra.mxu0 0
      %788 = vmatprep.subr.bf16.mxu0 0
      %789 = vmatpush1.bf16.msra.mxu0 0
      %790 = vmatprep.subr.bf16.mxu0 0
      %791 = vmatpush1.bf16.msra.mxu0 %v313
      %792 = vmatprep.subr.bf16.mxu0 0
      %793 = vmatpush1.bf16.msra.mxu0 %v312
      %794 = vmatprep.subr.bf16.mxu0 0
      %795 = vmatpush2.bf16.msra.mxu0 0
      %796 = vmatprep.subr.bf16.mxu0 0
      %797 = vmatpush2.bf16.msra.mxu0 0
      %798 = vmatprep.subr.bf16.mxu0 0
      %799 = vmatpush2.bf16.msra.mxu0 0
      %800 = vmatprep.subr.bf16.mxu0 0
      %801 = vmatpush2.bf16.msra.mxu0 0
      %802 = vmatprep.subr.bf16.mxu0 0
      %803 = vmatpush2.bf16.msra.mxu0 0
      %804 = vmatprep.subr.bf16.mxu0 0
      %805 = vmatpush2.bf16.msra.mxu0 0
      %806 = vmatprep.subr.bf16.mxu0 0
      %807 = vmatpush2.bf16.msra.mxu0 0
      %808 = vmatprep.subr.bf16.mxu0 0
      %809 = vmatpush2.bf16.msra.mxu0 0
      %810 = vmatprep.mubr.bf16.mxu0 0
      %811 = vmatmul.mubr.bf16.gmra.mxu0 %v776
      %v812 = vpop.f32.mrf.mxu0
      %v813 = vadd.f32 0.0, %v812
      %v814 = vpop.f32.mrf.mxu0
      %v815 = vpop.f32.mrf.mxu0
      %v816 = vpop.f32.mrf.mxu0
      %817 = vdwg.mxu0
      %v818 = vadd.f32 %v772, %v813
      %v819 = vxor.u32 %v818, 2147483648
      %v820 = vmul.f32 %v819, 1.442695
      %v821 = vpow.pop %v820
      %v822 = vadd.f32 %v821, 1.0
      %v823 = vrcp.pop %v822
      %v824 = vmul.f32 1.0, %v823
      %v825 = vtanh.pop %v818
      %v826 = vld [vmem:[#allocation4] sm:$0x1]
      %v828 = vlaneseq
      %v829 = vshrl.u32 %v828, 7
      %v830 = vsub.s32 0, %v829
      %v831 = vrot.slane %v826, %v830
      %832 = vrot.lane.b32.xlu0 %v831, 32
      %v833 = vpop.permute.xlu0 %832
      %v835 = vmul.f32 %v824, %v833
      %837 = vrot.lane.b32.xlu0 %v825, 64
      %v838 = vpop.permute.xlu0 %837
      %v840 = vmul.f32 %v824, %v838
      %842 = vrot.lane.b32.xlu0 %v840, 32
      %v843 = vpop.permute.xlu0 %842
      %v845 = vadd.f32 %v835, %v843
      %v846 = vtanh.pop %v845
      %848 = vrot.lane.b32.xlu0 %v846, 64
      %v849 = vpop.permute.xlu0 %848
      %v851 = vmul.f32 %v824, %v849
      %853 = vrot.lane.b32.xlu0 %v845, 96
      %v854 = vpop.permute.xlu0 %853
      %856 = vst.msk [vmem:[#allocation4] sm:$0x1] %vm314, %v854
      %858 = vrot.lane.b32.xlu0 %v851, 32
      %v859 = vpop.permute.xlu0 %858
      %861 = vst.msk [vmem:[#allocation3] sm:$0x1] %vm314, %v859
      %862 = vst.msk [vmem:[%s246 + $0x5] sm:$0x1] %vm314, %v859
      %p863 = scmp.lt.s32.totalorder %s15, 1
      %s864 = scalar_select %p863, %s15, 1
      %s865 = smul.addr %s864, 8
      %s866 = scalar_lea.vmem %s4, %s865
      // Predicated region
      $region37: #{summarizer_forward.8} parent=35 // pred_check
        %p867 = pneg %p137
      $region38: #{summarizer_forward.8} parent=35 // pred_check_branch
        %869 = sbr.rel (%p867) target = $region40
      $region39: #{summarizer_forward.8} parent=35 // pred_region
        _
      $region40: #{summarizer_forward.8} parent=35 // pred_fallthru
        _
    $region36: #{summarizer_forward.8} parent=5 // pred_fallthru
      _
    %p870 = scmp.le.s32.totalorder 2, %s10
    // Predicated region
    $region41: #{summarizer_forward.8} parent=5 // pred_check
      %p871 = pneg %p870
    $region42: #{summarizer_forward.8} parent=5 // pred_check_branch
      %873 = sbr.rel (%p871) target = $region44
    $region43: #{summarizer_forward.8} parent=5 // pred_region
      %s874 = ssub.s32 %s10, 2
      // Predicated region
      $region45: #{summarizer_forward.8} parent=43 // pred_check
        %p875 = pneg %p143
      $region46: #{summarizer_forward.8} parent=43 // pred_check_branch
        %877 = sbr.rel (%p875) target = $region48
      $region47: #{summarizer_forward.8} parent=43 // pred_region
        %p878 = scmp.lt.s32.totalorder %s16, 1
        %s879 = scalar_select %p878, %s16, 1
        %s880 = smul.addr %s879, 8
        %s881 = scalar_lea.vmem %s4, %s880
      $region48: #{summarizer_forward.8} parent=43 // pred_fallthru
        _
    $region44: #{summarizer_forward.8} parent=5 // pred_fallthru
      _
  $region6: #{summarizer_forward.8} parent=0 // loop_footer
    %s14 = sadd.s32 1, %s10
  $region7: #{summarizer_forward.8} parent=0 // loop_footer_branch
    %9 = sbr.rel target = $region3
  $region8: #{summarizer_forward.8} parent=0 // loop_exit
    _

// kernel: summarizer_forward.6
$region0: #{summarizer_forward.6}
  #allocation0 [shape = 'u32[]', space=smem, size = 0x4, offset = 0x4, fixed_abs, tag = 'smem constant byte address 0x4 - core index']
  #allocation1 [shape = 'u32[144,128]{1,0:T(1,128)}', space=vmem, size = 0x12000, scoped, tag = 'internal scratch']
  %s0 = inlined_call_operand.vmem [shape: f32[48,32], index: 0, kind: input, shape index: {}]
  %s1 = inlined_call_operand.vmem [shape: f32[6,8], index: 1, kind: input, shape index: {}]
  %s2 = inlined_call_operand.vmem [shape: f32[32,96], index: 2, kind: input, shape index: {}]
  %s3 = inlined_call_operand.vmem [shape: f32[1,96], index: 3, kind: input, shape index: {}]
  %s4 = inlined_call_operand.vmem [shape: f32[32,32], index: 4, kind: input, shape index: {}]
  %s5 = inlined_call_operand.vmem [shape: f32[1,32], index: 5, kind: input, shape index: {}]
  %s6 = inlined_call_operand.vmem [shape: f32[1,32], index: 6, kind: input, shape index: {}]
  %s7 = inlined_call_operand.vmem [shape: f32[1,32], index: 7, kind: input, shape index: {}]
  %s8 = inlined_call_operand.vmem [shape: f32[32,64], index: 8, kind: input, shape index: {}]
  %s9 = inlined_call_operand.vmem [shape: f32[1,64], index: 9, kind: input, shape index: {}]
  %s10 = inlined_call_operand.vmem [shape: f32[64,32], index: 10, kind: input, shape index: {}]
  %s11 = inlined_call_operand.vmem [shape: f32[1,32], index: 11, kind: input, shape index: {}]
  %s12 = inlined_call_operand.vmem [shape: f32[1,32], index: 12, kind: input, shape index: {}]
  %s13 = inlined_call_operand.vmem [shape: f32[1,32], index: 13, kind: input, shape index: {}]
  %s14 = inlined_call_operand.vmem [shape: f32[48,32], index: 14, kind: output, shape index: {}]
  %s15 = sld [smem:[#allocation0]]
  $region66: #{summarizer_forward.6} parent=0
    _
  %s17 = ssub.s32 1, %s15
  %s18 = scalar_select 0, %s17, %s15
  // Predicated region
  $region2: #{summarizer_forward.6} parent=0 // pred_check
    _
  $region3: #{summarizer_forward.6} parent=0 // pred_check_branch
    %20 = sbr.rel (0) target = $region5
  $region4: #{summarizer_forward.6} parent=0 // pred_region
    _
  $region5: #{summarizer_forward.6} parent=0 // pred_fallthru
    _
  // Predicated region
  $region6: #{summarizer_forward.6} parent=0 // pred_check
    _
  $region7: #{summarizer_forward.6} parent=0 // pred_check_branch
    %22 = sbr.rel (0) target = $region9
  $region8: #{summarizer_forward.6} parent=0 // pred_region
    _
  $region9: #{summarizer_forward.6} parent=0 // pred_fallthru
    _
  // Predicated region
  $region10: #{summarizer_forward.6} parent=0 // pred_check
    _
  $region11: #{summarizer_forward.6} parent=0 // pred_check_branch
    %24 = sbr.rel (0) target = $region13
  $region12: #{summarizer_forward.6} parent=0 // pred_region
    _
  $region13: #{summarizer_forward.6} parent=0 // pred_fallthru
    _
  // Predicated region
  $region14: #{summarizer_forward.6} parent=0 // pred_check
    _
  $region15: #{summarizer_forward.6} parent=0 // pred_check_branch
    %26 = sbr.rel (0) target = $region17
  $region16: #{summarizer_forward.6} parent=0 // pred_region
    _
  $region17: #{summarizer_forward.6} parent=0 // pred_fallthru
    _
  // Predicated region
  $region18: #{summarizer_forward.6} parent=0 // pred_check
    _
  $region19: #{summarizer_forward.6} parent=0 // pred_check_branch
    %28 = sbr.rel (0) target = $region21
  $region20: #{summarizer_forward.6} parent=0 // pred_region
    _
  $region21: #{summarizer_forward.6} parent=0 // pred_fallthru
    _
  // Predicated region
  $region22: #{summarizer_forward.6} parent=0 // pred_check
    _
  $region23: #{summarizer_forward.6} parent=0 // pred_check_branch
    %30 = sbr.rel (0) target = $region25
  $region24: #{summarizer_forward.6} parent=0 // pred_region
    _
  $region25: #{summarizer_forward.6} parent=0 // pred_fallthru
    _
  // Predicated region
  $region26: #{summarizer_forward.6} parent=0 // pred_check
    _
  $region27: #{summarizer_forward.6} parent=0 // pred_check_branch
    %32 = sbr.rel (0) target = $region29
  $region28: #{summarizer_forward.6} parent=0 // pred_region
    _
  $region29: #{summarizer_forward.6} parent=0 // pred_fallthru
    _
  // Predicated region
  $region30: #{summarizer_forward.6} parent=0 // pred_check
    _
  $region31: #{summarizer_forward.6} parent=0 // pred_check_branch
    %34 = sbr.rel (0) target = $region33
  $region32: #{summarizer_forward.6} parent=0 // pred_region
    _
  $region33: #{summarizer_forward.6} parent=0 // pred_fallthru
    _
  // Predicated region
  $region34: #{summarizer_forward.6} parent=0 // pred_check
    _
  $region35: #{summarizer_forward.6} parent=0 // pred_check_branch
    %36 = sbr.rel (0) target = $region37
  $region36: #{summarizer_forward.6} parent=0 // pred_region
    _
  $region37: #{summarizer_forward.6} parent=0 // pred_fallthru
    _
  // Predicated region
  $region38: #{summarizer_forward.6} parent=0 // pred_check
    _
  $region39: #{summarizer_forward.6} parent=0 // pred_check_branch
    %38 = sbr.rel (0) target = $region41
  $region40: #{summarizer_forward.6} parent=0 // pred_region
    _
  $region41: #{summarizer_forward.6} parent=0 // pred_fallthru
    _
  // Predicated region
  $region42: #{summarizer_forward.6} parent=0 // pred_check
    _
  $region43: #{summarizer_forward.6} parent=0 // pred_check_branch
    %40 = sbr.rel (0) target = $region45
  $region44: #{summarizer_forward.6} parent=0 // pred_region
    _
  $region45: #{summarizer_forward.6} parent=0 // pred_fallthru
    _
  // Predicated region
  $region46: #{summarizer_forward.6} parent=0 // pred_check
    _
  $region47: #{summarizer_forward.6} parent=0 // pred_check_branch
    %42 = sbr.rel (0) target = $region49
  $region48: #{summarizer_forward.6} parent=0 // pred_region
    _
  $region49: #{summarizer_forward.6} parent=0 // pred_fallthru
    _
  // Predicated region
  $region50: #{summarizer_forward.6} parent=0 // pred_check
    _
  $region51: #{summarizer_forward.6} parent=0 // pred_check_branch
    %44 = sbr.rel (0) target = $region53
  $region52: #{summarizer_forward.6} parent=0 // pred_region
    _
  $region53: #{summarizer_forward.6} parent=0 // pred_fallthru
    _
  // Predicated region
  $region54: #{summarizer_forward.6} parent=0 // pred_check
    _
  $region55: #{summarizer_forward.6} parent=0 // pred_check_branch
    %46 = sbr.rel (0) target = $region57
  $region56: #{summarizer_forward.6} parent=0 // pred_region
    _
  $region57: #{summarizer_forward.6} parent=0 // pred_fallthru
    _
  %v48 = vld [vmem:[%s0] sm:$0xff]
  %v49 = vld [vmem:[%s0 + $0x8] sm:$0xff]
  %v50 = vld [vmem:[%s0 + $0x10] sm:$0xff]
  %v51 = vld [vmem:[%s0 + $0x18] sm:$0xff]
  %v52 = vld [vmem:[%s0 + $0x20] sm:$0xff]
  %v53 = vld [vmem:[%s0 + $0x28] sm:$0xff]
  %v54 = vld [vmem:[%s2] sm:$0xff]
  %v55 = vld [vmem:[%s2 + $0x8] sm:$0xff]
  %v56 = vld [vmem:[%s2 + $0x10] sm:$0xff]
  %v57 = vld [vmem:[%s2 + $0x18] sm:$0xff]
  %v58 = vpack.c.bf16 %v49, %v48
  %v59 = vpack.c.bf16 %v51, %v50
  %v60 = vpack.c.bf16 %v53, %v52
  %v61 = vpack.c.bf16 %v55, %v54
  %v62 = vpack.c.bf16 %v57, %v56
  %v63 = vld [vmem:[%s3] sm:$0x1]
  %v65 = vlaneseq
  %v66 = vshrl.u32 %v65, 7
  %v67 = vsub.s32 0, %v66
  %v68 = vrot.slane %v63, %v67
  %vm70 = vcmask 261120
  %v72 = vsel %vm70, %v58, 0
  %v75 = vsel %vm70, %v59, 0
  %v78 = vsel %vm70, %v60, 0
  %80 = vmatprep.subr.bf16.mxu0 0
  %81 = vmatpush1.bf16.msra.mxu0 0
  %82 = vmatprep.subr.bf16.mxu0 0
  %83 = vmatpush1.bf16.msra.mxu0 0
  %84 = vmatprep.subr.bf16.mxu0 0
  %85 = vmatpush1.bf16.msra.mxu0 0
  %86 = vmatprep.subr.bf16.mxu0 0
  %87 = vmatpush1.bf16.msra.mxu0 0
  %88 = vmatprep.subr.bf16.mxu0 0
  %89 = vmatpush1.bf16.msra.mxu0 0
  %90 = vmatprep.subr.bf16.mxu0 0
  %91 = vmatpush1.bf16.msra.mxu0 0
  %92 = vmatprep.subr.bf16.mxu0 0
  %93 = vmatpush1.bf16.msra.mxu0 %v62
  %94 = vmatprep.subr.bf16.mxu0 0
  %95 = vmatpush1.bf16.msra.mxu0 %v61
  %96 = vmatprep.subr.bf16.mxu0 0
  %97 = vmatpush2.bf16.msra.mxu0 0
  %98 = vmatprep.subr.bf16.mxu0 0
  %99 = vmatpush2.bf16.msra.mxu0 0
  %100 = vmatprep.subr.bf16.mxu0 0
  %101 = vmatpush2.bf16.msra.mxu0 0
  %102 = vmatprep.subr.bf16.mxu0 0
  %103 = vmatpush2.bf16.msra.mxu0 0
  %104 = vmatprep.subr.bf16.mxu0 0
  %105 = vmatpush2.bf16.msra.mxu0 0
  %106 = vmatprep.subr.bf16.mxu0 0
  %107 = vmatpush2.bf16.msra.mxu0 0
  %108 = vmatprep.subr.bf16.mxu0 0
  %109 = vmatpush2.bf16.msra.mxu0 0
  %110 = vmatprep.subr.bf16.mxu0 0
  %111 = vmatpush2.bf16.msra.mxu0 0
  %112 = vmatprep.mubr.bf16.mxu0 0
  %113 = vmatmul.mubr.bf16.gmra.mxu0 %v72
  %v114 = vpop.f32.mrf.mxu0
  %v115 = vadd.f32 %v68, %v114
  %v116 = vpop.f32.mrf.mxu0
  %v117 = vpop.f32.mrf.mxu0
  %v118 = vadd.f32 %v68, %v117
  %v119 = vpop.f32.mrf.mxu0
  %120 = vmatprep.mubr.bf16.mxu0 0
  %121 = vmatmul.mubr.bf16.gmra.mxu0 %v75
  %v122 = vpop.f32.mrf.mxu0
  %v123 = vadd.f32 %v68, %v122
  %v124 = vpop.f32.mrf.mxu0
  %v125 = vpop.f32.mrf.mxu0
  %v126 = vadd.f32 %v68, %v125
  %v127 = vpop.f32.mrf.mxu0
  %128 = vmatprep.mubr.bf16.mxu0 0
  %129 = vmatmul.mubr.bf16.gmra.mxu0 %v78
  %v130 = vpop.f32.mrf.mxu0
  %v131 = vadd.f32 %v68, %v130
  %v132 = vpop.f32.mrf.mxu0
  %v133 = vpop.f32.mrf.mxu0
  %v134 = vadd.f32 %v68, %v133
  %v135 = vpop.f32.mrf.mxu0
  %136 = vdwg.mxu0
  %v137 = vld [vmem:[%s1] sm:$0x3f]
  %v139 = vcombine.high %v137, %v137
  %v141 = vunpack.c.l.s4 1966171168
  %v142 = vunpack.c.0.s8 %v141
  %v143 = vlaneseq
  %v144 = vshrl.u32 %v143, 7
  %v145 = vsub.s32 %v142, %v144
  %v146 = vrot.slane %v137, %v145
  %v148 = vunpack.c.l.s4 1966171168
  %v149 = vunpack.c.0.s8 %v148
  %v150 = vlaneseq
  %v151 = vshrl.u32 %v150, 7
  %v152 = vsub.s32 %v149, %v151
  %v153 = vrot.slane %v139, %v152
  %v154 = vcombine.high %v146, %v146
  %v155 = vcombine.high %v153, %v153
  %v157 = vunpack.c.l.s4 1966171168
  %v158 = vunpack.c.0.s8 %v157
  %v159 = vlaneseq
  %v160 = vshrl.u32 %v159, 7
  %v161 = vsub.s32 %v158, %v160
  %v162 = vrot.slane %v146, %v161
  %v164 = vunpack.c.l.s4 1966171168
  %v165 = vunpack.c.0.s8 %v164
  %v166 = vlaneseq
  %v167 = vshrl.u32 %v166, 7
  %v168 = vsub.s32 %v165, %v167
  %v169 = vrot.slane %v153, %v168
  %v171 = vunpack.c.l.s4 1966171168
  %v172 = vunpack.c.0.s8 %v171
  %v173 = vlaneseq
  %v174 = vshrl.u32 %v173, 7
  %v175 = vsub.s32 %v172, %v174
  %v176 = vrot.slane %v154, %v175
  %v178 = vunpack.c.l.s4 1966171168
  %v179 = vunpack.c.0.s8 %v178
  %v180 = vlaneseq
  %v181 = vshrl.u32 %v180, 7
  %v182 = vsub.s32 %v179, %v181
  %v183 = vrot.slane %v155, %v182
  %v184 = vcombine.high %v162, %v162
  %v185 = vcombine.high %v176, %v176
  %v186 = vpack.c.bf16 %v115, %v115
  %v187 = vpack.c.bf16 %v118, %v118
  %v188 = vpack.c.bf16 %v123, %v123
  %v189 = vpack.c.bf16 %v126, %v126
  %v190 = vpack.c.bf16 %v131, %v131
  %v191 = vpack.c.bf16 %v134, %v134
  %193 = vrot.lane.b32.xlu0 %v186, 96
  %v194 = vpop.permute.xlu0 %193
  %vm195 = vcmask 64512
  %v197 = vsel %vm195, %v186, 0
  %v200 = vsel %vm195, %v194, 0
  %202 = vmatprep.subr.bf16.mxu0 0
  %203 = vmatpush1.bf16.xpose.msra.mxu0 0
  %204 = vmatprep.subr.bf16.mxu0 0
  %205 = vmatpush1.bf16.xpose.msra.mxu0 0
  %206 = vmatprep.subr.bf16.mxu0 0
  %207 = vmatpush1.bf16.xpose.msra.mxu0 0
  %208 = vmatprep.subr.bf16.mxu0 0
  %209 = vmatpush1.bf16.xpose.msra.mxu0 0
  %210 = vmatprep.subr.bf16.mxu0 0
  %211 = vmatpush1.bf16.xpose.msra.mxu0 0
  %212 = vmatprep.subr.bf16.mxu0 0
  %213 = vmatpush1.bf16.xpose.msra.mxu0 0
  %214 = vmatprep.subr.bf16.mxu0 0
  %215 = vmatpush1.bf16.xpose.msra.mxu0 0
  %216 = vmatprep.subr.bf16.mxu0 0
  %217 = vmatpush1.bf16.xpose.msra.mxu0 %v200
  %218 = vmatprep.subr.bf16.mxu0 0
  %219 = vmatpush2.bf16.xpose.msra.mxu0 0
  %220 = vmatprep.subr.bf16.mxu0 0
  %221 = vmatpush2.bf16.xpose.msra.mxu0 0
  %222 = vmatprep.subr.bf16.mxu0 0
  %223 = vmatpush2.bf16.xpose.msra.mxu0 0
  %224 = vmatprep.subr.bf16.mxu0 0
  %225 = vmatpush2.bf16.xpose.msra.mxu0 0
  %226 = vmatprep.subr.bf16.mxu0 0
  %227 = vmatpush2.bf16.xpose.msra.mxu0 0
  %228 = vmatprep.subr.bf16.mxu0 0
  %229 = vmatpush2.bf16.xpose.msra.mxu0 0
  %230 = vmatprep.subr.bf16.mxu0 0
  %231 = vmatpush2.bf16.xpose.msra.mxu0 0
  %232 = vmatprep.subr.bf16.mxu0 0
  %233 = vmatpush2.bf16.xpose.msra.mxu0 0
  %234 = vmatprep.mubr.bf16.mxu0 0
  %235 = vmatmul.mubr.bf16.gmra.mxu0 %v197
  %v236 = vpop.f32.mrf.mxu0
  %v237 = vadd.f32 0.0, %v236
  %v238 = vpop.f32.mrf.mxu0
  %v239 = vpop.f32.mrf.mxu0
  %v240 = vpop.f32.mrf.mxu0
  %241 = vdwg.mxu0
  %243 = vrot.lane.b32.xlu0 %v187, 96
  %v244 = vpop.permute.xlu0 %243
  %v246 = vsel %vm195, %v187, 0
  %v249 = vsel %vm195, %v244, 0
  %251 = vmatprep.subr.bf16.mxu0 0
  %252 = vmatpush1.bf16.xpose.msra.mxu0 0
  %253 = vmatprep.subr.bf16.mxu0 0
  %254 = vmatpush1.bf16.xpose.msra.mxu0 0
  %255 = vmatprep.subr.bf16.mxu0 0
  %256 = vmatpush1.bf16.xpose.msra.mxu0 0
  %257 = vmatprep.subr.bf16.mxu0 0
  %258 = vmatpush1.bf16.xpose.msra.mxu0 0
  %259 = vmatprep.subr.bf16.mxu0 0
  %260 = vmatpush1.bf16.xpose.msra.mxu0 0
  %261 = vmatprep.subr.bf16.mxu0 0
  %262 = vmatpush1.bf16.xpose.msra.mxu0 0
  %263 = vmatprep.subr.bf16.mxu0 0
  %264 = vmatpush1.bf16.xpose.msra.mxu0 0
  %265 = vmatprep.subr.bf16.mxu0 0
  %266 = vmatpush1.bf16.xpose.msra.mxu0 %v249
  %267 = vmatprep.subr.bf16.mxu0 0
  %268 = vmatpush2.bf16.xpose.msra.mxu0 0
  %269 = vmatprep.subr.bf16.mxu0 0
  %270 = vmatpush2.bf16.xpose.msra.mxu0 0
  %271 = vmatprep.subr.bf16.mxu0 0
  %272 = vmatpush2.bf16.xpose.msra.mxu0 0
  %273 = vmatprep.subr.bf16.mxu0 0
  %274 = vmatpush2.bf16.xpose.msra.mxu0 0
  %275 = vmatprep.subr.bf16.mxu0 0
  %276 = vmatpush2.bf16.xpose.msra.mxu0 0
  %277 = vmatprep.subr.bf16.mxu0 0
  %278 = vmatpush2.bf16.xpose.msra.mxu0 0
  %279 = vmatprep.subr.bf16.mxu0 0
  %280 = vmatpush2.bf16.xpose.msra.mxu0 0
  %281 = vmatprep.subr.bf16.mxu0 0
  %282 = vmatpush2.bf16.xpose.msra.mxu0 0
  %283 = vmatprep.mubr.bf16.mxu0 0
  %284 = vmatmul.mubr.bf16.gmra.mxu0 %v246
  %v285 = vpop.f32.mrf.mxu0
  %v286 = vadd.f32 0.0, %v285
  %v287 = vpop.f32.mrf.mxu0
  %v288 = vpop.f32.mrf.mxu0
  %v289 = vpop.f32.mrf.mxu0
  %290 = vdwg.mxu0
  %292 = vrot.lane.b32.xlu0 %v188, 96
  %v293 = vpop.permute.xlu0 %292
  %v295 = vsel %vm195, %v188, 0
  %v298 = vsel %vm195, %v293, 0
  %300 = vmatprep.subr.bf16.mxu0 0
  %301 = vmatpush1.bf16.xpose.msra.mxu0 0
  %302 = vmatprep.subr.bf16.mxu0 0
  %303 = vmatpush1.bf16.xpose.msra.mxu0 0
  %304 = vmatprep.subr.bf16.mxu0 0
  %305 = vmatpush1.bf16.xpose.msra.mxu0 0
  %306 = vmatprep.subr.bf16.mxu0 0
  %307 = vmatpush1.bf16.xpose.msra.mxu0 0
  %308 = vmatprep.subr.bf16.mxu0 0
  %309 = vmatpush1.bf16.xpose.msra.mxu0 0
  %310 = vmatprep.subr.bf16.mxu0 0
  %311 = vmatpush1.bf16.xpose.msra.mxu0 0
  %312 = vmatprep.subr.bf16.mxu0 0
  %313 = vmatpush1.bf16.xpose.msra.mxu0 0
  %314 = vmatprep.subr.bf16.mxu0 0
  %315 = vmatpush1.bf16.xpose.msra.mxu0 %v298
  %316 = vmatprep.subr.bf16.mxu0 0
  %317 = vmatpush2.bf16.xpose.msra.mxu0 0
  %318 = vmatprep.subr.bf16.mxu0 0
  %319 = vmatpush2.bf16.xpose.msra.mxu0 0
  %320 = vmatprep.subr.bf16.mxu0 0
  %321 = vmatpush2.bf16.xpose.msra.mxu0 0
  %322 = vmatprep.subr.bf16.mxu0 0
  %323 = vmatpush2.bf16.xpose.msra.mxu0 0
  %324 = vmatprep.subr.bf16.mxu0 0
  %325 = vmatpush2.bf16.xpose.msra.mxu0 0
  %326 = vmatprep.subr.bf16.mxu0 0
  %327 = vmatpush2.bf16.xpose.msra.mxu0 0
  %328 = vmatprep.subr.bf16.mxu0 0
  %329 = vmatpush2.bf16.xpose.msra.mxu0 0
  %330 = vmatprep.subr.bf16.mxu0 0
  %331 = vmatpush2.bf16.xpose.msra.mxu0 0
  %332 = vmatprep.mubr.bf16.mxu0 0
  %333 = vmatmul.mubr.bf16.gmra.mxu0 %v295
  %v334 = vpop.f32.mrf.mxu0
  %v335 = vadd.f32 0.0, %v334
  %v336 = vpop.f32.mrf.mxu0
  %v337 = vpop.f32.mrf.mxu0
  %v338 = vpop.f32.mrf.mxu0
  %339 = vdwg.mxu0
  %341 = vrot.lane.b32.xlu0 %v189, 96
  %v342 = vpop.permute.xlu0 %341
  %v344 = vsel %vm195, %v189, 0
  %v347 = vsel %vm195, %v342, 0
  %349 = vmatprep.subr.bf16.mxu0 0
  %350 = vmatpush1.bf16.xpose.msra.mxu0 0
  %351 = vmatprep.subr.bf16.mxu0 0
  %352 = vmatpush1.bf16.xpose.msra.mxu0 0
  %353 = vmatprep.subr.bf16.mxu0 0
  %354 = vmatpush1.bf16.xpose.msra.mxu0 0
  %355 = vmatprep.subr.bf16.mxu0 0
  %356 = vmatpush1.bf16.xpose.msra.mxu0 0
  %357 = vmatprep.subr.bf16.mxu0 0
  %358 = vmatpush1.bf16.xpose.msra.mxu0 0
  %359 = vmatprep.subr.bf16.mxu0 0
  %360 = vmatpush1.bf16.xpose.msra.mxu0 0
  %361 = vmatprep.subr.bf16.mxu0 0
  %362 = vmatpush1.bf16.xpose.msra.mxu0 0
  %363 = vmatprep.subr.bf16.mxu0 0
  %364 = vmatpush1.bf16.xpose.msra.mxu0 %v347
  %365 = vmatprep.subr.bf16.mxu0 0
  %366 = vmatpush2.bf16.xpose.msra.mxu0 0
  %367 = vmatprep.subr.bf16.mxu0 0
  %368 = vmatpush2.bf16.xpose.msra.mxu0 0
  %369 = vmatprep.subr.bf16.mxu0 0
  %370 = vmatpush2.bf16.xpose.msra.mxu0 0
  %371 = vmatprep.subr.bf16.mxu0 0
  %372 = vmatpush2.bf16.xpose.msra.mxu0 0
  %373 = vmatprep.subr.bf16.mxu0 0
  %374 = vmatpush2.bf16.xpose.msra.mxu0 0
  %375 = vmatprep.subr.bf16.mxu0 0
  %376 = vmatpush2.bf16.xpose.msra.mxu0 0
  %377 = vmatprep.subr.bf16.mxu0 0
  %378 = vmatpush2.bf16.xpose.msra.mxu0 0
  %379 = vmatprep.subr.bf16.mxu0 0
  %380 = vmatpush2.bf16.xpose.msra.mxu0 0
  %381 = vmatprep.mubr.bf16.mxu0 0
  %382 = vmatmul.mubr.bf16.gmra.mxu0 %v344
  %v383 = vpop.f32.mrf.mxu0
  %v384 = vadd.f32 0.0, %v383
  %v385 = vpop.f32.mrf.mxu0
  %v386 = vpop.f32.mrf.mxu0
  %v387 = vpop.f32.mrf.mxu0
  %388 = vdwg.mxu0
  %390 = vrot.lane.b32.xlu0 %v190, 96
  %v391 = vpop.permute.xlu0 %390
  %v393 = vsel %vm195, %v190, 0
  %v396 = vsel %vm195, %v391, 0
  %398 = vmatprep.subr.bf16.mxu0 0
  %399 = vmatpush1.bf16.xpose.msra.mxu0 0
  %400 = vmatprep.subr.bf16.mxu0 0
  %401 = vmatpush1.bf16.xpose.msra.mxu0 0
  %402 = vmatprep.subr.bf16.mxu0 0
  %403 = vmatpush1.bf16.xpose.msra.mxu0 0
  %404 = vmatprep.subr.bf16.mxu0 0
  %405 = vmatpush1.bf16.xpose.msra.mxu0 0
  %406 = vmatprep.subr.bf16.mxu0 0
  %407 = vmatpush1.bf16.xpose.msra.mxu0 0
  %408 = vmatprep.subr.bf16.mxu0 0
  %409 = vmatpush1.bf16.xpose.msra.mxu0 0
  %410 = vmatprep.subr.bf16.mxu0 0
  %411 = vmatpush1.bf16.xpose.msra.mxu0 0
  %412 = vmatprep.subr.bf16.mxu0 0
  %413 = vmatpush1.bf16.xpose.msra.mxu0 %v396
  %414 = vmatprep.subr.bf16.mxu0 0
  %415 = vmatpush2.bf16.xpose.msra.mxu0 0
  %416 = vmatprep.subr.bf16.mxu0 0
  %417 = vmatpush2.bf16.xpose.msra.mxu0 0
  %418 = vmatprep.subr.bf16.mxu0 0
  %419 = vmatpush2.bf16.xpose.msra.mxu0 0
  %420 = vmatprep.subr.bf16.mxu0 0
  %421 = vmatpush2.bf16.xpose.msra.mxu0 0
  %422 = vmatprep.subr.bf16.mxu0 0
  %423 = vmatpush2.bf16.xpose.msra.mxu0 0
  %424 = vmatprep.subr.bf16.mxu0 0
  %425 = vmatpush2.bf16.xpose.msra.mxu0 0
  %426 = vmatprep.subr.bf16.mxu0 0
  %427 = vmatpush2.bf16.xpose.msra.mxu0 0
  %428 = vmatprep.subr.bf16.mxu0 0
  %429 = vmatpush2.bf16.xpose.msra.mxu0 0
  %430 = vmatprep.mubr.bf16.mxu0 0
  %431 = vmatmul.mubr.bf16.gmra.mxu0 %v393
  %v432 = vpop.f32.mrf.mxu0
  %v433 = vadd.f32 0.0, %v432
  %v434 = vpop.f32.mrf.mxu0
  %v435 = vpop.f32.mrf.mxu0
  %v436 = vpop.f32.mrf.mxu0
  %437 = vdwg.mxu0
  %439 = vrot.lane.b32.xlu0 %v191, 96
  %v440 = vpop.permute.xlu0 %439
  %v442 = vsel %vm195, %v191, 0
  %v445 = vsel %vm195, %v440, 0
  %447 = vmatprep.subr.bf16.mxu0 0
  %448 = vmatpush1.bf16.xpose.msra.mxu0 0
  %449 = vmatprep.subr.bf16.mxu0 0
  %450 = vmatpush1.bf16.xpose.msra.mxu0 0
  %451 = vmatprep.subr.bf16.mxu0 0
  %452 = vmatpush1.bf16.xpose.msra.mxu0 0
  %453 = vmatprep.subr.bf16.mxu0 0
  %454 = vmatpush1.bf16.xpose.msra.mxu0 0
  %455 = vmatprep.subr.bf16.mxu0 0
  %456 = vmatpush1.bf16.xpose.msra.mxu0 0
  %457 = vmatprep.subr.bf16.mxu0 0
  %458 = vmatpush1.bf16.xpose.msra.mxu0 0
  %459 = vmatprep.subr.bf16.mxu0 0
  %460 = vmatpush1.bf16.xpose.msra.mxu0 0
  %461 = vmatprep.subr.bf16.mxu0 0
  %462 = vmatpush1.bf16.xpose.msra.mxu0 %v445
  %463 = vmatprep.subr.bf16.mxu0 0
  %464 = vmatpush2.bf16.xpose.msra.mxu0 0
  %465 = vmatprep.subr.bf16.mxu0 0
  %466 = vmatpush2.bf16.xpose.msra.mxu0 0
  %467 = vmatprep.subr.bf16.mxu0 0
  %468 = vmatpush2.bf16.xpose.msra.mxu0 0
  %469 = vmatprep.subr.bf16.mxu0 0
  %470 = vmatpush2.bf16.xpose.msra.mxu0 0
  %471 = vmatprep.subr.bf16.mxu0 0
  %472 = vmatpush2.bf16.xpose.msra.mxu0 0
  %473 = vmatprep.subr.bf16.mxu0 0
  %474 = vmatpush2.bf16.xpose.msra.mxu0 0
  %475 = vmatprep.subr.bf16.mxu0 0
  %476 = vmatpush2.bf16.xpose.msra.mxu0 0
  %477 = vmatprep.subr.bf16.mxu0 0
  %478 = vmatpush2.bf16.xpose.msra.mxu0 0
  %479 = vmatprep.mubr.bf16.mxu0 0
  %480 = vmatmul.mubr.bf16.gmra.mxu0 %v442
  %v481 = vpop.f32.mrf.mxu0
  %v482 = vadd.f32 0.0, %v481
  %v483 = vpop.f32.mrf.mxu0
  %v484 = vpop.f32.mrf.mxu0
  %v485 = vpop.f32.mrf.mxu0
  %486 = vdwg.mxu0
  %v487 = vmul.f32 %v237, 0.35355338
  %v488 = vmul.f32 %v286, 0.35355338
  %v489 = vmul.f32 %v335, 0.35355338
  %v490 = vmul.f32 %v384, 0.35355338
  %v491 = vmul.f32 %v433, 0.35355338
  %v492 = vmul.f32 %v482, 0.35355338
  %v493 = vlaneseq
  %v494 = vshrl.u32 %v493, 7
  %v495 = vsub.s32 0, %v494
  %v496 = vrot.slane %v162, %v495
  %v497 = vlaneseq
  %v498 = vshrl.u32 %v497, 7
  %v499 = vsub.s32 0, %v498
  %v500 = vrot.slane %v176, %v499
  %v501 = vlaneseq
  %v502 = vshrl.u32 %v501, 7
  %v503 = vsub.s32 0, %v502
  %v504 = vrot.slane %v184, %v503
  %v505 = vlaneseq
  %v506 = vshrl.u32 %v505, 7
  %v507 = vsub.s32 0, %v506
  %v508 = vrot.slane %v185, %v507
  %v509 = vlaneseq
  %v510 = vshrl.u32 %v509, 7
  %v511 = vsub.s32 0, %v510
  %v512 = vrot.slane %v169, %v511
  %v513 = vlaneseq
  %v514 = vshrl.u32 %v513, 7
  %v515 = vsub.s32 0, %v514
  %v516 = vrot.slane %v183, %v515
  %v523 = vadd.f32 %v487, %v496
  %v524 = vadd.f32 %v488, %v500
  %v525 = vadd.f32 %v489, %v504
  %v526 = vadd.f32 %v490, %v508
  %v527 = vadd.f32 %v491, %v512
  %v528 = vadd.f32 %v492, %v516
  %v529 = vsel %vm195, %v523, -inf
  %530 = vmax.xlane.f32.xlu0 %v529
  %v531 = vpop.xlane.xlu0 %530
  %v532 = vsel %vm195, %v524, -inf
  %533 = vmax.xlane.f32.xlu0 %v532
  %v534 = vpop.xlane.xlu0 %533
  %v535 = vsel %vm195, %v525, -inf
  %536 = vmax.xlane.f32.xlu0 %v535
  %v537 = vpop.xlane.xlu0 %536
  %v538 = vsel %vm195, %v526, -inf
  %539 = vmax.xlane.f32.xlu0 %v538
  %v540 = vpop.xlane.xlu0 %539
  %v541 = vsel %vm195, %v527, -inf
  %542 = vmax.xlane.f32.xlu0 %v541
  %v543 = vpop.xlane.xlu0 %542
  %v544 = vsel %vm195, %v528, -inf
  %545 = vmax.xlane.f32.xlu0 %v544
  %v546 = vpop.xlane.xlu0 %545
  %v547 = vsub.f32 %v523, %v531
  %v548 = vsub.f32 %v524, %v534
  %v549 = vsub.f32 %v525, %v537
  %v550 = vsub.f32 %v526, %v540
  %v551 = vsub.f32 %v527, %v543
  %v552 = vsub.f32 %v528, %v546
  %v553 = vmul.f32 %v547, 1.442695
  %v554 = vpow.pop %v553
  %v555 = vmul.f32 %v548, 1.442695
  %v556 = vpow.pop %v555
  %v557 = vmul.f32 %v549, 1.442695
  %v558 = vpow.pop %v557
  %v559 = vmul.f32 %v550, 1.442695
  %v560 = vpow.pop %v559
  %v561 = vmul.f32 %v551, 1.442695
  %v562 = vpow.pop %v561
  %v563 = vmul.f32 %v552, 1.442695
  %v564 = vpow.pop %v563
  %v565 = vsel %vm195, %v554, 0.0
  %566 = vadd.xlane.f32.xlu0 %v565
  %v567 = vpop.xlane.xlu0 %566
  %v568 = vsel %vm195, %v556, 0.0
  %569 = vadd.xlane.f32.xlu0 %v568
  %v570 = vpop.xlane.xlu0 %569
  %v571 = vsel %vm195, %v558, 0.0
  %572 = vadd.xlane.f32.xlu0 %v571
  %v573 = vpop.xlane.xlu0 %572
  %v574 = vsel %vm195, %v560, 0.0
  %575 = vadd.xlane.f32.xlu0 %v574
  %v576 = vpop.xlane.xlu0 %575
  %v577 = vsel %vm195, %v562, 0.0
  %578 = vadd.xlane.f32.xlu0 %v577
  %v579 = vpop.xlane.xlu0 %578
  %v580 = vsel %vm195, %v564, 0.0
  %581 = vadd.xlane.f32.xlu0 %v580
  %v582 = vpop.xlane.xlu0 %581
  %v583 = vrcp.pop %v567
  %v584 = vrcp.pop %v570
  %v585 = vrcp.pop %v573
  %v586 = vrcp.pop %v576
  %v587 = vrcp.pop %v579
  %v588 = vrcp.pop %v582
  %v589 = vmul.f32 %v554, %v583
  %v590 = vmul.f32 %v556, %v584
  %v591 = vmul.f32 %v558, %v585
  %v592 = vmul.f32 %v560, %v586
  %v593 = vmul.f32 %v562, %v587
  %v594 = vmul.f32 %v564, %v588
  %v595 = vpack.c.bf16 %v589, %v589
  %v596 = vpack.c.bf16 %v590, %v590
  %v597 = vpack.c.bf16 %v591, %v591
  %v598 = vpack.c.bf16 %v592, %v592
  %v599 = vpack.c.bf16 %v593, %v593
  %v600 = vpack.c.bf16 %v594, %v594
  %601 = vrot.lane.b32.xlu0 %v186, 64
  %v602 = vpop.permute.xlu0 %601
  %v604 = vsel %vm195, %v595, 0
  %vm606 = vcmask 1043456
  %v608 = vsel %vm606, %v602, 0
  %610 = vmatprep.subr.bf16.mxu0 0
  %611 = vmatpush1.bf16.msra.mxu0 0
  %612 = vmatprep.subr.bf16.mxu0 0
  %613 = vmatpush1.bf16.msra.mxu0 0
  %614 = vmatprep.subr.bf16.mxu0 0
  %615 = vmatpush1.bf16.msra.mxu0 0
  %616 = vmatprep.subr.bf16.mxu0 0
  %617 = vmatpush1.bf16.msra.mxu0 0
  %618 = vmatprep.subr.bf16.mxu0 0
  %619 = vmatpush1.bf16.msra.mxu0 0
  %620 = vmatprep.subr.bf16.mxu0 0
  %621 = vmatpush1.bf16.msra.mxu0 0
  %622 = vmatprep.subr.bf16.mxu0 0
  %623 = vmatpush1.bf16.msra.mxu0 0
  %624 = vmatprep.subr.bf16.mxu0 0
  %625 = vmatpush1.bf16.msra.mxu0 %v608
  %626 = vmatprep.subr.bf16.mxu0 0
  %627 = vmatpush2.bf16.msra.mxu0 0
  %628 = vmatprep.subr.bf16.mxu0 0
  %629 = vmatpush2.bf16.msra.mxu0 0
  %630 = vmatprep.subr.bf16.mxu0 0
  %631 = vmatpush2.bf16.msra.mxu0 0
  %632 = vmatprep.subr.bf16.mxu0 0
  %633 = vmatpush2.bf16.msra.mxu0 0
  %634 = vmatprep.subr.bf16.mxu0 0
  %635 = vmatpush2.bf16.msra.mxu0 0
  %636 = vmatprep.subr.bf16.mxu0 0
  %637 = vmatpush2.bf16.msra.mxu0 0
  %638 = vmatprep.subr.bf16.mxu0 0
  %639 = vmatpush2.bf16.msra.mxu0 0
  %640 = vmatprep.subr.bf16.mxu0 0
  %641 = vmatpush2.bf16.msra.mxu0 0
  %642 = vmatprep.mubr.bf16.mxu0 0
  %643 = vmatmul.mubr.bf16.gmra.mxu0 %v604
  %v644 = vpop.f32.mrf.mxu0
  %v645 = vadd.f32 0.0, %v644
  %v646 = vpop.f32.mrf.mxu0
  %v647 = vpop.f32.mrf.mxu0
  %v648 = vpop.f32.mrf.mxu0
  %649 = vdwg.mxu0
  %650 = vrot.lane.b32.xlu0 %v187, 64
  %v651 = vpop.permute.xlu0 %650
  %v653 = vsel %vm195, %v596, 0
  %v656 = vsel %vm606, %v651, 0
  %658 = vmatprep.subr.bf16.mxu0 0
  %659 = vmatpush1.bf16.msra.mxu0 0
  %660 = vmatprep.subr.bf16.mxu0 0
  %661 = vmatpush1.bf16.msra.mxu0 0
  %662 = vmatprep.subr.bf16.mxu0 0
  %663 = vmatpush1.bf16.msra.mxu0 0
  %664 = vmatprep.subr.bf16.mxu0 0
  %665 = vmatpush1.bf16.msra.mxu0 0
  %666 = vmatprep.subr.bf16.mxu0 0
  %667 = vmatpush1.bf16.msra.mxu0 0
  %668 = vmatprep.subr.bf16.mxu0 0
  %669 = vmatpush1.bf16.msra.mxu0 0
  %670 = vmatprep.subr.bf16.mxu0 0
  %671 = vmatpush1.bf16.msra.mxu0 0
  %672 = vmatprep.subr.bf16.mxu0 0
  %673 = vmatpush1.bf16.msra.mxu0 %v656
  %674 = vmatprep.subr.bf16.mxu0 0
  %675 = vmatpush2.bf16.msra.mxu0 0
  %676 = vmatprep.subr.bf16.mxu0 0
  %677 = vmatpush2.bf16.msra.mxu0 0
  %678 = vmatprep.subr.bf16.mxu0 0
  %679 = vmatpush2.bf16.msra.mxu0 0
  %680 = vmatprep.subr.bf16.mxu0 0
  %681 = vmatpush2.bf16.msra.mxu0 0
  %682 = vmatprep.subr.bf16.mxu0 0
  %683 = vmatpush2.bf16.msra.mxu0 0
  %684 = vmatprep.subr.bf16.mxu0 0
  %685 = vmatpush2.bf16.msra.mxu0 0
  %686 = vmatprep.subr.bf16.mxu0 0
  %687 = vmatpush2.bf16.msra.mxu0 0
  %688 = vmatprep.subr.bf16.mxu0 0
  %689 = vmatpush2.bf16.msra.mxu0 0
  %690 = vmatprep.mubr.bf16.mxu0 0
  %691 = vmatmul.mubr.bf16.gmra.mxu0 %v653
  %v692 = vpop.f32.mrf.mxu0
  %v693 = vadd.f32 0.0, %v692
  %v694 = vpop.f32.mrf.mxu0
  %v695 = vpop.f32.mrf.mxu0
  %v696 = vpop.f32.mrf.mxu0
  %697 = vdwg.mxu0
  %698 = vrot.lane.b32.xlu0 %v188, 64
  %v699 = vpop.permute.xlu0 %698
  %v701 = vsel %vm195, %v597, 0
  %v704 = vsel %vm606, %v699, 0
  %706 = vmatprep.subr.bf16.mxu0 0
  %707 = vmatpush1.bf16.msra.mxu0 0
  %708 = vmatprep.subr.bf16.mxu0 0
  %709 = vmatpush1.bf16.msra.mxu0 0
  %710 = vmatprep.subr.bf16.mxu0 0
  %711 = vmatpush1.bf16.msra.mxu0 0
  %712 = vmatprep.subr.bf16.mxu0 0
  %713 = vmatpush1.bf16.msra.mxu0 0
  %714 = vmatprep.subr.bf16.mxu0 0
  %715 = vmatpush1.bf16.msra.mxu0 0
  %716 = vmatprep.subr.bf16.mxu0 0
  %717 = vmatpush1.bf16.msra.mxu0 0
  %718 = vmatprep.subr.bf16.mxu0 0
  %719 = vmatpush1.bf16.msra.mxu0 0
  %720 = vmatprep.subr.bf16.mxu0 0
  %721 = vmatpush1.bf16.msra.mxu0 %v704
  %722 = vmatprep.subr.bf16.mxu0 0
  %723 = vmatpush2.bf16.msra.mxu0 0
  %724 = vmatprep.subr.bf16.mxu0 0
  %725 = vmatpush2.bf16.msra.mxu0 0
  %726 = vmatprep.subr.bf16.mxu0 0
  %727 = vmatpush2.bf16.msra.mxu0 0
  %728 = vmatprep.subr.bf16.mxu0 0
  %729 = vmatpush2.bf16.msra.mxu0 0
  %730 = vmatprep.subr.bf16.mxu0 0
  %731 = vmatpush2.bf16.msra.mxu0 0
  %732 = vmatprep.subr.bf16.mxu0 0
  %733 = vmatpush2.bf16.msra.mxu0 0
  %734 = vmatprep.subr.bf16.mxu0 0
  %735 = vmatpush2.bf16.msra.mxu0 0
  %736 = vmatprep.subr.bf16.mxu0 0
  %737 = vmatpush2.bf16.msra.mxu0 0
  %738 = vmatprep.mubr.bf16.mxu0 0
  %739 = vmatmul.mubr.bf16.gmra.mxu0 %v701
  %v740 = vpop.f32.mrf.mxu0
  %v741 = vadd.f32 0.0, %v740
  %v742 = vpop.f32.mrf.mxu0
  %v743 = vpop.f32.mrf.mxu0
  %v744 = vpop.f32.mrf.mxu0
  %745 = vdwg.mxu0
  %746 = vrot.lane.b32.xlu0 %v189, 64
  %v747 = vpop.permute.xlu0 %746
  %v749 = vsel %vm195, %v598, 0
  %v752 = vsel %vm606, %v747, 0
  %754 = vmatprep.subr.bf16.mxu0 0
  %755 = vmatpush1.bf16.msra.mxu0 0
  %756 = vmatprep.subr.bf16.mxu0 0
  %757 = vmatpush1.bf16.msra.mxu0 0
  %758 = vmatprep.subr.bf16.mxu0 0
  %759 = vmatpush1.bf16.msra.mxu0 0
  %760 = vmatprep.subr.bf16.mxu0 0
  %761 = vmatpush1.bf16.msra.mxu0 0
  %762 = vmatprep.subr.bf16.mxu0 0
  %763 = vmatpush1.bf16.msra.mxu0 0
  %764 = vmatprep.subr.bf16.mxu0 0
  %765 = vmatpush1.bf16.msra.mxu0 0
  %766 = vmatprep.subr.bf16.mxu0 0
  %767 = vmatpush1.bf16.msra.mxu0 0
  %768 = vmatprep.subr.bf16.mxu0 0
  %769 = vmatpush1.bf16.msra.mxu0 %v752
  %770 = vmatprep.subr.bf16.mxu0 0
  %771 = vmatpush2.bf16.msra.mxu0 0
  %772 = vmatprep.subr.bf16.mxu0 0
  %773 = vmatpush2.bf16.msra.mxu0 0
  %774 = vmatprep.subr.bf16.mxu0 0
  %775 = vmatpush2.bf16.msra.mxu0 0
  %776 = vmatprep.subr.bf16.mxu0 0
  %777 = vmatpush2.bf16.msra.mxu0 0
  %778 = vmatprep.subr.bf16.mxu0 0
  %779 = vmatpush2.bf16.msra.mxu0 0
  %780 = vmatprep.subr.bf16.mxu0 0
  %781 = vmatpush2.bf16.msra.mxu0 0
  %782 = vmatprep.subr.bf16.mxu0 0
  %783 = vmatpush2.bf16.msra.mxu0 0
  %784 = vmatprep.subr.bf16.mxu0 0
  %785 = vmatpush2.bf16.msra.mxu0 0
  %786 = vmatprep.mubr.bf16.mxu0 0
  %787 = vmatmul.mubr.bf16.gmra.mxu0 %v749
  %v788 = vpop.f32.mrf.mxu0
  %v789 = vadd.f32 0.0, %v788
  %v790 = vpop.f32.mrf.mxu0
  %v791 = vpop.f32.mrf.mxu0
  %v792 = vpop.f32.mrf.mxu0
  %793 = vdwg.mxu0
  %794 = vrot.lane.b32.xlu0 %v190, 64
  %v795 = vpop.permute.xlu0 %794
  %v797 = vsel %vm195, %v599, 0
  %v800 = vsel %vm606, %v795, 0
  %802 = vmatprep.subr.bf16.mxu0 0
  %803 = vmatpush1.bf16.msra.mxu0 0
  %804 = vmatprep.subr.bf16.mxu0 0
  %805 = vmatpush1.bf16.msra.mxu0 0
  %806 = vmatprep.subr.bf16.mxu0 0
  %807 = vmatpush1.bf16.msra.mxu0 0
  %808 = vmatprep.subr.bf16.mxu0 0
  %809 = vmatpush1.bf16.msra.mxu0 0
  %810 = vmatprep.subr.bf16.mxu0 0
  %811 = vmatpush1.bf16.msra.mxu0 0
  %812 = vmatprep.subr.bf16.mxu0 0
  %813 = vmatpush1.bf16.msra.mxu0 0
  %814 = vmatprep.subr.bf16.mxu0 0
  %815 = vmatpush1.bf16.msra.mxu0 0
  %816 = vmatprep.subr.bf16.mxu0 0
  %817 = vmatpush1.bf16.msra.mxu0 %v800
  %818 = vmatprep.subr.bf16.mxu0 0
  %819 = vmatpush2.bf16.msra.mxu0 0
  %820 = vmatprep.subr.bf16.mxu0 0
  %821 = vmatpush2.bf16.msra.mxu0 0
  %822 = vmatprep.subr.bf16.mxu0 0
  %823 = vmatpush2.bf16.msra.mxu0 0
  %824 = vmatprep.subr.bf16.mxu0 0
  %825 = vmatpush2.bf16.msra.mxu0 0
  %826 = vmatprep.subr.bf16.mxu0 0
  %827 = vmatpush2.bf16.msra.mxu0 0
  %828 = vmatprep.subr.bf16.mxu0 0
  %829 = vmatpush2.bf16.msra.mxu0 0
  %830 = vmatprep.subr.bf16.mxu0 0
  %831 = vmatpush2.bf16.msra.mxu0 0
  %832 = vmatprep.subr.bf16.mxu0 0
  %833 = vmatpush2.bf16.msra.mxu0 0
  %834 = vmatprep.mubr.bf16.mxu0 0
  %835 = vmatmul.mubr.bf16.gmra.mxu0 %v797
  %v836 = vpop.f32.mrf.mxu0
  %v837 = vadd.f32 0.0, %v836
  %v838 = vpop.f32.mrf.mxu0
  %v839 = vpop.f32.mrf.mxu0
  %v840 = vpop.f32.mrf.mxu0
  %841 = vdwg.mxu0
  %842 = vrot.lane.b32.xlu0 %v191, 64
  %v843 = vpop.permute.xlu0 %842
  %v845 = vsel %vm195, %v600, 0
  %v848 = vsel %vm606, %v843, 0
  %850 = vmatprep.subr.bf16.mxu0 0
  %851 = vmatpush1.bf16.msra.mxu0 0
  %852 = vmatprep.subr.bf16.mxu0 0
  %853 = vmatpush1.bf16.msra.mxu0 0
  %854 = vmatprep.subr.bf16.mxu0 0
  %855 = vmatpush1.bf16.msra.mxu0 0
  %856 = vmatprep.subr.bf16.mxu0 0
  %857 = vmatpush1.bf16.msra.mxu0 0
  %858 = vmatprep.subr.bf16.mxu0 0
  %859 = vmatpush1.bf16.msra.mxu0 0
  %860 = vmatprep.subr.bf16.mxu0 0
  %861 = vmatpush1.bf16.msra.mxu0 0
  %862 = vmatprep.subr.bf16.mxu0 0
  %863 = vmatpush1.bf16.msra.mxu0 0
  %864 = vmatprep.subr.bf16.mxu0 0
  %865 = vmatpush1.bf16.msra.mxu0 %v848
  %866 = vmatprep.subr.bf16.mxu0 0
  %867 = vmatpush2.bf16.msra.mxu0 0
  %868 = vmatprep.subr.bf16.mxu0 0
  %869 = vmatpush2.bf16.msra.mxu0 0
  %870 = vmatprep.subr.bf16.mxu0 0
  %871 = vmatpush2.bf16.msra.mxu0 0
  %872 = vmatprep.subr.bf16.mxu0 0
  %873 = vmatpush2.bf16.msra.mxu0 0
  %874 = vmatprep.subr.bf16.mxu0 0
  %875 = vmatpush2.bf16.msra.mxu0 0
  %876 = vmatprep.subr.bf16.mxu0 0
  %877 = vmatpush2.bf16.msra.mxu0 0
  %878 = vmatprep.subr.bf16.mxu0 0
  %879 = vmatpush2.bf16.msra.mxu0 0
  %880 = vmatprep.subr.bf16.mxu0 0
  %881 = vmatpush2.bf16.msra.mxu0 0
  %882 = vmatprep.mubr.bf16.mxu0 0
  %883 = vmatmul.mubr.bf16.gmra.mxu0 %v845
  %v884 = vpop.f32.mrf.mxu0
  %v885 = vadd.f32 0.0, %v884
  %v886 = vpop.f32.mrf.mxu0
  %v887 = vpop.f32.mrf.mxu0
  %v888 = vpop.f32.mrf.mxu0
  %889 = vdwg.mxu0
  %890 = vrot.lane.b32.xlu0 %v186, 120
  %v891 = vpop.permute.xlu0 %890
  %892 = vrot.lane.b32.xlu0 %v186, 88
  %v893 = vpop.permute.xlu0 %892
  %v895 = vsel %vm195, %v891, 0
  %v898 = vsel %vm195, %v893, 0
  %900 = vmatprep.subr.bf16.mxu0 0
  %901 = vmatpush1.bf16.xpose.msra.mxu0 0
  %902 = vmatprep.subr.bf16.mxu0 0
  %903 = vmatpush1.bf16.xpose.msra.mxu0 0
  %904 = vmatprep.subr.bf16.mxu0 0
  %905 = vmatpush1.bf16.xpose.msra.mxu0 0
  %906 = vmatprep.subr.bf16.mxu0 0
  %907 = vmatpush1.bf16.xpose.msra.mxu0 0
  %908 = vmatprep.subr.bf16.mxu0 0
  %909 = vmatpush1.bf16.xpose.msra.mxu0 0
  %910 = vmatprep.subr.bf16.mxu0 0
  %911 = vmatpush1.bf16.xpose.msra.mxu0 0
  %912 = vmatprep.subr.bf16.mxu0 0
  %913 = vmatpush1.bf16.xpose.msra.mxu0 0
  %914 = vmatprep.subr.bf16.mxu0 0
  %915 = vmatpush1.bf16.xpose.msra.mxu0 %v898
  %916 = vmatprep.subr.bf16.mxu0 0
  %917 = vmatpush2.bf16.xpose.msra.mxu0 0
  %918 = vmatprep.subr.bf16.mxu0 0
  %919 = vmatpush2.bf16.xpose.msra.mxu0 0
  %920 = vmatprep.subr.bf16.mxu0 0
  %921 = vmatpush2.bf16.xpose.msra.mxu0 0
  %922 = vmatprep.subr.bf16.mxu0 0
  %923 = vmatpush2.bf16.xpose.msra.mxu0 0
  %924 = vmatprep.subr.bf16.mxu0 0
  %925 = vmatpush2.bf16.xpose.msra.mxu0 0
  %926 = vmatprep.subr.bf16.mxu0 0
  %927 = vmatpush2.bf16.xpose.msra.mxu0 0
  %928 = vmatprep.subr.bf16.mxu0 0
  %929 = vmatpush2.bf16.xpose.msra.mxu0 0
  %930 = vmatprep.subr.bf16.mxu0 0
  %931 = vmatpush2.bf16.xpose.msra.mxu0 0
  %932 = vmatprep.mubr.bf16.mxu0 0
  %933 = vmatmul.mubr.bf16.gmra.mxu0 %v895
  %v934 = vpop.f32.mrf.mxu0
  %v935 = vadd.f32 0.0, %v934
  %v936 = vpop.f32.mrf.mxu0
  %v937 = vpop.f32.mrf.mxu0
  %v938 = vpop.f32.mrf.mxu0
  %939 = vdwg.mxu0
  %940 = vrot.lane.b32.xlu0 %v187, 120
  %v941 = vpop.permute.xlu0 %940
  %942 = vrot.lane.b32.xlu0 %v187, 88
  %v943 = vpop.permute.xlu0 %942
  %v945 = vsel %vm195, %v941, 0
  %v948 = vsel %vm195, %v943, 0
  %950 = vmatprep.subr.bf16.mxu0 0
  %951 = vmatpush1.bf16.xpose.msra.mxu0 0
  %952 = vmatprep.subr.bf16.mxu0 0
  %953 = vmatpush1.bf16.xpose.msra.mxu0 0
  %954 = vmatprep.subr.bf16.mxu0 0
  %955 = vmatpush1.bf16.xpose.msra.mxu0 0
  %956 = vmatprep.subr.bf16.mxu0 0
  %957 = vmatpush1.bf16.xpose.msra.mxu0 0
  %958 = vmatprep.subr.bf16.mxu0 0
  %959 = vmatpush1.bf16.xpose.msra.mxu0 0
  %960 = vmatprep.subr.bf16.mxu0 0
  %961 = vmatpush1.bf16.xpose.msra.mxu0 0
  %962 = vmatprep.subr.bf16.mxu0 0
  %963 = vmatpush1.bf16.xpose.msra.mxu0 0
  %964 = vmatprep.subr.bf16.mxu0 0
  %965 = vmatpush1.bf16.xpose.msra.mxu0 %v948
  %966 = vmatprep.subr.bf16.mxu0 0
  %967 = vmatpush2.bf16.xpose.msra.mxu0 0
  %968 = vmatprep.subr.bf16.mxu0 0
  %969 = vmatpush2.bf16.xpose.msra.mxu0 0
  %970 = vmatprep.subr.bf16.mxu0 0
  %971 = vmatpush2.bf16.xpose.msra.mxu0 0
  %972 = vmatprep.subr.bf16.mxu0 0
  %973 = vmatpush2.bf16.xpose.msra.mxu0 0
  %974 = vmatprep.subr.bf16.mxu0 0
  %975 = vmatpush2.bf16.xpose.msra.mxu0 0
  %976 = vmatprep.subr.bf16.mxu0 0
  %977 = vmatpush2.bf16.xpose.msra.mxu0 0
  %978 = vmatprep.subr.bf16.mxu0 0
  %979 = vmatpush2.bf16.xpose.msra.mxu0 0
  %980 = vmatprep.subr.bf16.mxu0 0
  %981 = vmatpush2.bf16.xpose.msra.mxu0 0
  %982 = vmatprep.mubr.bf16.mxu0 0
  %983 = vmatmul.mubr.bf16.gmra.mxu0 %v945
  %v984 = vpop.f32.mrf.mxu0
  %v985 = vadd.f32 0.0, %v984
  %v986 = vpop.f32.mrf.mxu0
  %v987 = vpop.f32.mrf.mxu0
  %v988 = vpop.f32.mrf.mxu0
  %989 = vdwg.mxu0
  %990 = vrot.lane.b32.xlu0 %v188, 120
  %v991 = vpop.permute.xlu0 %990
  %992 = vrot.lane.b32.xlu0 %v188, 88
  %v993 = vpop.permute.xlu0 %992
  %v995 = vsel %vm195, %v991, 0
  %v998 = vsel %vm195, %v993, 0
  %1000 = vmatprep.subr.bf16.mxu0 0
  %1001 = vmatpush1.bf16.xpose.msra.mxu0 0
  %1002 = vmatprep.subr.bf16.mxu0 0
  %1003 = vmatpush1.bf16.xpose.msra.mxu0 0
  %1004 = vmatprep.subr.bf16.mxu0 0
  %1005 = vmatpush1.bf16.xpose.msra.mxu0 0
  %1006 = vmatprep.subr.bf16.mxu0 0
  %1007 = vmatpush1.bf16.xpose.msra.mxu0 0
  %1008 = vmatprep.subr.bf16.mxu0 0
  %1009 = vmatpush1.bf16.xpose.msra.mxu0 0
  %1010 = vmatprep.subr.bf16.mxu0 0
  %1011 = vmatpush1.bf16.xpose.msra.mxu0 0
  %1012 = vmatprep.subr.bf16.mxu0 0
  %1013 = vmatpush1.bf16.xpose.msra.mxu0 0
  %1014 = vmatprep.subr.bf16.mxu0 0
  %1015 = vmatpush1.bf16.xpose.msra.mxu0 %v998
  %1016 = vmatprep.subr.bf16.mxu0 0
  %1017 = vmatpush2.bf16.xpose.msra.mxu0 0
  %1018 = vmatprep.subr.bf16.mxu0 0
  %1019 = vmatpush2.bf16.xpose.msra.mxu0 0
  %1020 = vmatprep.subr.bf16.mxu0 0
  %1021 = vmatpush2.bf16.xpose.msra.mxu0 0
  %1022 = vmatprep.subr.bf16.mxu0 0
  %1023 = vmatpush2.bf16.xpose.msra.mxu0 0
  %1024 = vmatprep.subr.bf16.mxu0 0
  %1025 = vmatpush2.bf16.xpose.msra.mxu0 0
  %1026 = vmatprep.subr.bf16.mxu0 0
  %1027 = vmatpush2.bf16.xpose.msra.mxu0 0
  %1028 = vmatprep.subr.bf16.mxu0 0
  %1029 = vmatpush2.bf16.xpose.msra.mxu0 0
  %1030 = vmatprep.subr.bf16.mxu0 0
  %1031 = vmatpush2.bf16.xpose.msra.mxu0 0
  %1032 = vmatprep.mubr.bf16.mxu0 0
  %1033 = vmatmul.mubr.bf16.gmra.mxu0 %v995
  %v1034 = vpop.f32.mrf.mxu0
  %v1035 = vadd.f32 0.0, %v1034
  %v1036 = vpop.f32.mrf.mxu0
  %v1037 = vpop.f32.mrf.mxu0
  %v1038 = vpop.f32.mrf.mxu0
  %1039 = vdwg.mxu0
  %1040 = vrot.lane.b32.xlu0 %v189, 120
  %v1041 = vpop.permute.xlu0 %1040
  %1042 = vrot.lane.b32.xlu0 %v189, 88
  %v1043 = vpop.permute.xlu0 %1042
  %v1045 = vsel %vm195, %v1041, 0
  %v1048 = vsel %vm195, %v1043, 0
  %1050 = vmatprep.subr.bf16.mxu0 0
  %1051 = vmatpush1.bf16.xpose.msra.mxu0 0
  %1052 = vmatprep.subr.bf16.mxu0 0
  %1053 = vmatpush1.bf16.xpose.msra.mxu0 0
  %1054 = vmatprep.subr.bf16.mxu0 0
  %1055 = vmatpush1.bf16.xpose.msra.mxu0 0
  %1056 = vmatprep.subr.bf16.mxu0 0
  %1057 = vmatpush1.bf16.xpose.msra.mxu0 0
  %1058 = vmatprep.subr.bf16.mxu0 0
  %1059 = vmatpush1.bf16.xpose.msra.mxu0 0
  %1060 = vmatprep.subr.bf16.mxu0 0
  %1061 = vmatpush1.bf16.xpose.msra.mxu0 0
  %1062 = vmatprep.subr.bf16.mxu0 0
  %1063 = vmatpush1.bf16.xpose.msra.mxu0 0
  %1064 = vmatprep.subr.bf16.mxu0 0
  %1065 = vmatpush1.bf16.xpose.msra.mxu0 %v1048
  %1066 = vmatprep.subr.bf16.mxu0 0
  %1067 = vmatpush2.bf16.xpose.msra.mxu0 0
  %1068 = vmatprep.subr.bf16.mxu0 0
  %1069 = vmatpush2.bf16.xpose.msra.mxu0 0
  %1070 = vmatprep.subr.bf16.mxu0 0
  %1071 = vmatpush2.bf16.xpose.msra.mxu0 0
  %1072 = vmatprep.subr.bf16.mxu0 0
  %1073 = vmatpush2.bf16.xpose.msra.mxu0 0
  %1074 = vmatprep.subr.bf16.mxu0 0
  %1075 = vmatpush2.bf16.xpose.msra.mxu0 0
  %1076 = vmatprep.subr.bf16.mxu0 0
  %1077 = vmatpush2.bf16.xpose.msra.mxu0 0
  %1078 = vmatprep.subr.bf16.mxu0 0
  %1079 = vmatpush2.bf16.xpose.msra.mxu0 0
  %1080 = vmatprep.subr.bf16.mxu0 0
  %1081 = vmatpush2.bf16.xpose.msra.mxu0 0
  %1082 = vmatprep.mubr.bf16.mxu0 0
  %1083 = vmatmul.mubr.bf16.gmra.mxu0 %v1045
  %v1084 = vpop.f32.mrf.mxu0
  %v1085 = vadd.f32 0.0, %v1084
  %v1086 = vpop.f32.mrf.mxu0
  %v1087 = vpop.f32.mrf.mxu0
  %v1088 = vpop.f32.mrf.mxu0
  %1089 = vdwg.mxu0
  %1090 = vrot.lane.b32.xlu0 %v190, 120
  %v1091 = vpop.permute.xlu0 %1090
  %1092 = vrot.lane.b32.xlu0 %v190, 88
  %v1093 = vpop.permute.xlu0 %1092
  %v1095 = vsel %vm195, %v1091, 0
  %v1098 = vsel %vm195, %v1093, 0
  %1100 = vmatprep.subr.bf16.mxu0 0
  %1101 = vmatpush1.bf16.xpose.msra.mxu0 0
  %1102 = vmatprep.subr.bf16.mxu0 0
  %1103 = vmatpush1.bf16.xpose.msra.mxu0 0
  %1104 = vmatprep.subr.bf16.mxu0 0
  %1105 = vmatpush1.bf16.xpose.msra.mxu0 0
  %1106 = vmatprep.subr.bf16.mxu0 0
  %1107 = vmatpush1.bf16.xpose.msra.mxu0 0
  %1108 = vmatprep.subr.bf16.mxu0 0
  %1109 = vmatpush1.bf16.xpose.msra.mxu0 0
  %1110 = vmatprep.subr.bf16.mxu0 0
  %1111 = vmatpush1.bf16.xpose.msra.mxu0 0
  %1112 = vmatprep.subr.bf16.mxu0 0
  %1113 = vmatpush1.bf16.xpose.msra.mxu0 0
  %1114 = vmatprep.subr.bf16.mxu0 0
  %1115 = vmatpush1.bf16.xpose.msra.mxu0 %v1098
  %1116 = vmatprep.subr.bf16.mxu0 0
  %1117 = vmatpush2.bf16.xpose.msra.mxu0 0
  %1118 = vmatprep.subr.bf16.mxu0 0
  %1119 = vmatpush2.bf16.xpose.msra.mxu0 0
  %1120 = vmatprep.subr.bf16.mxu0 0
  %1121 = vmatpush2.bf16.xpose.msra.mxu0 0
  %1122 = vmatprep.subr.bf16.mxu0 0
  %1123 = vmatpush2.bf16.xpose.msra.mxu0 0
  %1124 = vmatprep.subr.bf16.mxu0 0
  %1125 = vmatpush2.bf16.xpose.msra.mxu0 0
  %1126 = vmatprep.subr.bf16.mxu0 0
  %1127 = vmatpush2.bf16.xpose.msra.mxu0 0
  %1128 = vmatprep.subr.bf16.mxu0 0
  %1129 = vmatpush2.bf16.xpose.msra.mxu0 0
  %1130 = vmatprep.subr.bf16.mxu0 0
  %1131 = vmatpush2.bf16.xpose.msra.mxu0 0
  %1132 = vmatprep.mubr.bf16.mxu0 0
  %1133 = vmatmul.mubr.bf16.gmra.mxu0 %v1095
  %v1134 = vpop.f32.mrf.mxu0
  %v1135 = vadd.f32 0.0, %v1134
  %v1136 = vpop.f32.mrf.mxu0
  %v1137 = vpop.f32.mrf.mxu0
  %v1138 = vpop.f32.mrf.mxu0
  %1139 = vdwg.mxu0
  %1140 = vrot.lane.b32.xlu0 %v191, 120
  %v1141 = vpop.permute.xlu0 %1140
  %1142 = vrot.lane.b32.xlu0 %v191, 88
  %v1143 = vpop.permute.xlu0 %1142
  %v1145 = vsel %vm195, %v1141, 0
  %v1148 = vsel %vm195, %v1143, 0
  %1150 = vmatprep.subr.bf16.mxu0 0
  %1151 = vmatpush1.bf16.xpose.msra.mxu0 0
  %1152 = vmatprep.subr.bf16.mxu0 0
  %1153 = vmatpush1.bf16.xpose.msra.mxu0 0
  %1154 = vmatprep.subr.bf16.mxu0 0
  %1155 = vmatpush1.bf16.xpose.msra.mxu0 0
  %1156 = vmatprep.subr.bf16.mxu0 0
  %1157 = vmatpush1.bf16.xpose.msra.mxu0 0
  %1158 = vmatprep.subr.bf16.mxu0 0
  %1159 = vmatpush1.bf16.xpose.msra.mxu0 0
  %1160 = vmatprep.subr.bf16.mxu0 0
  %1161 = vmatpush1.bf16.xpose.msra.mxu0 0
  %1162 = vmatprep.subr.bf16.mxu0 0
  %1163 = vmatpush1.bf16.xpose.msra.mxu0 0
  %1164 = vmatprep.subr.bf16.mxu0 0
  %1165 = vmatpush1.bf16.xpose.msra.mxu0 %v1148
  %1166 = vmatprep.subr.bf16.mxu0 0
  %1167 = vmatpush2.bf16.xpose.msra.mxu0 0
  %1168 = vmatprep.subr.bf16.mxu0 0
  %1169 = vmatpush2.bf16.xpose.msra.mxu0 0
  %1170 = vmatprep.subr.bf16.mxu0 0
  %1171 = vmatpush2.bf16.xpose.msra.mxu0 0
  %1172 = vmatprep.subr.bf16.mxu0 0
  %1173 = vmatpush2.bf16.xpose.msra.mxu0 0
  %1174 = vmatprep.subr.bf16.mxu0 0
  %1175 = vmatpush2.bf16.xpose.msra.mxu0 0
  %1176 = vmatprep.subr.bf16.mxu0 0
  %1177 = vmatpush2.bf16.xpose.msra.mxu0 0
  %1178 = vmatprep.subr.bf16.mxu0 0
  %1179 = vmatpush2.bf16.xpose.msra.mxu0 0
  %1180 = vmatprep.subr.bf16.mxu0 0
  %1181 = vmatpush2.bf16.xpose.msra.mxu0 0
  %1182 = vmatprep.mubr.bf16.mxu0 0
  %1183 = vmatmul.mubr.bf16.gmra.mxu0 %v1145
  %v1184 = vpop.f32.mrf.mxu0
  %v1185 = vadd.f32 0.0, %v1184
  %v1186 = vpop.f32.mrf.mxu0
  %v1187 = vpop.f32.mrf.mxu0
  %v1188 = vpop.f32.mrf.mxu0
  %1189 = vdwg.mxu0
  %v1190 = vmul.f32 %v935, 0.35355338
  %v1191 = vmul.f32 %v985, 0.35355338
  %v1192 = vmul.f32 %v1035, 0.35355338
  %v1193 = vmul.f32 %v1085, 0.35355338
  %v1194 = vmul.f32 %v1135, 0.35355338
  %v1195 = vmul.f32 %v1185, 0.35355338
  %v1196 = vadd.f32 %v1190, %v496
  %v1197 = vadd.f32 %v1191, %v500
  %v1198 = vadd.f32 %v1192, %v504
  %v1199 = vadd.f32 %v1193, %v508
  %v1200 = vadd.f32 %v1194, %v512
  %v1201 = vadd.f32 %v1195, %v516
  %v1202 = vsel %vm195, %v1196, -inf
  %1203 = vmax.xlane.f32.xlu0 %v1202
  %v1204 = vpop.xlane.xlu0 %1203
  %v1205 = vsel %vm195, %v1197, -inf
  %1206 = vmax.xlane.f32.xlu0 %v1205
  %v1207 = vpop.xlane.xlu0 %1206
  %v1208 = vsel %vm195, %v1198, -inf
  %1209 = vmax.xlane.f32.xlu0 %v1208
  %v1210 = vpop.xlane.xlu0 %1209
  %v1211 = vsel %vm195, %v1199, -inf
  %1212 = vmax.xlane.f32.xlu0 %v1211
  %v1213 = vpop.xlane.xlu0 %1212
  %v1214 = vsel %vm195, %v1200, -inf
  %1215 = vmax.xlane.f32.xlu0 %v1214
  %v1216 = vpop.xlane.xlu0 %1215
  %v1217 = vsel %vm195, %v1201, -inf
  %1218 = vmax.xlane.f32.xlu0 %v1217
  %v1219 = vpop.xlane.xlu0 %1218
  %v1220 = vsub.f32 %v1196, %v1204
  %v1221 = vsub.f32 %v1197, %v1207
  %v1222 = vsub.f32 %v1198, %v1210
  %v1223 = vsub.f32 %v1199, %v1213
  %v1224 = vsub.f32 %v1200, %v1216
  %v1225 = vsub.f32 %v1201, %v1219
  %v1226 = vmul.f32 %v1220, 1.442695
  %v1227 = vpow.pop %v1226
  %v1228 = vmul.f32 %v1221, 1.442695
  %v1229 = vpow.pop %v1228
  %v1230 = vmul.f32 %v1222, 1.442695
  %v1231 = vpow.pop %v1230
  %v1232 = vmul.f32 %v1223, 1.442695
  %v1233 = vpow.pop %v1232
  %v1234 = vmul.f32 %v1224, 1.442695
  %v1235 = vpow.pop %v1234
  %v1236 = vmul.f32 %v1225, 1.442695
  %v1237 = vpow.pop %v1236
  %v1238 = vsel %vm195, %v1227, 0.0
  %1239 = vadd.xlane.f32.xlu0 %v1238
  %v1240 = vpop.xlane.xlu0 %1239
  %v1241 = vsel %vm195, %v1229, 0.0
  %1242 = vadd.xlane.f32.xlu0 %v1241
  %v1243 = vpop.xlane.xlu0 %1242
  %v1244 = vsel %vm195, %v1231, 0.0
  %1245 = vadd.xlane.f32.xlu0 %v1244
  %v1246 = vpop.xlane.xlu0 %1245
  %v1247 = vsel %vm195, %v1233, 0.0
  %1248 = vadd.xlane.f32.xlu0 %v1247
  %v1249 = vpop.xlane.xlu0 %1248
  %v1250 = vsel %vm195, %v1235, 0.0
  %1251 = vadd.xlane.f32.xlu0 %v1250
  %v1252 = vpop.xlane.xlu0 %1251
  %v1253 = vsel %vm195, %v1237, 0.0
  %1254 = vadd.xlane.f32.xlu0 %v1253
  %v1255 = vpop.xlane.xlu0 %1254
  %v1256 = vrcp.pop %v1240
  %v1257 = vrcp.pop %v1243
  %v1258 = vrcp.pop %v1246
  %v1259 = vrcp.pop %v1249
  %v1260 = vrcp.pop %v1252
  %v1261 = vrcp.pop %v1255
  %v1262 = vmul.f32 %v1227, %v1256
  %v1263 = vmul.f32 %v1229, %v1257
  %v1264 = vmul.f32 %v1231, %v1258
  %v1265 = vmul.f32 %v1233, %v1259
  %v1266 = vmul.f32 %v1235, %v1260
  %v1267 = vmul.f32 %v1237, %v1261
  %v1268 = vpack.c.bf16 %v1262, %v1262
  %v1269 = vpack.c.bf16 %v1263, %v1263
  %v1270 = vpack.c.bf16 %v1264, %v1264
  %v1271 = vpack.c.bf16 %v1265, %v1265
  %v1272 = vpack.c.bf16 %v1266, %v1266
  %v1273 = vpack.c.bf16 %v1267, %v1267
  %1274 = vrot.lane.b32.xlu0 %v186, 56
  %v1275 = vpop.permute.xlu0 %1274
  %v1277 = vsel %vm195, %v1268, 0
  %v1280 = vsel %vm606, %v1275, 0
  %1282 = vmatprep.subr.bf16.mxu0 0
  %1283 = vmatpush1.bf16.msra.mxu0 0
  %1284 = vmatprep.subr.bf16.mxu0 0
  %1285 = vmatpush1.bf16.msra.mxu0 0
  %1286 = vmatprep.subr.bf16.mxu0 0
  %1287 = vmatpush1.bf16.msra.mxu0 0
  %1288 = vmatprep.subr.bf16.mxu0 0
  %1289 = vmatpush1.bf16.msra.mxu0 0
  %1290 = vmatprep.subr.bf16.mxu0 0
  %1291 = vmatpush1.bf16.msra.mxu0 0
  %1292 = vmatprep.subr.bf16.mxu0 0
  %1293 = vmatpush1.bf16.msra.mxu0 0
  %1294 = vmatprep.subr.bf16.mxu0 0
  %1295 = vmatpush1.bf16.msra.mxu0 0
  %1296 = vmatprep.subr.bf16.mxu0 0
  %1297 = vmatpush1.bf16.msra.mxu0 %v1280
  %1298 = vmatprep.subr.bf16.mxu0 0
  %1299 = vmatpush2.bf16.msra.mxu0 0
  %1300 = vmatprep.subr.bf16.mxu0 0
  %1301 = vmatpush2.bf16.msra.mxu0 0
  %1302 = vmatprep.subr.bf16.mxu0 0
  %1303 = vmatpush2.bf16.msra.mxu0 0
  %1304 = vmatprep.subr.bf16.mxu0 0
  %1305 = vmatpush2.bf16.msra.mxu0 0
  %1306 = vmatprep.subr.bf16.mxu0 0
  %1307 = vmatpush2.bf16.msra.mxu0 0
  %1308 = vmatprep.subr.bf16.mxu0 0
  %1309 = vmatpush2.bf16.msra.mxu0 0
  %1310 = vmatprep.subr.bf16.mxu0 0
  %1311 = vmatpush2.bf16.msra.mxu0 0
  %1312 = vmatprep.subr.bf16.mxu0 0
  %1313 = vmatpush2.bf16.msra.mxu0 0
  %1314 = vmatprep.mubr.bf16.mxu0 0
  %1315 = vmatmul.mubr.bf16.gmra.mxu0 %v1277
  %v1316 = vpop.f32.mrf.mxu0
  %v1317 = vadd.f32 0.0, %v1316
  %v1318 = vpop.f32.mrf.mxu0
  %v1319 = vpop.f32.mrf.mxu0
  %v1320 = vpop.f32.mrf.mxu0
  %1321 = vdwg.mxu0
  %1322 = vrot.lane.b32.xlu0 %v187, 56
  %v1323 = vpop.permute.xlu0 %1322
  %v1325 = vsel %vm195, %v1269, 0
  %v1328 = vsel %vm606, %v1323, 0
  %1330 = vmatprep.subr.bf16.mxu0 0
  %1331 = vmatpush1.bf16.msra.mxu0 0
  %1332 = vmatprep.subr.bf16.mxu0 0
  %1333 = vmatpush1.bf16.msra.mxu0 0
  %1334 = vmatprep.subr.bf16.mxu0 0
  %1335 = vmatpush1.bf16.msra.mxu0 0
  %1336 = vmatprep.subr.bf16.mxu0 0
  %1337 = vmatpush1.bf16.msra.mxu0 0
  %1338 = vmatprep.subr.bf16.mxu0 0
  %1339 = vmatpush1.bf16.msra.mxu0 0
  %1340 = vmatprep.subr.bf16.mxu0 0
  %1341 = vmatpush1.bf16.msra.mxu0 0
  %1342 = vmatprep.subr.bf16.mxu0 0
  %1343 = vmatpush1.bf16.msra.mxu0 0
  %1344 = vmatprep.subr.bf16.mxu0 0
  %1345 = vmatpush1.bf16.msra.mxu0 %v1328
  %1346 = vmatprep.subr.bf16.mxu0 0
  %1347 = vmatpush2.bf16.msra.mxu0 0
  %1348 = vmatprep.subr.bf16.mxu0 0
  %1349 = vmatpush2.bf16.msra.mxu0 0
  %1350 = vmatprep.subr.bf16.mxu0 0
  %1351 = vmatpush2.bf16.msra.mxu0 0
  %1352 = vmatprep.subr.bf16.mxu0 0
  %1353 = vmatpush2.bf16.msra.mxu0 0
  %1354 = vmatprep.subr.bf16.mxu0 0
  %1355 = vmatpush2.bf16.msra.mxu0 0
  %1356 = vmatprep.subr.bf16.mxu0 0
  %1357 = vmatpush2.bf16.msra.mxu0 0
  %1358 = vmatprep.subr.bf16.mxu0 0
  %1359 = vmatpush2.bf16.msra.mxu0 0
  %1360 = vmatprep.subr.bf16.mxu0 0
  %1361 = vmatpush2.bf16.msra.mxu0 0
  %1362 = vmatprep.mubr.bf16.mxu0 0
  %1363 = vmatmul.mubr.bf16.gmra.mxu0 %v1325
  %v1364 = vpop.f32.mrf.mxu0
  %v1365 = vadd.f32 0.0, %v1364
  %v1366 = vpop.f32.mrf.mxu0
  %v1367 = vpop.f32.mrf.mxu0
  %v1368 = vpop.f32.mrf.mxu0
  %1369 = vdwg.mxu0
  %1370 = vrot.lane.b32.xlu0 %v188, 56
  %v1371 = vpop.permute.xlu0 %1370
  %v1373 = vsel %vm195, %v1270, 0
  %v1376 = vsel %vm606, %v1371, 0
  %1378 = vmatprep.subr.bf16.mxu0 0
  %1379 = vmatpush1.bf16.msra.mxu0 0
  %1380 = vmatprep.subr.bf16.mxu0 0
  %1381 = vmatpush1.bf16.msra.mxu0 0
  %1382 = vmatprep.subr.bf16.mxu0 0
  %1383 = vmatpush1.bf16.msra.mxu0 0
  %1384 = vmatprep.subr.bf16.mxu0 0
  %1385 = vmatpush1.bf16.msra.mxu0 0
  %1386 = vmatprep.subr.bf16.mxu0 0
  %1387 = vmatpush1.bf16.msra.mxu0 0
  %1388 = vmatprep.subr.bf16.mxu0 0
  %1389 = vmatpush1.bf16.msra.mxu0 0
  %1390 = vmatprep.subr.bf16.mxu0 0
  %1391 = vmatpush1.bf16.msra.mxu0 0
  %1392 = vmatprep.subr.bf16.mxu0 0
  %1393 = vmatpush1.bf16.msra.mxu0 %v1376
  %1394 = vmatprep.subr.bf16.mxu0 0
  %1395 = vmatpush2.bf16.msra.mxu0 0
  %1396 = vmatprep.subr.bf16.mxu0 0
  %1397 = vmatpush2.bf16.msra.mxu0 0
  %1398 = vmatprep.subr.bf16.mxu0 0
  %1399 = vmatpush2.bf16.msra.mxu0 0
  %1400 = vmatprep.subr.bf16.mxu0 0
  %1401 = vmatpush2.bf16.msra.mxu0 0
  %1402 = vmatprep.subr.bf16.mxu0 0
  %1403 = vmatpush2.bf16.msra.mxu0 0
  %1404 = vmatprep.subr.bf16.mxu0 0
  %1405 = vmatpush2.bf16.msra.mxu0 0
  %1406 = vmatprep.subr.bf16.mxu0 0
  %1407 = vmatpush2.bf16.msra.mxu0 0
  %1408 = vmatprep.subr.bf16.mxu0 0
  %1409 = vmatpush2.bf16.msra.mxu0 0
  %1410 = vmatprep.mubr.bf16.mxu0 0
  %1411 = vmatmul.mubr.bf16.gmra.mxu0 %v1373
  %v1412 = vpop.f32.mrf.mxu0
  %v1413 = vadd.f32 0.0, %v1412
  %v1414 = vpop.f32.mrf.mxu0
  %v1415 = vpop.f32.mrf.mxu0
  %v1416 = vpop.f32.mrf.mxu0
  %1417 = vdwg.mxu0
  %1418 = vrot.lane.b32.xlu0 %v189, 56
  %v1419 = vpop.permute.xlu0 %1418
  %v1421 = vsel %vm195, %v1271, 0
  %v1424 = vsel %vm606, %v1419, 0
  %1426 = vmatprep.subr.bf16.mxu0 0
  %1427 = vmatpush1.bf16.msra.mxu0 0
  %1428 = vmatprep.subr.bf16.mxu0 0
  %1429 = vmatpush1.bf16.msra.mxu0 0
  %1430 = vmatprep.subr.bf16.mxu0 0
  %1431 = vmatpush1.bf16.msra.mxu0 0
  %1432 = vmatprep.subr.bf16.mxu0 0
  %1433 = vmatpush1.bf16.msra.mxu0 0
  %1434 = vmatprep.subr.bf16.mxu0 0
  %1435 = vmatpush1.bf16.msra.mxu0 0
  %1436 = vmatprep.subr.bf16.mxu0 0
  %1437 = vmatpush1.bf16.msra.mxu0 0
  %1438 = vmatprep.subr.bf16.mxu0 0
  %1439 = vmatpush1.bf16.msra.mxu0 0
  %1440 = vmatprep.subr.bf16.mxu0 0
  %1441 = vmatpush1.bf16.msra.mxu0 %v1424
  %1442 = vmatprep.subr.bf16.mxu0 0
  %1443 = vmatpush2.bf16.msra.mxu0 0
  %1444 = vmatprep.subr.bf16.mxu0 0
  %1445 = vmatpush2.bf16.msra.mxu0 0
  %1446 = vmatprep.subr.bf16.mxu0 0
  %1447 = vmatpush2.bf16.msra.mxu0 0
  %1448 = vmatprep.subr.bf16.mxu0 0
  %1449 = vmatpush2.bf16.msra.mxu0 0
  %1450 = vmatprep.subr.bf16.mxu0 0
  %1451 = vmatpush2.bf16.msra.mxu0 0
  %1452 = vmatprep.subr.bf16.mxu0 0
  %1453 = vmatpush2.bf16.msra.mxu0 0
  %1454 = vmatprep.subr.bf16.mxu0 0
  %1455 = vmatpush2.bf16.msra.mxu0 0
  %1456 = vmatprep.subr.bf16.mxu0 0
  %1457 = vmatpush2.bf16.msra.mxu0 0
  %1458 = vmatprep.mubr.bf16.mxu0 0
  %1459 = vmatmul.mubr.bf16.gmra.mxu0 %v1421
  %v1460 = vpop.f32.mrf.mxu0
  %v1461 = vadd.f32 0.0, %v1460
  %v1462 = vpop.f32.mrf.mxu0
  %v1463 = vpop.f32.mrf.mxu0
  %v1464 = vpop.f32.mrf.mxu0
  %1465 = vdwg.mxu0
  %1466 = vrot.lane.b32.xlu0 %v190, 56
  %v1467 = vpop.permute.xlu0 %1466
  %v1469 = vsel %vm195, %v1272, 0
  %v1472 = vsel %vm606, %v1467, 0
  %1474 = vmatprep.subr.bf16.mxu0 0
  %1475 = vmatpush1.bf16.msra.mxu0 0
  %1476 = vmatprep.subr.bf16.mxu0 0
  %1477 = vmatpush1.bf16.msra.mxu0 0
  %1478 = vmatprep.subr.bf16.mxu0 0
  %1479 = vmatpush1.bf16.msra.mxu0 0
  %1480 = vmatprep.subr.bf16.mxu0 0
  %1481 = vmatpush1.bf16.msra.mxu0 0
  %1482 = vmatprep.subr.bf16.mxu0 0
  %1483 = vmatpush1.bf16.msra.mxu0 0
  %1484 = vmatprep.subr.bf16.mxu0 0
  %1485 = vmatpush1.bf16.msra.mxu0 0
  %1486 = vmatprep.subr.bf16.mxu0 0
  %1487 = vmatpush1.bf16.msra.mxu0 0
  %1488 = vmatprep.subr.bf16.mxu0 0
  %1489 = vmatpush1.bf16.msra.mxu0 %v1472
  %1490 = vmatprep.subr.bf16.mxu0 0
  %1491 = vmatpush2.bf16.msra.mxu0 0
  %1492 = vmatprep.subr.bf16.mxu0 0
  %1493 = vmatpush2.bf16.msra.mxu0 0
  %1494 = vmatprep.subr.bf16.mxu0 0
  %1495 = vmatpush2.bf16.msra.mxu0 0
  %1496 = vmatprep.subr.bf16.mxu0 0
  %1497 = vmatpush2.bf16.msra.mxu0 0
  %1498 = vmatprep.subr.bf16.mxu0 0
  %1499 = vmatpush2.bf16.msra.mxu0 0
  %1500 = vmatprep.subr.bf16.mxu0 0
  %1501 = vmatpush2.bf16.msra.mxu0 0
  %1502 = vmatprep.subr.bf16.mxu0 0
  %1503 = vmatpush2.bf16.msra.mxu0 0
  %1504 = vmatprep.subr.bf16.mxu0 0
  %1505 = vmatpush2.bf16.msra.mxu0 0
  %1506 = vmatprep.mubr.bf16.mxu0 0
  %1507 = vmatmul.mubr.bf16.gmra.mxu0 %v1469
  %v1508 = vpop.f32.mrf.mxu0
  %v1509 = vadd.f32 0.0, %v1508
  %v1510 = vpop.f32.mrf.mxu0
  %v1511 = vpop.f32.mrf.mxu0
  %v1512 = vpop.f32.mrf.mxu0
  %1513 = vdwg.mxu0
  %1514 = vrot.lane.b32.xlu0 %v191, 56
  %v1515 = vpop.permute.xlu0 %1514
  %v1517 = vsel %vm195, %v1273, 0
  %v1520 = vsel %vm606, %v1515, 0
  %1522 = vmatprep.subr.bf16.mxu0 0
  %1523 = vmatpush1.bf16.msra.mxu0 0
  %1524 = vmatprep.subr.bf16.mxu0 0
  %1525 = vmatpush1.bf16.msra.mxu0 0
  %1526 = vmatprep.subr.bf16.mxu0 0
  %1527 = vmatpush1.bf16.msra.mxu0 0
  %1528 = vmatprep.subr.bf16.mxu0 0
  %1529 = vmatpush1.bf16.msra.mxu0 0
  %1530 = vmatprep.subr.bf16.mxu0 0
  %1531 = vmatpush1.bf16.msra.mxu0 0
  %1532 = vmatprep.subr.bf16.mxu0 0
  %1533 = vmatpush1.bf16.msra.mxu0 0
  %1534 = vmatprep.subr.bf16.mxu0 0
  %1535 = vmatpush1.bf16.msra.mxu0 0
  %1536 = vmatprep.subr.bf16.mxu0 0
  %1537 = vmatpush1.bf16.msra.mxu0 %v1520
  %1538 = vmatprep.subr.bf16.mxu0 0
  %1539 = vmatpush2.bf16.msra.mxu0 0
  %1540 = vmatprep.subr.bf16.mxu0 0
  %1541 = vmatpush2.bf16.msra.mxu0 0
  %1542 = vmatprep.subr.bf16.mxu0 0
  %1543 = vmatpush2.bf16.msra.mxu0 0
  %1544 = vmatprep.subr.bf16.mxu0 0
  %1545 = vmatpush2.bf16.msra.mxu0 0
  %1546 = vmatprep.subr.bf16.mxu0 0
  %1547 = vmatpush2.bf16.msra.mxu0 0
  %1548 = vmatprep.subr.bf16.mxu0 0
  %1549 = vmatpush2.bf16.msra.mxu0 0
  %1550 = vmatprep.subr.bf16.mxu0 0
  %1551 = vmatpush2.bf16.msra.mxu0 0
  %1552 = vmatprep.subr.bf16.mxu0 0
  %1553 = vmatpush2.bf16.msra.mxu0 0
  %1554 = vmatprep.mubr.bf16.mxu0 0
  %1555 = vmatmul.mubr.bf16.gmra.mxu0 %v1517
  %v1556 = vpop.f32.mrf.mxu0
  %v1557 = vadd.f32 0.0, %v1556
  %v1558 = vpop.f32.mrf.mxu0
  %v1559 = vpop.f32.mrf.mxu0
  %v1560 = vpop.f32.mrf.mxu0
  %1561 = vdwg.mxu0
  %1562 = vrot.lane.b32.xlu0 %v186, 112
  %v1563 = vpop.permute.xlu0 %1562
  %1564 = vrot.lane.b32.xlu0 %v186, 80
  %v1565 = vpop.permute.xlu0 %1564
  %v1567 = vsel %vm195, %v1563, 0
  %v1570 = vsel %vm195, %v1565, 0
  %1572 = vmatprep.subr.bf16.mxu0 0
  %1573 = vmatpush1.bf16.xpose.msra.mxu0 0
  %1574 = vmatprep.subr.bf16.mxu0 0
  %1575 = vmatpush1.bf16.xpose.msra.mxu0 0
  %1576 = vmatprep.subr.bf16.mxu0 0
  %1577 = vmatpush1.bf16.xpose.msra.mxu0 0
  %1578 = vmatprep.subr.bf16.mxu0 0
  %1579 = vmatpush1.bf16.xpose.msra.mxu0 0
  %1580 = vmatprep.subr.bf16.mxu0 0
  %1581 = vmatpush1.bf16.xpose.msra.mxu0 0
  %1582 = vmatprep.subr.bf16.mxu0 0
  %1583 = vmatpush1.bf16.xpose.msra.mxu0 0
  %1584 = vmatprep.subr.bf16.mxu0 0
  %1585 = vmatpush1.bf16.xpose.msra.mxu0 0
  %1586 = vmatprep.subr.bf16.mxu0 0
  %1587 = vmatpush1.bf16.xpose.msra.mxu0 %v1570
  %1588 = vmatprep.subr.bf16.mxu0 0
  %1589 = vmatpush2.bf16.xpose.msra.mxu0 0
  %1590 = vmatprep.subr.bf16.mxu0 0
  %1591 = vmatpush2.bf16.xpose.msra.mxu0 0
  %1592 = vmatprep.subr.bf16.mxu0 0
  %1593 = vmatpush2.bf16.xpose.msra.mxu0 0
  %1594 = vmatprep.subr.bf16.mxu0 0
  %1595 = vmatpush2.bf16.xpose.msra.mxu0 0
  %1596 = vmatprep.subr.bf16.mxu0 0
  %1597 = vmatpush2.bf16.xpose.msra.mxu0 0
  %1598 = vmatprep.subr.bf16.mxu0 0
  %1599 = vmatpush2.bf16.xpose.msra.mxu0 0
  %1600 = vmatprep.subr.bf16.mxu0 0
  %1601 = vmatpush2.bf16.xpose.msra.mxu0 0
  %1602 = vmatprep.subr.bf16.mxu0 0
  %1603 = vmatpush2.bf16.xpose.msra.mxu0 0
  %1604 = vmatprep.mubr.bf16.mxu0 0
  %1605 = vmatmul.mubr.bf16.gmra.mxu0 %v1567
  %v1606 = vpop.f32.mrf.mxu0
  %v1607 = vadd.f32 0.0, %v1606
  %v1608 = vpop.f32.mrf.mxu0
  %v1609 = vpop.f32.mrf.mxu0
  %v1610 = vpop.f32.mrf.mxu0
  %1611 = vdwg.mxu0
  %1612 = vrot.lane.b32.xlu0 %v187, 112
  %v1613 = vpop.permute.xlu0 %1612
  %1614 = vrot.lane.b32.xlu0 %v187, 80
  %v1615 = vpop.permute.xlu0 %1614
  %v1617 = vsel %vm195, %v1613, 0
  %v1620 = vsel %vm195, %v1615, 0
  %1622 = vmatprep.subr.bf16.mxu0 0
  %1623 = vmatpush1.bf16.xpose.msra.mxu0 0
  %1624 = vmatprep.subr.bf16.mxu0 0
  %1625 = vmatpush1.bf16.xpose.msra.mxu0 0
  %1626 = vmatprep.subr.bf16.mxu0 0
  %1627 = vmatpush1.bf16.xpose.msra.mxu0 0
  %1628 = vmatprep.subr.bf16.mxu0 0
  %1629 = vmatpush1.bf16.xpose.msra.mxu0 0
  %1630 = vmatprep.subr.bf16.mxu0 0
  %1631 = vmatpush1.bf16.xpose.msra.mxu0 0
  %1632 = vmatprep.subr.bf16.mxu0 0
  %1633 = vmatpush1.bf16.xpose.msra.mxu0 0
  %1634 = vmatprep.subr.bf16.mxu0 0
  %1635 = vmatpush1.bf16.xpose.msra.mxu0 0
  %1636 = vmatprep.subr.bf16.mxu0 0
  %1637 = vmatpush1.bf16.xpose.msra.mxu0 %v1620
  %1638 = vmatprep.subr.bf16.mxu0 0
  %1639 = vmatpush2.bf16.xpose.msra.mxu0 0
  %1640 = vmatprep.subr.bf16.mxu0 0
  %1641 = vmatpush2.bf16.xpose.msra.mxu0 0
  %1642 = vmatprep.subr.bf16.mxu0 0
  %1643 = vmatpush2.bf16.xpose.msra.mxu0 0
  %1644 = vmatprep.subr.bf16.mxu0 0
  %1645 = vmatpush2.bf16.xpose.msra.mxu0 0
  %1646 = vmatprep.subr.bf16.mxu0 0
  %1647 = vmatpush2.bf16.xpose.msra.mxu0 0
  %1648 = vmatprep.subr.bf16.mxu0 0
  %1649 = vmatpush2.bf16.xpose.msra.mxu0 0
  %1650 = vmatprep.subr.bf16.mxu0 0
  %1651 = vmatpush2.bf16.xpose.msra.mxu0 0
  %1652 = vmatprep.subr.bf16.mxu0 0
  %1653 = vmatpush2.bf16.xpose.msra.mxu0 0
  %1654 = vmatprep.mubr.bf16.mxu0 0
  %1655 = vmatmul.mubr.bf16.gmra.mxu0 %v1617
  %v1656 = vpop.f32.mrf.mxu0
  %v1657 = vadd.f32 0.0, %v1656
  %v1658 = vpop.f32.mrf.mxu0
  %v1659 = vpop.f32.mrf.mxu0
  %v1660 = vpop.f32.mrf.mxu0
  %1661 = vdwg.mxu0
  %1662 = vrot.lane.b32.xlu0 %v188, 112
  %v1663 = vpop.permute.xlu0 %1662
  %1664 = vrot.lane.b32.xlu0 %v188, 80
  %v1665 = vpop.permute.xlu0 %1664
  %v1667 = vsel %vm195, %v1663, 0
  %v1670 = vsel %vm195, %v1665, 0
  %1672 = vmatprep.subr.bf16.mxu0 0
  %1673 = vmatpush1.bf16.xpose.msra.mxu0 0
  %1674 = vmatprep.subr.bf16.mxu0 0
  %1675 = vmatpush1.bf16.xpose.msra.mxu0 0
  %1676 = vmatprep.subr.bf16.mxu0 0
  %1677 = vmatpush1.bf16.xpose.msra.mxu0 0
  %1678 = vmatprep.subr.bf16.mxu0 0
  %1679 = vmatpush1.bf16.xpose.msra.mxu0 0
  %1680 = vmatprep.subr.bf16.mxu0 0
  %1681 = vmatpush1.bf16.xpose.msra.mxu0 0
  %1682 = vmatprep.subr.bf16.mxu0 0
  %1683 = vmatpush1.bf16.xpose.msra.mxu0 0
  %1684 = vmatprep.subr.bf16.mxu0 0
  %1685 = vmatpush1.bf16.xpose.msra.mxu0 0
  %1686 = vmatprep.subr.bf16.mxu0 0
  %1687 = vmatpush1.bf16.xpose.msra.mxu0 %v1670
  %1688 = vmatprep.subr.bf16.mxu0 0
  %1689 = vmatpush2.bf16.xpose.msra.mxu0 0
  %1690 = vmatprep.subr.bf16.mxu0 0
  %1691 = vmatpush2.bf16.xpose.msra.mxu0 0
  %1692 = vmatprep.subr.bf16.mxu0 0
  %1693 = vmatpush2.bf16.xpose.msra.mxu0 0
  %1694 = vmatprep.subr.bf16.mxu0 0
  %1695 = vmatpush2.bf16.xpose.msra.mxu0 0
  %1696 = vmatprep.subr.bf16.mxu0 0
  %1697 = vmatpush2.bf16.xpose.msra.mxu0 0
  %1698 = vmatprep.subr.bf16.mxu0 0
  %1699 = vmatpush2.bf16.xpose.msra.mxu0 0
  %1700 = vmatprep.subr.bf16.mxu0 0
  %1701 = vmatpush2.bf16.xpose.msra.mxu0 0
  %1702 = vmatprep.subr.bf16.mxu0 0
  %1703 = vmatpush2.bf16.xpose.msra.mxu0 0
  %1704 = vmatprep.mubr.bf16.mxu0 0
  %1705 = vmatmul.mubr.bf16.gmra.mxu0 %v1667
  %v1706 = vpop.f32.mrf.mxu0
  %v1707 = vadd.f32 0.0, %v1706
  %v1708 = vpop.f32.mrf.mxu0
  %v1709 = vpop.f32.mrf.mxu0
  %v1710 = vpop.f32.mrf.mxu0
  %1711 = vdwg.mxu0
  %1712 = vrot.lane.b32.xlu0 %v189, 112
  %v1713 = vpop.permute.xlu0 %1712
  %1714 = vrot.lane.b32.xlu0 %v189, 80
  %v1715 = vpop.permute.xlu0 %1714
  %v1717 = vsel %vm195, %v1713, 0
  %v1720 = vsel %vm195, %v1715, 0
  %1722 = vmatprep.subr.bf16.mxu0 0
  %1723 = vmatpush1.bf16.xpose.msra.mxu0 0
  %1724 = vmatprep.subr.bf16.mxu0 0
  %1725 = vmatpush1.bf16.xpose.msra.mxu0 0
  %1726 = vmatprep.subr.bf16.mxu0 0
  %1727 = vmatpush1.bf16.xpose.msra.mxu0 0
  %1728 = vmatprep.subr.bf16.mxu0 0
  %1729 = vmatpush1.bf16.xpose.msra.mxu0 0
  %1730 = vmatprep.subr.bf16.mxu0 0
  %1731 = vmatpush1.bf16.xpose.msra.mxu0 0
  %1732 = vmatprep.subr.bf16.mxu0 0
  %1733 = vmatpush1.bf16.xpose.msra.mxu0 0
  %1734 = vmatprep.subr.bf16.mxu0 0
  %1735 = vmatpush1.bf16.xpose.msra.mxu0 0
  %1736 = vmatprep.subr.bf16.mxu0 0
  %1737 = vmatpush1.bf16.xpose.msra.mxu0 %v1720
  %1738 = vmatprep.subr.bf16.mxu0 0
  %1739 = vmatpush2.bf16.xpose.msra.mxu0 0
  %1740 = vmatprep.subr.bf16.mxu0 0
  %1741 = vmatpush2.bf16.xpose.msra.mxu0 0
  %1742 = vmatprep.subr.bf16.mxu0 0
  %1743 = vmatpush2.bf16.xpose.msra.mxu0 0
  %1744 = vmatprep.subr.bf16.mxu0 0
  %1745 = vmatpush2.bf16.xpose.msra.mxu0 0
  %1746 = vmatprep.subr.bf16.mxu0 0
  %1747 = vmatpush2.bf16.xpose.msra.mxu0 0
  %1748 = vmatprep.subr.bf16.mxu0 0
  %1749 = vmatpush2.bf16.xpose.msra.mxu0 0
  %1750 = vmatprep.subr.bf16.mxu0 0
  %1751 = vmatpush2.bf16.xpose.msra.mxu0 0
  %1752 = vmatprep.subr.bf16.mxu0 0
  %1753 = vmatpush2.bf16.xpose.msra.mxu0 0
  %1754 = vmatprep.mubr.bf16.mxu0 0
  %1755 = vmatmul.mubr.bf16.gmra.mxu0 %v1717
  %v1756 = vpop.f32.mrf.mxu0
  %v1757 = vadd.f32 0.0, %v1756
  %v1758 = vpop.f32.mrf.mxu0
  %v1759 = vpop.f32.mrf.mxu0
  %v1760 = vpop.f32.mrf.mxu0
  %1761 = vdwg.mxu0
  %1762 = vrot.lane.b32.xlu0 %v190, 112
  %v1763 = vpop.permute.xlu0 %1762
  %1764 = vrot.lane.b32.xlu0 %v190, 80
  %v1765 = vpop.permute.xlu0 %1764
  %v1767 = vsel %vm195, %v1763, 0
  %v1770 = vsel %vm195, %v1765, 0
  %1772 = vmatprep.subr.bf16.mxu0 0
  %1773 = vmatpush1.bf16.xpose.msra.mxu0 0
  %1774 = vmatprep.subr.bf16.mxu0 0
  %1775 = vmatpush1.bf16.xpose.msra.mxu0 0
  %1776 = vmatprep.subr.bf16.mxu0 0
  %1777 = vmatpush1.bf16.xpose.msra.mxu0 0
  %1778 = vmatprep.subr.bf16.mxu0 0
  %1779 = vmatpush1.bf16.xpose.msra.mxu0 0
  %1780 = vmatprep.subr.bf16.mxu0 0
  %1781 = vmatpush1.bf16.xpose.msra.mxu0 0
  %1782 = vmatprep.subr.bf16.mxu0 0
  %1783 = vmatpush1.bf16.xpose.msra.mxu0 0
  %1784 = vmatprep.subr.bf16.mxu0 0
  %1785 = vmatpush1.bf16.xpose.msra.mxu0 0
  %1786 = vmatprep.subr.bf16.mxu0 0
  %1787 = vmatpush1.bf16.xpose.msra.mxu0 %v1770
  %1788 = vmatprep.subr.bf16.mxu0 0
  %1789 = vmatpush2.bf16.xpose.msra.mxu0 0
  %1790 = vmatprep.subr.bf16.mxu0 0
  %1791 = vmatpush2.bf16.xpose.msra.mxu0 0
  %1792 = vmatprep.subr.bf16.mxu0 0
  %1793 = vmatpush2.bf16.xpose.msra.mxu0 0
  %1794 = vmatprep.subr.bf16.mxu0 0
  %1795 = vmatpush2.bf16.xpose.msra.mxu0 0
  %1796 = vmatprep.subr.bf16.mxu0 0
  %1797 = vmatpush2.bf16.xpose.msra.mxu0 0
  %1798 = vmatprep.subr.bf16.mxu0 0
  %1799 = vmatpush2.bf16.xpose.msra.mxu0 0
  %1800 = vmatprep.subr.bf16.mxu0 0
  %1801 = vmatpush2.bf16.xpose.msra.mxu0 0
  %1802 = vmatprep.subr.bf16.mxu0 0
  %1803 = vmatpush2.bf16.xpose.msra.mxu0 0
  %1804 = vmatprep.mubr.bf16.mxu0 0
  %1805 = vmatmul.mubr.bf16.gmra.mxu0 %v1767
  %v1806 = vpop.f32.mrf.mxu0
  %v1807 = vadd.f32 0.0, %v1806
  %v1808 = vpop.f32.mrf.mxu0
  %v1809 = vpop.f32.mrf.mxu0
  %v1810 = vpop.f32.mrf.mxu0
  %1811 = vdwg.mxu0
  %1812 = vrot.lane.b32.xlu0 %v191, 112
  %v1813 = vpop.permute.xlu0 %1812
  %1814 = vrot.lane.b32.xlu0 %v191, 80
  %v1815 = vpop.permute.xlu0 %1814
  %v1817 = vsel %vm195, %v1813, 0
  %v1820 = vsel %vm195, %v1815, 0
  %1822 = vmatprep.subr.bf16.mxu0 0
  %1823 = vmatpush1.bf16.xpose.msra.mxu0 0
  %1824 = vmatprep.subr.bf16.mxu0 0
  %1825 = vmatpush1.bf16.xpose.msra.mxu0 0
  %1826 = vmatprep.subr.bf16.mxu0 0
  %1827 = vmatpush1.bf16.xpose.msra.mxu0 0
  %1828 = vmatprep.subr.bf16.mxu0 0
  %1829 = vmatpush1.bf16.xpose.msra.mxu0 0
  %1830 = vmatprep.subr.bf16.mxu0 0
  %1831 = vmatpush1.bf16.xpose.msra.mxu0 0
  %1832 = vmatprep.subr.bf16.mxu0 0
  %1833 = vmatpush1.bf16.xpose.msra.mxu0 0
  %1834 = vmatprep.subr.bf16.mxu0 0
  %1835 = vmatpush1.bf16.xpose.msra.mxu0 0
  %1836 = vmatprep.subr.bf16.mxu0 0
  %1837 = vmatpush1.bf16.xpose.msra.mxu0 %v1820
  %1838 = vmatprep.subr.bf16.mxu0 0
  %1839 = vmatpush2.bf16.xpose.msra.mxu0 0
  %1840 = vmatprep.subr.bf16.mxu0 0
  %1841 = vmatpush2.bf16.xpose.msra.mxu0 0
  %1842 = vmatprep.subr.bf16.mxu0 0
  %1843 = vmatpush2.bf16.xpose.msra.mxu0 0
  %1844 = vmatprep.subr.bf16.mxu0 0
  %1845 = vmatpush2.bf16.xpose.msra.mxu0 0
  %1846 = vmatprep.subr.bf16.mxu0 0
  %1847 = vmatpush2.bf16.xpose.msra.mxu0 0
  %1848 = vmatprep.subr.bf16.mxu0 0
  %1849 = vmatpush2.bf16.xpose.msra.mxu0 0
  %1850 = vmatprep.subr.bf16.mxu0 0
  %1851 = vmatpush2.bf16.xpose.msra.mxu0 0
  %1852 = vmatprep.subr.bf16.mxu0 0
  %1853 = vmatpush2.bf16.xpose.msra.mxu0 0
  %1854 = vmatprep.mubr.bf16.mxu0 0
  %1855 = vmatmul.mubr.bf16.gmra.mxu0 %v1817
  %v1856 = vpop.f32.mrf.mxu0
  %v1857 = vadd.f32 0.0, %v1856
  %v1858 = vpop.f32.mrf.mxu0
  %v1859 = vpop.f32.mrf.mxu0
  %v1860 = vpop.f32.mrf.mxu0
  %1861 = vdwg.mxu0
  %v1862 = vmul.f32 %v1607, 0.35355338
  %v1863 = vmul.f32 %v1657, 0.35355338
  %v1864 = vmul.f32 %v1707, 0.35355338
  %v1865 = vmul.f32 %v1757, 0.35355338
  %v1866 = vmul.f32 %v1807, 0.35355338
  %v1867 = vmul.f32 %v1857, 0.35355338
  %v1868 = vadd.f32 %v1862, %v496
  %v1869 = vadd.f32 %v1863, %v500
  %v1870 = vadd.f32 %v1864, %v504
  %v1871 = vadd.f32 %v1865, %v508
  %v1872 = vadd.f32 %v1866, %v512
  %v1873 = vadd.f32 %v1867, %v516
  %v1874 = vsel %vm195, %v1868, -inf
  %1875 = vmax.xlane.f32.xlu0 %v1874
  %v1876 = vpop.xlane.xlu0 %1875
  %v1877 = vsel %vm195, %v1869, -inf
  %1878 = vmax.xlane.f32.xlu0 %v1877
  %v1879 = vpop.xlane.xlu0 %1878
  %v1880 = vsel %vm195, %v1870, -inf
  %1881 = vmax.xlane.f32.xlu0 %v1880
  %v1882 = vpop.xlane.xlu0 %1881
  %v1883 = vsel %vm195, %v1871, -inf
  %1884 = vmax.xlane.f32.xlu0 %v1883
  %v1885 = vpop.xlane.xlu0 %1884
  %v1886 = vsel %vm195, %v1872, -inf
  %1887 = vmax.xlane.f32.xlu0 %v1886
  %v1888 = vpop.xlane.xlu0 %1887
  %v1889 = vsel %vm195, %v1873, -inf
  %1890 = vmax.xlane.f32.xlu0 %v1889
  %v1891 = vpop.xlane.xlu0 %1890
  %v1892 = vsub.f32 %v1868, %v1876
  %v1893 = vsub.f32 %v1869, %v1879
  %v1894 = vsub.f32 %v1870, %v1882
  %v1895 = vsub.f32 %v1871, %v1885
  %v1896 = vsub.f32 %v1872, %v1888
  %v1897 = vsub.f32 %v1873, %v1891
  %v1898 = vmul.f32 %v1892, 1.442695
  %v1899 = vpow.pop %v1898
  %v1900 = vmul.f32 %v1893, 1.442695
  %v1901 = vpow.pop %v1900
  %v1902 = vmul.f32 %v1894, 1.442695
  %v1903 = vpow.pop %v1902
  %v1904 = vmul.f32 %v1895, 1.442695
  %v1905 = vpow.pop %v1904
  %v1906 = vmul.f32 %v1896, 1.442695
  %v1907 = vpow.pop %v1906
  %v1908 = vmul.f32 %v1897, 1.442695
  %v1909 = vpow.pop %v1908
  %v1910 = vsel %vm195, %v1899, 0.0
  %1911 = vadd.xlane.f32.xlu0 %v1910
  %v1912 = vpop.xlane.xlu0 %1911
  %v1913 = vsel %vm195, %v1901, 0.0
  %1914 = vadd.xlane.f32.xlu0 %v1913
  %v1915 = vpop.xlane.xlu0 %1914
  %v1916 = vsel %vm195, %v1903, 0.0
  %1917 = vadd.xlane.f32.xlu0 %v1916
  %v1918 = vpop.xlane.xlu0 %1917
  %v1919 = vsel %vm195, %v1905, 0.0
  %1920 = vadd.xlane.f32.xlu0 %v1919
  %v1921 = vpop.xlane.xlu0 %1920
  %v1922 = vsel %vm195, %v1907, 0.0
  %1923 = vadd.xlane.f32.xlu0 %v1922
  %v1924 = vpop.xlane.xlu0 %1923
  %v1925 = vsel %vm195, %v1909, 0.0
  %1926 = vadd.xlane.f32.xlu0 %v1925
  %v1927 = vpop.xlane.xlu0 %1926
  %v1928 = vrcp.pop %v1912
  %v1929 = vrcp.pop %v1915
  %v1930 = vrcp.pop %v1918
  %v1931 = vrcp.pop %v1921
  %v1932 = vrcp.pop %v1924
  %v1933 = vrcp.pop %v1927
  %v1934 = vmul.f32 %v1899, %v1928
  %v1935 = vmul.f32 %v1901, %v1929
  %v1936 = vmul.f32 %v1903, %v1930
  %v1937 = vmul.f32 %v1905, %v1931
  %v1938 = vmul.f32 %v1907, %v1932
  %v1939 = vmul.f32 %v1909, %v1933
  %v1940 = vpack.c.bf16 %v1934, %v1934
  %v1941 = vpack.c.bf16 %v1935, %v1935
  %v1942 = vpack.c.bf16 %v1936, %v1936
  %v1943 = vpack.c.bf16 %v1937, %v1937
  %v1944 = vpack.c.bf16 %v1938, %v1938
  %v1945 = vpack.c.bf16 %v1939, %v1939
  %1946 = vrot.lane.b32.xlu0 %v186, 48
  %v1947 = vpop.permute.xlu0 %1946
  %v1949 = vsel %vm195, %v1940, 0
  %v1952 = vsel %vm606, %v1947, 0
  %1954 = vmatprep.subr.bf16.mxu0 0
  %1955 = vmatpush1.bf16.msra.mxu0 0
  %1956 = vmatprep.subr.bf16.mxu0 0
  %1957 = vmatpush1.bf16.msra.mxu0 0
  %1958 = vmatprep.subr.bf16.mxu0 0
  %1959 = vmatpush1.bf16.msra.mxu0 0
  %1960 = vmatprep.subr.bf16.mxu0 0
  %1961 = vmatpush1.bf16.msra.mxu0 0
  %1962 = vmatprep.subr.bf16.mxu0 0
  %1963 = vmatpush1.bf16.msra.mxu0 0
  %1964 = vmatprep.subr.bf16.mxu0 0
  %1965 = vmatpush1.bf16.msra.mxu0 0
  %1966 = vmatprep.subr.bf16.mxu0 0
  %1967 = vmatpush1.bf16.msra.mxu0 0
  %1968 = vmatprep.subr.bf16.mxu0 0
  %1969 = vmatpush1.bf16.msra.mxu0 %v1952
  %1970 = vmatprep.subr.bf16.mxu0 0
  %1971 = vmatpush2.bf16.msra.mxu0 0
  %1972 = vmatprep.subr.bf16.mxu0 0
  %1973 = vmatpush2.bf16.msra.mxu0 0
  %1974 = vmatprep.subr.bf16.mxu0 0
  %1975 = vmatpush2.bf16.msra.mxu0 0
  %1976 = vmatprep.subr.bf16.mxu0 0
  %1977 = vmatpush2.bf16.msra.mxu0 0
  %1978 = vmatprep.subr.bf16.mxu0 0
  %1979 = vmatpush2.bf16.msra.mxu0 0
  %1980 = vmatprep.subr.bf16.mxu0 0
  %1981 = vmatpush2.bf16.msra.mxu0 0
  %1982 = vmatprep.subr.bf16.mxu0 0
  %1983 = vmatpush2.bf16.msra.mxu0 0
  %1984 = vmatprep.subr.bf16.mxu0 0
  %1985 = vmatpush2.bf16.msra.mxu0 0
  %1986 = vmatprep.mubr.bf16.mxu0 0
  %1987 = vmatmul.mubr.bf16.gmra.mxu0 %v1949
  %v1988 = vpop.f32.mrf.mxu0
  %v1989 = vadd.f32 0.0, %v1988
  %v1990 = vpop.f32.mrf.mxu0
  %v1991 = vpop.f32.mrf.mxu0
  %v1992 = vpop.f32.mrf.mxu0
  %1993 = vdwg.mxu0
  %1994 = vrot.lane.b32.xlu0 %v187, 48
  %v1995 = vpop.permute.xlu0 %1994
  %v1997 = vsel %vm195, %v1941, 0
  %v2000 = vsel %vm606, %v1995, 0
  %2002 = vmatprep.subr.bf16.mxu0 0
  %2003 = vmatpush1.bf16.msra.mxu0 0
  %2004 = vmatprep.subr.bf16.mxu0 0
  %2005 = vmatpush1.bf16.msra.mxu0 0
  %2006 = vmatprep.subr.bf16.mxu0 0
  %2007 = vmatpush1.bf16.msra.mxu0 0
  %2008 = vmatprep.subr.bf16.mxu0 0
  %2009 = vmatpush1.bf16.msra.mxu0 0
  %2010 = vmatprep.subr.bf16.mxu0 0
  %2011 = vmatpush1.bf16.msra.mxu0 0
  %2012 = vmatprep.subr.bf16.mxu0 0
  %2013 = vmatpush1.bf16.msra.mxu0 0
  %2014 = vmatprep.subr.bf16.mxu0 0
  %2015 = vmatpush1.bf16.msra.mxu0 0
  %2016 = vmatprep.subr.bf16.mxu0 0
  %2017 = vmatpush1.bf16.msra.mxu0 %v2000
  %2018 = vmatprep.subr.bf16.mxu0 0
  %2019 = vmatpush2.bf16.msra.mxu0 0
  %2020 = vmatprep.subr.bf16.mxu0 0
  %2021 = vmatpush2.bf16.msra.mxu0 0
  %2022 = vmatprep.subr.bf16.mxu0 0
  %2023 = vmatpush2.bf16.msra.mxu0 0
  %2024 = vmatprep.subr.bf16.mxu0 0
  %2025 = vmatpush2.bf16.msra.mxu0 0
  %2026 = vmatprep.subr.bf16.mxu0 0
  %2027 = vmatpush2.bf16.msra.mxu0 0
  %2028 = vmatprep.subr.bf16.mxu0 0
  %2029 = vmatpush2.bf16.msra.mxu0 0
  %2030 = vmatprep.subr.bf16.mxu0 0
  %2031 = vmatpush2.bf16.msra.mxu0 0
  %2032 = vmatprep.subr.bf16.mxu0 0
  %2033 = vmatpush2.bf16.msra.mxu0 0
  %2034 = vmatprep.mubr.bf16.mxu0 0
  %2035 = vmatmul.mubr.bf16.gmra.mxu0 %v1997
  %v2036 = vpop.f32.mrf.mxu0
  %v2037 = vadd.f32 0.0, %v2036
  %v2038 = vpop.f32.mrf.mxu0
  %v2039 = vpop.f32.mrf.mxu0
  %v2040 = vpop.f32.mrf.mxu0
  %2041 = vdwg.mxu0
  %2042 = vrot.lane.b32.xlu0 %v188, 48
  %v2043 = vpop.permute.xlu0 %2042
  %v2045 = vsel %vm195, %v1942, 0
  %v2048 = vsel %vm606, %v2043, 0
  %2050 = vmatprep.subr.bf16.mxu0 0
  %2051 = vmatpush1.bf16.msra.mxu0 0
  %2052 = vmatprep.subr.bf16.mxu0 0
  %2053 = vmatpush1.bf16.msra.mxu0 0
  %2054 = vmatprep.subr.bf16.mxu0 0
  %2055 = vmatpush1.bf16.msra.mxu0 0
  %2056 = vmatprep.subr.bf16.mxu0 0
  %2057 = vmatpush1.bf16.msra.mxu0 0
  %2058 = vmatprep.subr.bf16.mxu0 0
  %2059 = vmatpush1.bf16.msra.mxu0 0
  %2060 = vmatprep.subr.bf16.mxu0 0
  %2061 = vmatpush1.bf16.msra.mxu0 0
  %2062 = vmatprep.subr.bf16.mxu0 0
  %2063 = vmatpush1.bf16.msra.mxu0 0
  %2064 = vmatprep.subr.bf16.mxu0 0
  %2065 = vmatpush1.bf16.msra.mxu0 %v2048
  %2066 = vmatprep.subr.bf16.mxu0 0
  %2067 = vmatpush2.bf16.msra.mxu0 0
  %2068 = vmatprep.subr.bf16.mxu0 0
  %2069 = vmatpush2.bf16.msra.mxu0 0
  %2070 = vmatprep.subr.bf16.mxu0 0
  %2071 = vmatpush2.bf16.msra.mxu0 0
  %2072 = vmatprep.subr.bf16.mxu0 0
  %2073 = vmatpush2.bf16.msra.mxu0 0
  %2074 = vmatprep.subr.bf16.mxu0 0
  %2075 = vmatpush2.bf16.msra.mxu0 0
  %2076 = vmatprep.subr.bf16.mxu0 0
  %2077 = vmatpush2.bf16.msra.mxu0 0
  %2078 = vmatprep.subr.bf16.mxu0 0
  %2079 = vmatpush2.bf16.msra.mxu0 0
  %2080 = vmatprep.subr.bf16.mxu0 0
  %2081 = vmatpush2.bf16.msra.mxu0 0
  %2082 = vmatprep.mubr.bf16.mxu0 0
  %2083 = vmatmul.mubr.bf16.gmra.mxu0 %v2045
  %v2084 = vpop.f32.mrf.mxu0
  %v2085 = vadd.f32 0.0, %v2084
  %v2086 = vpop.f32.mrf.mxu0
  %v2087 = vpop.f32.mrf.mxu0
  %v2088 = vpop.f32.mrf.mxu0
  %2089 = vdwg.mxu0
  %2090 = vrot.lane.b32.xlu0 %v189, 48
  %v2091 = vpop.permute.xlu0 %2090
  %v2093 = vsel %vm195, %v1943, 0
  %v2096 = vsel %vm606, %v2091, 0
  %2098 = vmatprep.subr.bf16.mxu0 0
  %2099 = vmatpush1.bf16.msra.mxu0 0
  %2100 = vmatprep.subr.bf16.mxu0 0
  %2101 = vmatpush1.bf16.msra.mxu0 0
  %2102 = vmatprep.subr.bf16.mxu0 0
  %2103 = vmatpush1.bf16.msra.mxu0 0
  %2104 = vmatprep.subr.bf16.mxu0 0
  %2105 = vmatpush1.bf16.msra.mxu0 0
  %2106 = vmatprep.subr.bf16.mxu0 0
  %2107 = vmatpush1.bf16.msra.mxu0 0
  %2108 = vmatprep.subr.bf16.mxu0 0
  %2109 = vmatpush1.bf16.msra.mxu0 0
  %2110 = vmatprep.subr.bf16.mxu0 0
  %2111 = vmatpush1.bf16.msra.mxu0 0
  %2112 = vmatprep.subr.bf16.mxu0 0
  %2113 = vmatpush1.bf16.msra.mxu0 %v2096
  %2114 = vmatprep.subr.bf16.mxu0 0
  %2115 = vmatpush2.bf16.msra.mxu0 0
  %2116 = vmatprep.subr.bf16.mxu0 0
  %2117 = vmatpush2.bf16.msra.mxu0 0
  %2118 = vmatprep.subr.bf16.mxu0 0
  %2119 = vmatpush2.bf16.msra.mxu0 0
  %2120 = vmatprep.subr.bf16.mxu0 0
  %2121 = vmatpush2.bf16.msra.mxu0 0
  %2122 = vmatprep.subr.bf16.mxu0 0
  %2123 = vmatpush2.bf16.msra.mxu0 0
  %2124 = vmatprep.subr.bf16.mxu0 0
  %2125 = vmatpush2.bf16.msra.mxu0 0
  %2126 = vmatprep.subr.bf16.mxu0 0
  %2127 = vmatpush2.bf16.msra.mxu0 0
  %2128 = vmatprep.subr.bf16.mxu0 0
  %2129 = vmatpush2.bf16.msra.mxu0 0
  %2130 = vmatprep.mubr.bf16.mxu0 0
  %2131 = vmatmul.mubr.bf16.gmra.mxu0 %v2093
  %v2132 = vpop.f32.mrf.mxu0
  %v2133 = vadd.f32 0.0, %v2132
  %v2134 = vpop.f32.mrf.mxu0
  %v2135 = vpop.f32.mrf.mxu0
  %v2136 = vpop.f32.mrf.mxu0
  %2137 = vdwg.mxu0
  %2138 = vrot.lane.b32.xlu0 %v190, 48
  %v2139 = vpop.permute.xlu0 %2138
  %v2141 = vsel %vm195, %v1944, 0
  %v2144 = vsel %vm606, %v2139, 0
  %2146 = vmatprep.subr.bf16.mxu0 0
  %2147 = vmatpush1.bf16.msra.mxu0 0
  %2148 = vmatprep.subr.bf16.mxu0 0
  %2149 = vmatpush1.bf16.msra.mxu0 0
  %2150 = vmatprep.subr.bf16.mxu0 0
  %2151 = vmatpush1.bf16.msra.mxu0 0
  %2152 = vmatprep.subr.bf16.mxu0 0
  %2153 = vmatpush1.bf16.msra.mxu0 0
  %2154 = vmatprep.subr.bf16.mxu0 0
  %2155 = vmatpush1.bf16.msra.mxu0 0
  %2156 = vmatprep.subr.bf16.mxu0 0
  %2157 = vmatpush1.bf16.msra.mxu0 0
  %2158 = vmatprep.subr.bf16.mxu0 0
  %2159 = vmatpush1.bf16.msra.mxu0 0
  %2160 = vmatprep.subr.bf16.mxu0 0
  %2161 = vmatpush1.bf16.msra.mxu0 %v2144
  %2162 = vmatprep.subr.bf16.mxu0 0
  %2163 = vmatpush2.bf16.msra.mxu0 0
  %2164 = vmatprep.subr.bf16.mxu0 0
  %2165 = vmatpush2.bf16.msra.mxu0 0
  %2166 = vmatprep.subr.bf16.mxu0 0
  %2167 = vmatpush2.bf16.msra.mxu0 0
  %2168 = vmatprep.subr.bf16.mxu0 0
  %2169 = vmatpush2.bf16.msra.mxu0 0
  %2170 = vmatprep.subr.bf16.mxu0 0
  %2171 = vmatpush2.bf16.msra.mxu0 0
  %2172 = vmatprep.subr.bf16.mxu0 0
  %2173 = vmatpush2.bf16.msra.mxu0 0
  %2174 = vmatprep.subr.bf16.mxu0 0
  %2175 = vmatpush2.bf16.msra.mxu0 0
  %2176 = vmatprep.subr.bf16.mxu0 0
  %2177 = vmatpush2.bf16.msra.mxu0 0
  %2178 = vmatprep.mubr.bf16.mxu0 0
  %2179 = vmatmul.mubr.bf16.gmra.mxu0 %v2141
  %v2180 = vpop.f32.mrf.mxu0
  %v2181 = vadd.f32 0.0, %v2180
  %v2182 = vpop.f32.mrf.mxu0
  %v2183 = vpop.f32.mrf.mxu0
  %v2184 = vpop.f32.mrf.mxu0
  %2185 = vdwg.mxu0
  %2186 = vrot.lane.b32.xlu0 %v191, 48
  %v2187 = vpop.permute.xlu0 %2186
  %v2189 = vsel %vm195, %v1945, 0
  %v2192 = vsel %vm606, %v2187, 0
  %2194 = vmatprep.subr.bf16.mxu0 0
  %2195 = vmatpush1.bf16.msra.mxu0 0
  %2196 = vmatprep.subr.bf16.mxu0 0
  %2197 = vmatpush1.bf16.msra.mxu0 0
  %2198 = vmatprep.subr.bf16.mxu0 0
  %2199 = vmatpush1.bf16.msra.mxu0 0
  %2200 = vmatprep.subr.bf16.mxu0 0
  %2201 = vmatpush1.bf16.msra.mxu0 0
  %2202 = vmatprep.subr.bf16.mxu0 0
  %2203 = vmatpush1.bf16.msra.mxu0 0
  %2204 = vmatprep.subr.bf16.mxu0 0
  %2205 = vmatpush1.bf16.msra.mxu0 0
  %2206 = vmatprep.subr.bf16.mxu0 0
  %2207 = vmatpush1.bf16.msra.mxu0 0
  %2208 = vmatprep.subr.bf16.mxu0 0
  %2209 = vmatpush1.bf16.msra.mxu0 %v2192
  %2210 = vmatprep.subr.bf16.mxu0 0
  %2211 = vmatpush2.bf16.msra.mxu0 0
  %2212 = vmatprep.subr.bf16.mxu0 0
  %2213 = vmatpush2.bf16.msra.mxu0 0
  %2214 = vmatprep.subr.bf16.mxu0 0
  %2215 = vmatpush2.bf16.msra.mxu0 0
  %2216 = vmatprep.subr.bf16.mxu0 0
  %2217 = vmatpush2.bf16.msra.mxu0 0
  %2218 = vmatprep.subr.bf16.mxu0 0
  %2219 = vmatpush2.bf16.msra.mxu0 0
  %2220 = vmatprep.subr.bf16.mxu0 0
  %2221 = vmatpush2.bf16.msra.mxu0 0
  %2222 = vmatprep.subr.bf16.mxu0 0
  %2223 = vmatpush2.bf16.msra.mxu0 0
  %2224 = vmatprep.subr.bf16.mxu0 0
  %2225 = vmatpush2.bf16.msra.mxu0 0
  %2226 = vmatprep.mubr.bf16.mxu0 0
  %2227 = vmatmul.mubr.bf16.gmra.mxu0 %v2189
  %v2228 = vpop.f32.mrf.mxu0
  %v2229 = vadd.f32 0.0, %v2228
  %v2230 = vpop.f32.mrf.mxu0
  %v2231 = vpop.f32.mrf.mxu0
  %v2232 = vpop.f32.mrf.mxu0
  %2233 = vdwg.mxu0
  %2234 = vrot.lane.b32.xlu0 %v186, 104
  %v2235 = vpop.permute.xlu0 %2234
  %2236 = vrot.lane.b32.xlu0 %v186, 72
  %v2237 = vpop.permute.xlu0 %2236
  %v2239 = vsel %vm195, %v2235, 0
  %v2242 = vsel %vm195, %v2237, 0
  %2244 = vmatprep.subr.bf16.mxu0 0
  %2245 = vmatpush1.bf16.xpose.msra.mxu0 0
  %2246 = vmatprep.subr.bf16.mxu0 0
  %2247 = vmatpush1.bf16.xpose.msra.mxu0 0
  %2248 = vmatprep.subr.bf16.mxu0 0
  %2249 = vmatpush1.bf16.xpose.msra.mxu0 0
  %2250 = vmatprep.subr.bf16.mxu0 0
  %2251 = vmatpush1.bf16.xpose.msra.mxu0 0
  %2252 = vmatprep.subr.bf16.mxu0 0
  %2253 = vmatpush1.bf16.xpose.msra.mxu0 0
  %2254 = vmatprep.subr.bf16.mxu0 0
  %2255 = vmatpush1.bf16.xpose.msra.mxu0 0
  %2256 = vmatprep.subr.bf16.mxu0 0
  %2257 = vmatpush1.bf16.xpose.msra.mxu0 0
  %2258 = vmatprep.subr.bf16.mxu0 0
  %2259 = vmatpush1.bf16.xpose.msra.mxu0 %v2242
  %2260 = vmatprep.subr.bf16.mxu0 0
  %2261 = vmatpush2.bf16.xpose.msra.mxu0 0
  %2262 = vmatprep.subr.bf16.mxu0 0
  %2263 = vmatpush2.bf16.xpose.msra.mxu0 0
  %2264 = vmatprep.subr.bf16.mxu0 0
  %2265 = vmatpush2.bf16.xpose.msra.mxu0 0
  %2266 = vmatprep.subr.bf16.mxu0 0
  %2267 = vmatpush2.bf16.xpose.msra.mxu0 0
  %2268 = vmatprep.subr.bf16.mxu0 0
  %2269 = vmatpush2.bf16.xpose.msra.mxu0 0
  %2270 = vmatprep.subr.bf16.mxu0 0
  %2271 = vmatpush2.bf16.xpose.msra.mxu0 0
  %2272 = vmatprep.subr.bf16.mxu0 0
  %2273 = vmatpush2.bf16.xpose.msra.mxu0 0
  %2274 = vmatprep.subr.bf16.mxu0 0
  %2275 = vmatpush2.bf16.xpose.msra.mxu0 0
  %2276 = vmatprep.mubr.bf16.mxu0 0
  %2277 = vmatmul.mubr.bf16.gmra.mxu0 %v2239
  %v2278 = vpop.f32.mrf.mxu0
  %v2279 = vadd.f32 0.0, %v2278
  %v2280 = vpop.f32.mrf.mxu0
  %v2281 = vpop.f32.mrf.mxu0
  %v2282 = vpop.f32.mrf.mxu0
  %2283 = vdwg.mxu0
  %2284 = vrot.lane.b32.xlu0 %v187, 104
  %v2285 = vpop.permute.xlu0 %2284
  %2286 = vrot.lane.b32.xlu0 %v187, 72
  %v2287 = vpop.permute.xlu0 %2286
  %v2289 = vsel %vm195, %v2285, 0
  %v2292 = vsel %vm195, %v2287, 0
  %2294 = vmatprep.subr.bf16.mxu0 0
  %2295 = vmatpush1.bf16.xpose.msra.mxu0 0
  %2296 = vmatprep.subr.bf16.mxu0 0
  %2297 = vmatpush1.bf16.xpose.msra.mxu0 0
  %2298 = vmatprep.subr.bf16.mxu0 0
  %2299 = vmatpush1.bf16.xpose.msra.mxu0 0
  %2300 = vmatprep.subr.bf16.mxu0 0
  %2301 = vmatpush1.bf16.xpose.msra.mxu0 0
  %2302 = vmatprep.subr.bf16.mxu0 0
  %2303 = vmatpush1.bf16.xpose.msra.mxu0 0
  %2304 = vmatprep.subr.bf16.mxu0 0
  %2305 = vmatpush1.bf16.xpose.msra.mxu0 0
  %2306 = vmatprep.subr.bf16.mxu0 0
  %2307 = vmatpush1.bf16.xpose.msra.mxu0 0
  %2308 = vmatprep.subr.bf16.mxu0 0
  %2309 = vmatpush1.bf16.xpose.msra.mxu0 %v2292
  %2310 = vmatprep.subr.bf16.mxu0 0
  %2311 = vmatpush2.bf16.xpose.msra.mxu0 0
  %2312 = vmatprep.subr.bf16.mxu0 0
  %2313 = vmatpush2.bf16.xpose.msra.mxu0 0
  %2314 = vmatprep.subr.bf16.mxu0 0
  %2315 = vmatpush2.bf16.xpose.msra.mxu0 0
  %2316 = vmatprep.subr.bf16.mxu0 0
  %2317 = vmatpush2.bf16.xpose.msra.mxu0 0
  %2318 = vmatprep.subr.bf16.mxu0 0
  %2319 = vmatpush2.bf16.xpose.msra.mxu0 0
  %2320 = vmatprep.subr.bf16.mxu0 0
  %2321 = vmatpush2.bf16.xpose.msra.mxu0 0
  %2322 = vmatprep.subr.bf16.mxu0 0
  %2323 = vmatpush2.bf16.xpose.msra.mxu0 0
  %2324 = vmatprep.subr.bf16.mxu0 0
  %2325 = vmatpush2.bf16.xpose.msra.mxu0 0
  %2326 = vmatprep.mubr.bf16.mxu0 0
  %2327 = vmatmul.mubr.bf16.gmra.mxu0 %v2289
  %v2328 = vpop.f32.mrf.mxu0
  %v2329 = vadd.f32 0.0, %v2328
  %v2330 = vpop.f32.mrf.mxu0
  %v2331 = vpop.f32.mrf.mxu0
  %v2332 = vpop.f32.mrf.mxu0
  %2333 = vdwg.mxu0
  %2334 = vrot.lane.b32.xlu0 %v188, 104
  %v2335 = vpop.permute.xlu0 %2334
  %2336 = vrot.lane.b32.xlu0 %v188, 72
  %v2337 = vpop.permute.xlu0 %2336
  %v2339 = vsel %vm195, %v2335, 0
  %v2342 = vsel %vm195, %v2337, 0
  %2344 = vmatprep.subr.bf16.mxu0 0
  %2345 = vmatpush1.bf16.xpose.msra.mxu0 0
  %2346 = vmatprep.subr.bf16.mxu0 0
  %2347 = vmatpush1.bf16.xpose.msra.mxu0 0
  %2348 = vmatprep.subr.bf16.mxu0 0
  %2349 = vmatpush1.bf16.xpose.msra.mxu0 0
  %2350 = vmatprep.subr.bf16.mxu0 0
  %2351 = vmatpush1.bf16.xpose.msra.mxu0 0
  %2352 = vmatprep.subr.bf16.mxu0 0
  %2353 = vmatpush1.bf16.xpose.msra.mxu0 0
  %2354 = vmatprep.subr.bf16.mxu0 0
  %2355 = vmatpush1.bf16.xpose.msra.mxu0 0
  %2356 = vmatprep.subr.bf16.mxu0 0
  %2357 = vmatpush1.bf16.xpose.msra.mxu0 0
  %2358 = vmatprep.subr.bf16.mxu0 0
  %2359 = vmatpush1.bf16.xpose.msra.mxu0 %v2342
  %2360 = vmatprep.subr.bf16.mxu0 0
  %2361 = vmatpush2.bf16.xpose.msra.mxu0 0
  %2362 = vmatprep.subr.bf16.mxu0 0
  %2363 = vmatpush2.bf16.xpose.msra.mxu0 0
  %2364 = vmatprep.subr.bf16.mxu0 0
  %2365 = vmatpush2.bf16.xpose.msra.mxu0 0
  %2366 = vmatprep.subr.bf16.mxu0 0
  %2367 = vmatpush2.bf16.xpose.msra.mxu0 0
  %2368 = vmatprep.subr.bf16.mxu0 0
  %2369 = vmatpush2.bf16.xpose.msra.mxu0 0
  %2370 = vmatprep.subr.bf16.mxu0 0
  %2371 = vmatpush2.bf16.xpose.msra.mxu0 0
  %2372 = vmatprep.subr.bf16.mxu0 0
  %2373 = vmatpush2.bf16.xpose.msra.mxu0 0
  %2374 = vmatprep.subr.bf16.mxu0 0
  %2375 = vmatpush2.bf16.xpose.msra.mxu0 0
  %2376 = vmatprep.mubr.bf16.mxu0 0
  %2377 = vmatmul.mubr.bf16.gmra.mxu0 %v2339
  %v2378 = vpop.f32.mrf.mxu0
  %v2379 = vadd.f32 0.0, %v2378
  %v2380 = vpop.f32.mrf.mxu0
  %v2381 = vpop.f32.mrf.mxu0
  %v2382 = vpop.f32.mrf.mxu0
  %2383 = vdwg.mxu0
  %2384 = vrot.lane.b32.xlu0 %v189, 104
  %v2385 = vpop.permute.xlu0 %2384
  %2386 = vrot.lane.b32.xlu0 %v189, 72
  %v2387 = vpop.permute.xlu0 %2386
  %v2389 = vsel %vm195, %v2385, 0
  %v2392 = vsel %vm195, %v2387, 0
  %2394 = vmatprep.subr.bf16.mxu0 0
  %2395 = vmatpush1.bf16.xpose.msra.mxu0 0
  %2396 = vmatprep.subr.bf16.mxu0 0
  %2397 = vmatpush1.bf16.xpose.msra.mxu0 0
  %2398 = vmatprep.subr.bf16.mxu0 0
  %2399 = vmatpush1.bf16.xpose.msra.mxu0 0
  %2400 = vmatprep.subr.bf16.mxu0 0
  %2401 = vmatpush1.bf16.xpose.msra.mxu0 0
  %2402 = vmatprep.subr.bf16.mxu0 0
  %2403 = vmatpush1.bf16.xpose.msra.mxu0 0
  %2404 = vmatprep.subr.bf16.mxu0 0
  %2405 = vmatpush1.bf16.xpose.msra.mxu0 0
  %2406 = vmatprep.subr.bf16.mxu0 0
  %2407 = vmatpush1.bf16.xpose.msra.mxu0 0
  %2408 = vmatprep.subr.bf16.mxu0 0
  %2409 = vmatpush1.bf16.xpose.msra.mxu0 %v2392
  %2410 = vmatprep.subr.bf16.mxu0 0
  %2411 = vmatpush2.bf16.xpose.msra.mxu0 0
  %2412 = vmatprep.subr.bf16.mxu0 0
  %2413 = vmatpush2.bf16.xpose.msra.mxu0 0
  %2414 = vmatprep.subr.bf16.mxu0 0
  %2415 = vmatpush2.bf16.xpose.msra.mxu0 0
  %2416 = vmatprep.subr.bf16.mxu0 0
  %2417 = vmatpush2.bf16.xpose.msra.mxu0 0
  %2418 = vmatprep.subr.bf16.mxu0 0
  %2419 = vmatpush2.bf16.xpose.msra.mxu0 0
  %2420 = vmatprep.subr.bf16.mxu0 0
  %2421 = vmatpush2.bf16.xpose.msra.mxu0 0
  %2422 = vmatprep.subr.bf16.mxu0 0
  %2423 = vmatpush2.bf16.xpose.msra.mxu0 0
  %2424 = vmatprep.subr.bf16.mxu0 0
  %2425 = vmatpush2.bf16.xpose.msra.mxu0 0
  %2426 = vmatprep.mubr.bf16.mxu0 0
  %2427 = vmatmul.mubr.bf16.gmra.mxu0 %v2389
  %v2428 = vpop.f32.mrf.mxu0
  %v2429 = vadd.f32 0.0, %v2428
  %v2430 = vpop.f32.mrf.mxu0
  %v2431 = vpop.f32.mrf.mxu0
  %v2432 = vpop.f32.mrf.mxu0
  %2433 = vdwg.mxu0
  %2434 = vrot.lane.b32.xlu0 %v190, 104
  %v2435 = vpop.permute.xlu0 %2434
  %2436 = vrot.lane.b32.xlu0 %v190, 72
  %v2437 = vpop.permute.xlu0 %2436
  %v2439 = vsel %vm195, %v2435, 0
  %v2442 = vsel %vm195, %v2437, 0
  %2444 = vmatprep.subr.bf16.mxu0 0
  %2445 = vmatpush1.bf16.xpose.msra.mxu0 0
  %2446 = vmatprep.subr.bf16.mxu0 0
  %2447 = vmatpush1.bf16.xpose.msra.mxu0 0
  %2448 = vmatprep.subr.bf16.mxu0 0
  %2449 = vmatpush1.bf16.xpose.msra.mxu0 0
  %2450 = vmatprep.subr.bf16.mxu0 0
  %2451 = vmatpush1.bf16.xpose.msra.mxu0 0
  %2452 = vmatprep.subr.bf16.mxu0 0
  %2453 = vmatpush1.bf16.xpose.msra.mxu0 0
  %2454 = vmatprep.subr.bf16.mxu0 0
  %2455 = vmatpush1.bf16.xpose.msra.mxu0 0
  %2456 = vmatprep.subr.bf16.mxu0 0
  %2457 = vmatpush1.bf16.xpose.msra.mxu0 0
  %2458 = vmatprep.subr.bf16.mxu0 0
  %2459 = vmatpush1.bf16.xpose.msra.mxu0 %v2442
  %2460 = vmatprep.subr.bf16.mxu0 0
  %2461 = vmatpush2.bf16.xpose.msra.mxu0 0
  %2462 = vmatprep.subr.bf16.mxu0 0
  %2463 = vmatpush2.bf16.xpose.msra.mxu0 0
  %2464 = vmatprep.subr.bf16.mxu0 0
  %2465 = vmatpush2.bf16.xpose.msra.mxu0 0
  %2466 = vmatprep.subr.bf16.mxu0 0
  %2467 = vmatpush2.bf16.xpose.msra.mxu0 0
  %2468 = vmatprep.subr.bf16.mxu0 0
  %2469 = vmatpush2.bf16.xpose.msra.mxu0 0
  %2470 = vmatprep.subr.bf16.mxu0 0
  %2471 = vmatpush2.bf16.xpose.msra.mxu0 0
  %2472 = vmatprep.subr.bf16.mxu0 0
  %2473 = vmatpush2.bf16.xpose.msra.mxu0 0
  %2474 = vmatprep.subr.bf16.mxu0 0
  %2475 = vmatpush2.bf16.xpose.msra.mxu0 0
  %2476 = vmatprep.mubr.bf16.mxu0 0
  %2477 = vmatmul.mubr.bf16.gmra.mxu0 %v2439
  %v2478 = vpop.f32.mrf.mxu0
  %v2479 = vadd.f32 0.0, %v2478
  %v2480 = vpop.f32.mrf.mxu0
  %v2481 = vpop.f32.mrf.mxu0
  %v2482 = vpop.f32.mrf.mxu0
  %2483 = vdwg.mxu0
  %2484 = vrot.lane.b32.xlu0 %v191, 104
  %v2485 = vpop.permute.xlu0 %2484
  %2486 = vrot.lane.b32.xlu0 %v191, 72
  %v2487 = vpop.permute.xlu0 %2486
  %v2489 = vsel %vm195, %v2485, 0
  %v2492 = vsel %vm195, %v2487, 0
  %2494 = vmatprep.subr.bf16.mxu0 0
  %2495 = vmatpush1.bf16.xpose.msra.mxu0 0
  %2496 = vmatprep.subr.bf16.mxu0 0
  %2497 = vmatpush1.bf16.xpose.msra.mxu0 0
  %2498 = vmatprep.subr.bf16.mxu0 0
  %2499 = vmatpush1.bf16.xpose.msra.mxu0 0
  %2500 = vmatprep.subr.bf16.mxu0 0
  %2501 = vmatpush1.bf16.xpose.msra.mxu0 0
  %2502 = vmatprep.subr.bf16.mxu0 0
  %2503 = vmatpush1.bf16.xpose.msra.mxu0 0
  %2504 = vmatprep.subr.bf16.mxu0 0
  %2505 = vmatpush1.bf16.xpose.msra.mxu0 0
  %2506 = vmatprep.subr.bf16.mxu0 0
  %2507 = vmatpush1.bf16.xpose.msra.mxu0 0
  %2508 = vmatprep.subr.bf16.mxu0 0
  %2509 = vmatpush1.bf16.xpose.msra.mxu0 %v2492
  %2510 = vmatprep.subr.bf16.mxu0 0
  %2511 = vmatpush2.bf16.xpose.msra.mxu0 0
  %2512 = vmatprep.subr.bf16.mxu0 0
  %2513 = vmatpush2.bf16.xpose.msra.mxu0 0
  %2514 = vmatprep.subr.bf16.mxu0 0
  %2515 = vmatpush2.bf16.xpose.msra.mxu0 0
  %2516 = vmatprep.subr.bf16.mxu0 0
  %2517 = vmatpush2.bf16.xpose.msra.mxu0 0
  %2518 = vmatprep.subr.bf16.mxu0 0
  %2519 = vmatpush2.bf16.xpose.msra.mxu0 0
  %2520 = vmatprep.subr.bf16.mxu0 0
  %2521 = vmatpush2.bf16.xpose.msra.mxu0 0
  %2522 = vmatprep.subr.bf16.mxu0 0
  %2523 = vmatpush2.bf16.xpose.msra.mxu0 0
  %2524 = vmatprep.subr.bf16.mxu0 0
  %2525 = vmatpush2.bf16.xpose.msra.mxu0 0
  %2526 = vmatprep.mubr.bf16.mxu0 0
  %2527 = vmatmul.mubr.bf16.gmra.mxu0 %v2489
  %v2528 = vpop.f32.mrf.mxu0
  %v2529 = vadd.f32 0.0, %v2528
  %v2530 = vpop.f32.mrf.mxu0
  %v2531 = vpop.f32.mrf.mxu0
  %v2532 = vpop.f32.mrf.mxu0
  %2533 = vdwg.mxu0
  %v2534 = vmul.f32 %v2279, 0.35355338
  %v2535 = vmul.f32 %v2329, 0.35355338
  %v2536 = vmul.f32 %v2379, 0.35355338
  %v2537 = vmul.f32 %v2429, 0.35355338
  %v2538 = vmul.f32 %v2479, 0.35355338
  %v2539 = vmul.f32 %v2529, 0.35355338
  %v2540 = vadd.f32 %v2534, %v496
  %v2541 = vadd.f32 %v2535, %v500
  %v2542 = vadd.f32 %v2536, %v504
  %v2543 = vadd.f32 %v2537, %v508
  %v2544 = vadd.f32 %v2538, %v512
  %v2545 = vadd.f32 %v2539, %v516
  %v2546 = vsel %vm195, %v2540, -inf
  %2547 = vmax.xlane.f32.xlu0 %v2546
  %v2548 = vpop.xlane.xlu0 %2547
  %v2549 = vsel %vm195, %v2541, -inf
  %2550 = vmax.xlane.f32.xlu0 %v2549
  %v2551 = vpop.xlane.xlu0 %2550
  %v2552 = vsel %vm195, %v2542, -inf
  %2553 = vmax.xlane.f32.xlu0 %v2552
  %v2554 = vpop.xlane.xlu0 %2553
  %v2555 = vsel %vm195, %v2543, -inf
  %2556 = vmax.xlane.f32.xlu0 %v2555
  %v2557 = vpop.xlane.xlu0 %2556
  %v2558 = vsel %vm195, %v2544, -inf
  %2559 = vmax.xlane.f32.xlu0 %v2558
  %v2560 = vpop.xlane.xlu0 %2559
  %v2561 = vsel %vm195, %v2545, -inf
  %2562 = vmax.xlane.f32.xlu0 %v2561
  %v2563 = vpop.xlane.xlu0 %2562
  %v2564 = vsub.f32 %v2540, %v2548
  %v2565 = vsub.f32 %v2541, %v2551
  %v2566 = vsub.f32 %v2542, %v2554
  %v2567 = vsub.f32 %v2543, %v2557
  %v2568 = vsub.f32 %v2544, %v2560
  %v2569 = vsub.f32 %v2545, %v2563
  %v2570 = vmul.f32 %v2564, 1.442695
  %v2571 = vpow.pop %v2570
  %v2572 = vmul.f32 %v2565, 1.442695
  %v2573 = vpow.pop %v2572
  %v2574 = vmul.f32 %v2566, 1.442695
  %v2575 = vpow.pop %v2574
  %v2576 = vmul.f32 %v2567, 1.442695
  %v2577 = vpow.pop %v2576
  %v2578 = vmul.f32 %v2568, 1.442695
  %v2579 = vpow.pop %v2578
  %v2580 = vmul.f32 %v2569, 1.442695
  %v2581 = vpow.pop %v2580
  %v2582 = vsel %vm195, %v2571, 0.0
  %2583 = vadd.xlane.f32.xlu0 %v2582
  %v2584 = vpop.xlane.xlu0 %2583
  %v2585 = vsel %vm195, %v2573, 0.0
  %2586 = vadd.xlane.f32.xlu0 %v2585
  %v2587 = vpop.xlane.xlu0 %2586
  %v2588 = vsel %vm195, %v2575, 0.0
  %2589 = vadd.xlane.f32.xlu0 %v2588
  %v2590 = vpop.xlane.xlu0 %2589
  %v2591 = vsel %vm195, %v2577, 0.0
  %2592 = vadd.xlane.f32.xlu0 %v2591
  %v2593 = vpop.xlane.xlu0 %2592
  %v2594 = vsel %vm195, %v2579, 0.0
  %2595 = vadd.xlane.f32.xlu0 %v2594
  %v2596 = vpop.xlane.xlu0 %2595
  %v2597 = vsel %vm195, %v2581, 0.0
  %2598 = vadd.xlane.f32.xlu0 %v2597
  %v2599 = vpop.xlane.xlu0 %2598
  %v2600 = vrcp.pop %v2584
  %v2601 = vrcp.pop %v2587
  %v2602 = vrcp.pop %v2590
  %v2603 = vrcp.pop %v2593
  %v2604 = vrcp.pop %v2596
  %v2605 = vrcp.pop %v2599
  %v2606 = vmul.f32 %v2571, %v2600
  %v2607 = vmul.f32 %v2573, %v2601
  %v2608 = vmul.f32 %v2575, %v2602
  %v2609 = vmul.f32 %v2577, %v2603
  %v2610 = vmul.f32 %v2579, %v2604
  %v2611 = vmul.f32 %v2581, %v2605
  %v2612 = vpack.c.bf16 %v2606, %v2606
  %v2613 = vpack.c.bf16 %v2607, %v2607
  %v2614 = vpack.c.bf16 %v2608, %v2608
  %v2615 = vpack.c.bf16 %v2609, %v2609
  %v2616 = vpack.c.bf16 %v2610, %v2610
  %v2617 = vpack.c.bf16 %v2611, %v2611
  %2618 = vrot.lane.b32.xlu0 %v186, 40
  %v2619 = vpop.permute.xlu0 %2618
  %v2621 = vsel %vm195, %v2612, 0
  %v2624 = vsel %vm606, %v2619, 0
  %2626 = vmatprep.subr.bf16.mxu0 0
  %2627 = vmatpush1.bf16.msra.mxu0 0
  %2628 = vmatprep.subr.bf16.mxu0 0
  %2629 = vmatpush1.bf16.msra.mxu0 0
  %2630 = vmatprep.subr.bf16.mxu0 0
  %2631 = vmatpush1.bf16.msra.mxu0 0
  %2632 = vmatprep.subr.bf16.mxu0 0
  %2633 = vmatpush1.bf16.msra.mxu0 0
  %2634 = vmatprep.subr.bf16.mxu0 0
  %2635 = vmatpush1.bf16.msra.mxu0 0
  %2636 = vmatprep.subr.bf16.mxu0 0
  %2637 = vmatpush1.bf16.msra.mxu0 0
  %2638 = vmatprep.subr.bf16.mxu0 0
  %2639 = vmatpush1.bf16.msra.mxu0 0
  %2640 = vmatprep.subr.bf16.mxu0 0
  %2641 = vmatpush1.bf16.msra.mxu0 %v2624
  %2642 = vmatprep.subr.bf16.mxu0 0
  %2643 = vmatpush2.bf16.msra.mxu0 0
  %2644 = vmatprep.subr.bf16.mxu0 0
  %2645 = vmatpush2.bf16.msra.mxu0 0
  %2646 = vmatprep.subr.bf16.mxu0 0
  %2647 = vmatpush2.bf16.msra.mxu0 0
  %2648 = vmatprep.subr.bf16.mxu0 0
  %2649 = vmatpush2.bf16.msra.mxu0 0
  %2650 = vmatprep.subr.bf16.mxu0 0
  %2651 = vmatpush2.bf16.msra.mxu0 0
  %2652 = vmatprep.subr.bf16.mxu0 0
  %2653 = vmatpush2.bf16.msra.mxu0 0
  %2654 = vmatprep.subr.bf16.mxu0 0
  %2655 = vmatpush2.bf16.msra.mxu0 0
  %2656 = vmatprep.subr.bf16.mxu0 0
  %2657 = vmatpush2.bf16.msra.mxu0 0
  %2658 = vmatprep.mubr.bf16.mxu0 0
  %2659 = vmatmul.mubr.bf16.gmra.mxu0 %v2621
  %v2660 = vpop.f32.mrf.mxu0
  %v2661 = vadd.f32 0.0, %v2660
  %v2662 = vpop.f32.mrf.mxu0
  %v2663 = vpop.f32.mrf.mxu0
  %v2664 = vpop.f32.mrf.mxu0
  %2665 = vdwg.mxu0
  %2666 = vrot.lane.b32.xlu0 %v187, 40
  %v2667 = vpop.permute.xlu0 %2666
  %v2669 = vsel %vm195, %v2613, 0
  %v2672 = vsel %vm606, %v2667, 0
  %2674 = vmatprep.subr.bf16.mxu0 0
  %2675 = vmatpush1.bf16.msra.mxu0 0
  %2676 = vmatprep.subr.bf16.mxu0 0
  %2677 = vmatpush1.bf16.msra.mxu0 0
  %2678 = vmatprep.subr.bf16.mxu0 0
  %2679 = vmatpush1.bf16.msra.mxu0 0
  %2680 = vmatprep.subr.bf16.mxu0 0
  %2681 = vmatpush1.bf16.msra.mxu0 0
  %2682 = vmatprep.subr.bf16.mxu0 0
  %2683 = vmatpush1.bf16.msra.mxu0 0
  %2684 = vmatprep.subr.bf16.mxu0 0
  %2685 = vmatpush1.bf16.msra.mxu0 0
  %2686 = vmatprep.subr.bf16.mxu0 0
  %2687 = vmatpush1.bf16.msra.mxu0 0
  %2688 = vmatprep.subr.bf16.mxu0 0
  %2689 = vmatpush1.bf16.msra.mxu0 %v2672
  %2690 = vmatprep.subr.bf16.mxu0 0
  %2691 = vmatpush2.bf16.msra.mxu0 0
  %2692 = vmatprep.subr.bf16.mxu0 0
  %2693 = vmatpush2.bf16.msra.mxu0 0
  %2694 = vmatprep.subr.bf16.mxu0 0
  %2695 = vmatpush2.bf16.msra.mxu0 0
  %2696 = vmatprep.subr.bf16.mxu0 0
  %2697 = vmatpush2.bf16.msra.mxu0 0
  %2698 = vmatprep.subr.bf16.mxu0 0
  %2699 = vmatpush2.bf16.msra.mxu0 0
  %2700 = vmatprep.subr.bf16.mxu0 0
  %2701 = vmatpush2.bf16.msra.mxu0 0
  %2702 = vmatprep.subr.bf16.mxu0 0
  %2703 = vmatpush2.bf16.msra.mxu0 0
  %2704 = vmatprep.subr.bf16.mxu0 0
  %2705 = vmatpush2.bf16.msra.mxu0 0
  %2706 = vmatprep.mubr.bf16.mxu0 0
  %2707 = vmatmul.mubr.bf16.gmra.mxu0 %v2669
  %v2708 = vpop.f32.mrf.mxu0
  %v2709 = vadd.f32 0.0, %v2708
  %v2710 = vpop.f32.mrf.mxu0
  %v2711 = vpop.f32.mrf.mxu0
  %v2712 = vpop.f32.mrf.mxu0
  %2713 = vdwg.mxu0
  %2714 = vrot.lane.b32.xlu0 %v188, 40
  %v2715 = vpop.permute.xlu0 %2714
  %v2717 = vsel %vm195, %v2614, 0
  %v2720 = vsel %vm606, %v2715, 0
  %2722 = vmatprep.subr.bf16.mxu0 0
  %2723 = vmatpush1.bf16.msra.mxu0 0
  %2724 = vmatprep.subr.bf16.mxu0 0
  %2725 = vmatpush1.bf16.msra.mxu0 0
  %2726 = vmatprep.subr.bf16.mxu0 0
  %2727 = vmatpush1.bf16.msra.mxu0 0
  %2728 = vmatprep.subr.bf16.mxu0 0
  %2729 = vmatpush1.bf16.msra.mxu0 0
  %2730 = vmatprep.subr.bf16.mxu0 0
  %2731 = vmatpush1.bf16.msra.mxu0 0
  %2732 = vmatprep.subr.bf16.mxu0 0
  %2733 = vmatpush1.bf16.msra.mxu0 0
  %2734 = vmatprep.subr.bf16.mxu0 0
  %2735 = vmatpush1.bf16.msra.mxu0 0
  %2736 = vmatprep.subr.bf16.mxu0 0
  %2737 = vmatpush1.bf16.msra.mxu0 %v2720
  %2738 = vmatprep.subr.bf16.mxu0 0
  %2739 = vmatpush2.bf16.msra.mxu0 0
  %2740 = vmatprep.subr.bf16.mxu0 0
  %2741 = vmatpush2.bf16.msra.mxu0 0
  %2742 = vmatprep.subr.bf16.mxu0 0
  %2743 = vmatpush2.bf16.msra.mxu0 0
  %2744 = vmatprep.subr.bf16.mxu0 0
  %2745 = vmatpush2.bf16.msra.mxu0 0
  %2746 = vmatprep.subr.bf16.mxu0 0
  %2747 = vmatpush2.bf16.msra.mxu0 0
  %2748 = vmatprep.subr.bf16.mxu0 0
  %2749 = vmatpush2.bf16.msra.mxu0 0
  %2750 = vmatprep.subr.bf16.mxu0 0
  %2751 = vmatpush2.bf16.msra.mxu0 0
  %2752 = vmatprep.subr.bf16.mxu0 0
  %2753 = vmatpush2.bf16.msra.mxu0 0
  %2754 = vmatprep.mubr.bf16.mxu0 0
  %2755 = vmatmul.mubr.bf16.gmra.mxu0 %v2717
  %v2756 = vpop.f32.mrf.mxu0
  %v2757 = vadd.f32 0.0, %v2756
  %v2758 = vpop.f32.mrf.mxu0
  %v2759 = vpop.f32.mrf.mxu0
  %v2760 = vpop.f32.mrf.mxu0
  %2761 = vdwg.mxu0
  %2762 = vrot.lane.b32.xlu0 %v189, 40
  %v2763 = vpop.permute.xlu0 %2762
  %v2765 = vsel %vm195, %v2615, 0
  %v2768 = vsel %vm606, %v2763, 0
  %2770 = vmatprep.subr.bf16.mxu0 0
  %2771 = vmatpush1.bf16.msra.mxu0 0
  %2772 = vmatprep.subr.bf16.mxu0 0
  %2773 = vmatpush1.bf16.msra.mxu0 0
  %2774 = vmatprep.subr.bf16.mxu0 0
  %2775 = vmatpush1.bf16.msra.mxu0 0
  %2776 = vmatprep.subr.bf16.mxu0 0
  %2777 = vmatpush1.bf16.msra.mxu0 0
  %2778 = vmatprep.subr.bf16.mxu0 0
  %2779 = vmatpush1.bf16.msra.mxu0 0
  %2780 = vmatprep.subr.bf16.mxu0 0
  %2781 = vmatpush1.bf16.msra.mxu0 0
  %2782 = vmatprep.subr.bf16.mxu0 0
  %2783 = vmatpush1.bf16.msra.mxu0 0
  %2784 = vmatprep.subr.bf16.mxu0 0
  %2785 = vmatpush1.bf16.msra.mxu0 %v2768
  %2786 = vmatprep.subr.bf16.mxu0 0
  %2787 = vmatpush2.bf16.msra.mxu0 0
  %2788 = vmatprep.subr.bf16.mxu0 0
  %2789 = vmatpush2.bf16.msra.mxu0 0
  %2790 = vmatprep.subr.bf16.mxu0 0
  %2791 = vmatpush2.bf16.msra.mxu0 0
  %2792 = vmatprep.subr.bf16.mxu0 0
  %2793 = vmatpush2.bf16.msra.mxu0 0
  %2794 = vmatprep.subr.bf16.mxu0 0
  %2795 = vmatpush2.bf16.msra.mxu0 0
  %2796 = vmatprep.subr.bf16.mxu0 0
  %2797 = vmatpush2.bf16.msra.mxu0 0
  %2798 = vmatprep.subr.bf16.mxu0 0
  %2799 = vmatpush2.bf16.msra.mxu0 0
  %2800 = vmatprep.subr.bf16.mxu0 0
  %2801 = vmatpush2.bf16.msra.mxu0 0
  %2802 = vmatprep.mubr.bf16.mxu0 0
  %2803 = vmatmul.mubr.bf16.gmra.mxu0 %v2765
  %v2804 = vpop.f32.mrf.mxu0
  %v2805 = vadd.f32 0.0, %v2804
  %v2806 = vpop.f32.mrf.mxu0
  %v2807 = vpop.f32.mrf.mxu0
  %v2808 = vpop.f32.mrf.mxu0
  %2809 = vdwg.mxu0
  %2810 = vrot.lane.b32.xlu0 %v190, 40
  %v2811 = vpop.permute.xlu0 %2810
  %v2813 = vsel %vm195, %v2616, 0
  %v2816 = vsel %vm606, %v2811, 0
  %2818 = vmatprep.subr.bf16.mxu0 0
  %2819 = vmatpush1.bf16.msra.mxu0 0
  %2820 = vmatprep.subr.bf16.mxu0 0
  %2821 = vmatpush1.bf16.msra.mxu0 0
  %2822 = vmatprep.subr.bf16.mxu0 0
  %2823 = vmatpush1.bf16.msra.mxu0 0
  %2824 = vmatprep.subr.bf16.mxu0 0
  %2825 = vmatpush1.bf16.msra.mxu0 0
  %2826 = vmatprep.subr.bf16.mxu0 0
  %2827 = vmatpush1.bf16.msra.mxu0 0
  %2828 = vmatprep.subr.bf16.mxu0 0
  %2829 = vmatpush1.bf16.msra.mxu0 0
  %2830 = vmatprep.subr.bf16.mxu0 0
  %2831 = vmatpush1.bf16.msra.mxu0 0
  %2832 = vmatprep.subr.bf16.mxu0 0
  %2833 = vmatpush1.bf16.msra.mxu0 %v2816
  %2834 = vmatprep.subr.bf16.mxu0 0
  %2835 = vmatpush2.bf16.msra.mxu0 0
  %2836 = vmatprep.subr.bf16.mxu0 0
  %2837 = vmatpush2.bf16.msra.mxu0 0
  %2838 = vmatprep.subr.bf16.mxu0 0
  %2839 = vmatpush2.bf16.msra.mxu0 0
  %2840 = vmatprep.subr.bf16.mxu0 0
  %2841 = vmatpush2.bf16.msra.mxu0 0
  %2842 = vmatprep.subr.bf16.mxu0 0
  %2843 = vmatpush2.bf16.msra.mxu0 0
  %2844 = vmatprep.subr.bf16.mxu0 0
  %2845 = vmatpush2.bf16.msra.mxu0 0
  %2846 = vmatprep.subr.bf16.mxu0 0
  %2847 = vmatpush2.bf16.msra.mxu0 0
  %2848 = vmatprep.subr.bf16.mxu0 0
  %2849 = vmatpush2.bf16.msra.mxu0 0
  %2850 = vmatprep.mubr.bf16.mxu0 0
  %2851 = vmatmul.mubr.bf16.gmra.mxu0 %v2813
  %v2852 = vpop.f32.mrf.mxu0
  %v2853 = vadd.f32 0.0, %v2852
  %v2854 = vpop.f32.mrf.mxu0
  %v2855 = vpop.f32.mrf.mxu0
  %v2856 = vpop.f32.mrf.mxu0
  %2857 = vdwg.mxu0
  %2858 = vrot.lane.b32.xlu0 %v191, 40
  %v2859 = vpop.permute.xlu0 %2858
  %v2861 = vsel %vm195, %v2617, 0
  %v2864 = vsel %vm606, %v2859, 0
  %2866 = vmatprep.subr.bf16.mxu0 0
  %2867 = vmatpush1.bf16.msra.mxu0 0
  %2868 = vmatprep.subr.bf16.mxu0 0
  %2869 = vmatpush1.bf16.msra.mxu0 0
  %2870 = vmatprep.subr.bf16.mxu0 0
  %2871 = vmatpush1.bf16.msra.mxu0 0
  %2872 = vmatprep.subr.bf16.mxu0 0
  %2873 = vmatpush1.bf16.msra.mxu0 0
  %2874 = vmatprep.subr.bf16.mxu0 0
  %2875 = vmatpush1.bf16.msra.mxu0 0
  %2876 = vmatprep.subr.bf16.mxu0 0
  %2877 = vmatpush1.bf16.msra.mxu0 0
  %2878 = vmatprep.subr.bf16.mxu0 0
  %2879 = vmatpush1.bf16.msra.mxu0 0
  %2880 = vmatprep.subr.bf16.mxu0 0
  %2881 = vmatpush1.bf16.msra.mxu0 %v2864
  %2882 = vmatprep.subr.bf16.mxu0 0
  %2883 = vmatpush2.bf16.msra.mxu0 0
  %2884 = vmatprep.subr.bf16.mxu0 0
  %2885 = vmatpush2.bf16.msra.mxu0 0
  %2886 = vmatprep.subr.bf16.mxu0 0
  %2887 = vmatpush2.bf16.msra.mxu0 0
  %2888 = vmatprep.subr.bf16.mxu0 0
  %2889 = vmatpush2.bf16.msra.mxu0 0
  %2890 = vmatprep.subr.bf16.mxu0 0
  %2891 = vmatpush2.bf16.msra.mxu0 0
  %2892 = vmatprep.subr.bf16.mxu0 0
  %2893 = vmatpush2.bf16.msra.mxu0 0
  %2894 = vmatprep.subr.bf16.mxu0 0
  %2895 = vmatpush2.bf16.msra.mxu0 0
  %2896 = vmatprep.subr.bf16.mxu0 0
  %2897 = vmatpush2.bf16.msra.mxu0 0
  %2898 = vmatprep.mubr.bf16.mxu0 0
  %2899 = vmatmul.mubr.bf16.gmra.mxu0 %v2861
  %v2900 = vpop.f32.mrf.mxu0
  %v2901 = vadd.f32 0.0, %v2900
  %v2902 = vpop.f32.mrf.mxu0
  %v2903 = vpop.f32.mrf.mxu0
  %v2904 = vpop.f32.mrf.mxu0
  %2905 = vdwg.mxu0
  %2912 = vrot.lane.b32.xlu0 %v1317, 8
  %v2913 = vpop.permute.xlu0 %2912
  %2914 = vrot.lane.b32.xlu0 %v1365, 8
  %v2915 = vpop.permute.xlu0 %2914
  %2916 = vrot.lane.b32.xlu0 %v1413, 8
  %v2917 = vpop.permute.xlu0 %2916
  %2918 = vrot.lane.b32.xlu0 %v1461, 8
  %v2919 = vpop.permute.xlu0 %2918
  %2920 = vrot.lane.b32.xlu0 %v1509, 8
  %v2921 = vpop.permute.xlu0 %2920
  %2922 = vrot.lane.b32.xlu0 %v1557, 8
  %v2923 = vpop.permute.xlu0 %2922
  %2936 = vrot.lane.b32.xlu0 %v1989, 16
  %v2937 = vpop.permute.xlu0 %2936
  %2938 = vrot.lane.b32.xlu0 %v2037, 16
  %v2939 = vpop.permute.xlu0 %2938
  %2940 = vrot.lane.b32.xlu0 %v2085, 16
  %v2941 = vpop.permute.xlu0 %2940
  %2942 = vrot.lane.b32.xlu0 %v2133, 16
  %v2943 = vpop.permute.xlu0 %2942
  %2944 = vrot.lane.b32.xlu0 %v2181, 16
  %v2945 = vpop.permute.xlu0 %2944
  %2946 = vrot.lane.b32.xlu0 %v2229, 16
  %v2947 = vpop.permute.xlu0 %2946
  %2960 = vrot.lane.b32.xlu0 %v2661, 24
  %v2961 = vpop.permute.xlu0 %2960
  %2962 = vrot.lane.b32.xlu0 %v2709, 24
  %v2963 = vpop.permute.xlu0 %2962
  %2964 = vrot.lane.b32.xlu0 %v2757, 24
  %v2965 = vpop.permute.xlu0 %2964
  %2966 = vrot.lane.b32.xlu0 %v2805, 24
  %v2967 = vpop.permute.xlu0 %2966
  %2968 = vrot.lane.b32.xlu0 %v2853, 24
  %v2969 = vpop.permute.xlu0 %2968
  %2970 = vrot.lane.b32.xlu0 %v2901, 24
  %v2971 = vpop.permute.xlu0 %2970
  %v2978 = vsel %vm195, %v645, %v2913
  %v2979 = vsel %vm195, %v693, %v2915
  %v2980 = vsel %vm195, %v741, %v2917
  %v2981 = vsel %vm195, %v789, %v2919
  %v2982 = vsel %vm195, %v837, %v2921
  %v2983 = vsel %vm195, %v885, %v2923
  %vm2984 = vcmask 130048
  %v2985 = vsel %vm2984, %v2978, %v2937
  %v2986 = vsel %vm2984, %v2979, %v2939
  %v2987 = vsel %vm2984, %v2980, %v2941
  %v2988 = vsel %vm2984, %v2981, %v2943
  %v2989 = vsel %vm2984, %v2982, %v2945
  %v2990 = vsel %vm2984, %v2983, %v2947
  %vm2991 = vcmask 195584
  %v2992 = vsel %vm2991, %v2985, %v2961
  %v2993 = vsel %vm2991, %v2986, %v2963
  %v2994 = vsel %vm2991, %v2987, %v2965
  %v2995 = vsel %vm2991, %v2988, %v2967
  %v2996 = vsel %vm2991, %v2989, %v2969
  %v2997 = vsel %vm2991, %v2990, %v2971
  %v2998 = vld [vmem:[%s4] sm:$0xff]
  %v2999 = vld [vmem:[%s4 + $0x8] sm:$0xff]
  %v3000 = vld [vmem:[%s4 + $0x10] sm:$0xff]
  %v3001 = vld [vmem:[%s4 + $0x18] sm:$0xff]
  %v3002 = vpack.c.bf16 %v2993, %v2992
  %v3003 = vpack.c.bf16 %v2995, %v2994
  %v3004 = vpack.c.bf16 %v2997, %v2996
  %v3005 = vpack.c.bf16 %v2999, %v2998
  %v3006 = vpack.c.bf16 %v3001, %v3000
  %v3007 = vld [vmem:[%s5] sm:$0x1]
  %v3009 = vlaneseq
  %v3010 = vshrl.u32 %v3009, 7
  %v3011 = vsub.s32 0, %v3010
  %v3012 = vrot.slane %v3007, %v3011
  %v3015 = vsel %vm70, %v3002, 0
  %v3018 = vsel %vm70, %v3003, 0
  %v3021 = vsel %vm70, %v3004, 0
  %3023 = vmatprep.subr.bf16.mxu0 0
  %3024 = vmatpush1.bf16.msra.mxu0 0
  %3025 = vmatprep.subr.bf16.mxu0 0
  %3026 = vmatpush1.bf16.msra.mxu0 0
  %3027 = vmatprep.subr.bf16.mxu0 0
  %3028 = vmatpush1.bf16.msra.mxu0 0
  %3029 = vmatprep.subr.bf16.mxu0 0
  %3030 = vmatpush1.bf16.msra.mxu0 0
  %3031 = vmatprep.subr.bf16.mxu0 0
  %3032 = vmatpush1.bf16.msra.mxu0 0
  %3033 = vmatprep.subr.bf16.mxu0 0
  %3034 = vmatpush1.bf16.msra.mxu0 0
  %3035 = vmatprep.subr.bf16.mxu0 0
  %3036 = vmatpush1.bf16.msra.mxu0 %v3006
  %3037 = vmatprep.subr.bf16.mxu0 0
  %3038 = vmatpush1.bf16.msra.mxu0 %v3005
  %3039 = vmatprep.subr.bf16.mxu0 0
  %3040 = vmatpush2.bf16.msra.mxu0 0
  %3041 = vmatprep.subr.bf16.mxu0 0
  %3042 = vmatpush2.bf16.msra.mxu0 0
  %3043 = vmatprep.subr.bf16.mxu0 0
  %3044 = vmatpush2.bf16.msra.mxu0 0
  %3045 = vmatprep.subr.bf16.mxu0 0
  %3046 = vmatpush2.bf16.msra.mxu0 0
  %3047 = vmatprep.subr.bf16.mxu0 0
  %3048 = vmatpush2.bf16.msra.mxu0 0
  %3049 = vmatprep.subr.bf16.mxu0 0
  %3050 = vmatpush2.bf16.msra.mxu0 0
  %3051 = vmatprep.subr.bf16.mxu0 0
  %3052 = vmatpush2.bf16.msra.mxu0 0
  %3053 = vmatprep.subr.bf16.mxu0 0
  %3054 = vmatpush2.bf16.msra.mxu0 0
  %3055 = vmatprep.mubr.bf16.mxu0 0
  %3056 = vmatmul.mubr.bf16.gmra.mxu0 %v3015
  %v3057 = vpop.f32.mrf.mxu0
  %v3058 = vadd.f32 %v3012, %v3057
  %v3059 = vpop.f32.mrf.mxu0
  %v3060 = vpop.f32.mrf.mxu0
  %v3061 = vadd.f32 %v3012, %v3060
  %v3062 = vpop.f32.mrf.mxu0
  %3063 = vmatprep.mubr.bf16.mxu0 0
  %3064 = vmatmul.mubr.bf16.gmra.mxu0 %v3018
  %v3065 = vpop.f32.mrf.mxu0
  %v3066 = vadd.f32 %v3012, %v3065
  %v3067 = vpop.f32.mrf.mxu0
  %v3068 = vpop.f32.mrf.mxu0
  %v3069 = vadd.f32 %v3012, %v3068
  %v3070 = vpop.f32.mrf.mxu0
  %3071 = vmatprep.mubr.bf16.mxu0 0
  %3072 = vmatmul.mubr.bf16.gmra.mxu0 %v3021
  %v3073 = vpop.f32.mrf.mxu0
  %v3074 = vadd.f32 %v3012, %v3073
  %v3075 = vpop.f32.mrf.mxu0
  %v3076 = vpop.f32.mrf.mxu0
  %v3077 = vadd.f32 %v3012, %v3076
  %v3078 = vpop.f32.mrf.mxu0
  %3079 = vdwg.mxu0
  %v3080 = vadd.f32 %v3058, %v48
  %v3081 = vadd.f32 %v3061, %v49
  %v3082 = vadd.f32 %v3066, %v50
  %v3083 = vadd.f32 %v3069, %v51
  %v3084 = vadd.f32 %v3074, %v52
  %v3085 = vadd.f32 %v3077, %v53
  %v3086 = vsel %vm70, %v3080, 0.0
  %3087 = vadd.xlane.f32.xlu0 %v3086
  %v3088 = vpop.xlane.xlu0 %3087
  %v3089 = vsel %vm70, %v3081, 0.0
  %3090 = vadd.xlane.f32.xlu0 %v3089
  %v3091 = vpop.xlane.xlu0 %3090
  %v3092 = vsel %vm70, %v3082, 0.0
  %3093 = vadd.xlane.f32.xlu0 %v3092
  %v3094 = vpop.xlane.xlu0 %3093
  %v3095 = vsel %vm70, %v3083, 0.0
  %3096 = vadd.xlane.f32.xlu0 %v3095
  %v3097 = vpop.xlane.xlu0 %3096
  %v3098 = vsel %vm70, %v3084, 0.0
  %3099 = vadd.xlane.f32.xlu0 %v3098
  %v3100 = vpop.xlane.xlu0 %3099
  %v3101 = vsel %vm70, %v3085, 0.0
  %3102 = vadd.xlane.f32.xlu0 %v3101
  %v3103 = vpop.xlane.xlu0 %3102
  %v3104 = vrcp.pop 32.0
  %v3105 = vmul.f32 %v3088, %v3104
  %v3106 = vmul.f32 %v3091, %v3104
  %v3107 = vmul.f32 %v3094, %v3104
  %v3108 = vmul.f32 %v3097, %v3104
  %v3109 = vmul.f32 %v3100, %v3104
  %v3110 = vmul.f32 %v3103, %v3104
  %v3111 = vsub.f32 %v3080, %v3105
  %v3112 = vsub.f32 %v3081, %v3106
  %v3113 = vsub.f32 %v3082, %v3107
  %v3114 = vsub.f32 %v3083, %v3108
  %v3115 = vsub.f32 %v3084, %v3109
  %v3116 = vsub.f32 %v3085, %v3110
  %v3117 = vmul.f32 %v3111, %v3111
  %v3118 = vmul.f32 %v3112, %v3112
  %v3119 = vmul.f32 %v3113, %v3113
  %v3120 = vmul.f32 %v3114, %v3114
  %v3121 = vmul.f32 %v3115, %v3115
  %v3122 = vmul.f32 %v3116, %v3116
  %v3123 = vsel %vm70, %v3117, 0.0
  %3124 = vadd.xlane.f32.xlu0 %v3123
  %v3125 = vpop.xlane.xlu0 %3124
  %v3126 = vsel %vm70, %v3118, 0.0
  %3127 = vadd.xlane.f32.xlu0 %v3126
  %v3128 = vpop.xlane.xlu0 %3127
  %v3129 = vsel %vm70, %v3119, 0.0
  %3130 = vadd.xlane.f32.xlu0 %v3129
  %v3131 = vpop.xlane.xlu0 %3130
  %v3132 = vsel %vm70, %v3120, 0.0
  %3133 = vadd.xlane.f32.xlu0 %v3132
  %v3134 = vpop.xlane.xlu0 %3133
  %v3135 = vsel %vm70, %v3121, 0.0
  %3136 = vadd.xlane.f32.xlu0 %v3135
  %v3137 = vpop.xlane.xlu0 %3136
  %v3138 = vsel %vm70, %v3122, 0.0
  %3139 = vadd.xlane.f32.xlu0 %v3138
  %v3140 = vpop.xlane.xlu0 %3139
  %v3141 = vmul.f32 %v3125, %v3104
  %v3142 = vmul.f32 %v3128, %v3104
  %v3143 = vmul.f32 %v3131, %v3104
  %v3144 = vmul.f32 %v3134, %v3104
  %v3145 = vmul.f32 %v3137, %v3104
  %v3146 = vmul.f32 %v3140, %v3104
  %v3147 = vadd.f32 %v3141, 1e-12
  %v3148 = vadd.f32 %v3142, 1e-12
  %v3149 = vadd.f32 %v3143, 1e-12
  %v3150 = vadd.f32 %v3144, 1e-12
  %v3151 = vadd.f32 %v3145, 1e-12
  %v3152 = vadd.f32 %v3146, 1e-12
  %v3153 = vrsqrt.pop %v3147
  %v3154 = vrsqrt.pop %v3148
  %v3155 = vrsqrt.pop %v3149
  %v3156 = vrsqrt.pop %v3150
  %v3157 = vrsqrt.pop %v3151
  %v3158 = vrsqrt.pop %v3152
  %v3159 = vmul.f32 %v3111, %v3153
  %v3160 = vmul.f32 %v3112, %v3154
  %v3161 = vmul.f32 %v3113, %v3155
  %v3162 = vmul.f32 %v3114, %v3156
  %v3163 = vmul.f32 %v3115, %v3157
  %v3164 = vmul.f32 %v3116, %v3158
  %v3165 = vld [vmem:[%s6] sm:$0x1]
  %v3167 = vlaneseq
  %v3168 = vshrl.u32 %v3167, 7
  %v3169 = vsub.s32 0, %v3168
  %v3170 = vrot.slane %v3165, %v3169
  %v3172 = vmul.f32 %v3159, %v3170
  %v3173 = vmul.f32 %v3160, %v3170
  %v3174 = vmul.f32 %v3161, %v3170
  %v3175 = vmul.f32 %v3162, %v3170
  %v3176 = vmul.f32 %v3163, %v3170
  %v3177 = vmul.f32 %v3164, %v3170
  %v3178 = vld [vmem:[%s7] sm:$0x1]
  %v3180 = vlaneseq
  %v3181 = vshrl.u32 %v3180, 7
  %v3182 = vsub.s32 0, %v3181
  %v3183 = vrot.slane %v3178, %v3182
  %v3185 = vadd.f32 %v3172, %v3183
  %v3186 = vadd.f32 %v3173, %v3183
  %v3187 = vadd.f32 %v3174, %v3183
  %v3188 = vadd.f32 %v3175, %v3183
  %v3189 = vadd.f32 %v3176, %v3183
  %v3190 = vadd.f32 %v3177, %v3183
  %v3191 = vld [vmem:[%s8] sm:$0xff]
  %v3192 = vld [vmem:[%s8 + $0x8] sm:$0xff]
  %v3193 = vld [vmem:[%s8 + $0x10] sm:$0xff]
  %v3194 = vld [vmem:[%s8 + $0x18] sm:$0xff]
  %v3195 = vpack.c.bf16 %v3186, %v3185
  %v3196 = vpack.c.bf16 %v3188, %v3187
  %v3197 = vpack.c.bf16 %v3190, %v3189
  %v3198 = vpack.c.bf16 %v3192, %v3191
  %v3199 = vpack.c.bf16 %v3194, %v3193
  %v3200 = vld [vmem:[%s9] sm:$0x1]
  %v3202 = vlaneseq
  %v3203 = vshrl.u32 %v3202, 7
  %v3204 = vsub.s32 0, %v3203
  %v3205 = vrot.slane %v3200, %v3204
  %v3208 = vsel %vm70, %v3195, 0
  %v3211 = vsel %vm70, %v3196, 0
  %v3214 = vsel %vm70, %v3197, 0
  %3216 = vmatprep.subr.bf16.mxu0 0
  %3217 = vmatpush1.bf16.msra.mxu0 0
  %3218 = vmatprep.subr.bf16.mxu0 0
  %3219 = vmatpush1.bf16.msra.mxu0 0
  %3220 = vmatprep.subr.bf16.mxu0 0
  %3221 = vmatpush1.bf16.msra.mxu0 0
  %3222 = vmatprep.subr.bf16.mxu0 0
  %3223 = vmatpush1.bf16.msra.mxu0 0
  %3224 = vmatprep.subr.bf16.mxu0 0
  %3225 = vmatpush1.bf16.msra.mxu0 0
  %3226 = vmatprep.subr.bf16.mxu0 0
  %3227 = vmatpush1.bf16.msra.mxu0 0
  %3228 = vmatprep.subr.bf16.mxu0 0
  %3229 = vmatpush1.bf16.msra.mxu0 %v3199
  %3230 = vmatprep.subr.bf16.mxu0 0
  %3231 = vmatpush1.bf16.msra.mxu0 %v3198
  %3232 = vmatprep.subr.bf16.mxu0 0
  %3233 = vmatpush2.bf16.msra.mxu0 0
  %3234 = vmatprep.subr.bf16.mxu0 0
  %3235 = vmatpush2.bf16.msra.mxu0 0
  %3236 = vmatprep.subr.bf16.mxu0 0
  %3237 = vmatpush2.bf16.msra.mxu0 0
  %3238 = vmatprep.subr.bf16.mxu0 0
  %3239 = vmatpush2.bf16.msra.mxu0 0
  %3240 = vmatprep.subr.bf16.mxu0 0
  %3241 = vmatpush2.bf16.msra.mxu0 0
  %3242 = vmatprep.subr.bf16.mxu0 0
  %3243 = vmatpush2.bf16.msra.mxu0 0
  %3244 = vmatprep.subr.bf16.mxu0 0
  %3245 = vmatpush2.bf16.msra.mxu0 0
  %3246 = vmatprep.subr.bf16.mxu0 0
  %3247 = vmatpush2.bf16.msra.mxu0 0
  %3248 = vmatprep.mubr.bf16.mxu0 0
  %3249 = vmatmul.mubr.bf16.gmra.mxu0 %v3208
  %v3250 = vpop.f32.mrf.mxu0
  %v3251 = vadd.f32 %v3205, %v3250
  %v3252 = vpop.f32.mrf.mxu0
  %v3253 = vpop.f32.mrf.mxu0
  %v3254 = vadd.f32 %v3205, %v3253
  %v3255 = vpop.f32.mrf.mxu0
  %3256 = vmatprep.mubr.bf16.mxu0 0
  %3257 = vmatmul.mubr.bf16.gmra.mxu0 %v3211
  %v3258 = vpop.f32.mrf.mxu0
  %v3259 = vadd.f32 %v3205, %v3258
  %v3260 = vpop.f32.mrf.mxu0
  %v3261 = vpop.f32.mrf.mxu0
  %v3262 = vadd.f32 %v3205, %v3261
  %v3263 = vpop.f32.mrf.mxu0
  %3264 = vmatprep.mubr.bf16.mxu0 0
  %3265 = vmatmul.mubr.bf16.gmra.mxu0 %v3214
  %v3266 = vpop.f32.mrf.mxu0
  %v3267 = vadd.f32 %v3205, %v3266
  %v3268 = vpop.f32.mrf.mxu0
  %v3269 = vpop.f32.mrf.mxu0
  %v3270 = vadd.f32 %v3205, %v3269
  %v3271 = vpop.f32.mrf.mxu0
  %3272 = vdwg.mxu0
  %v3273 = vmul.f32 %v3251, %v3251
  %v3274 = vmul.f32 %v3254, %v3254
  %v3275 = vmul.f32 %v3259, %v3259
  %v3276 = vmul.f32 %v3262, %v3262
  %v3277 = vmul.f32 %v3267, %v3267
  %v3278 = vmul.f32 %v3270, %v3270
  %v3279 = vmul.f32 %v3251, %v3273
  %v3280 = vmul.f32 %v3254, %v3274
  %v3281 = vmul.f32 %v3259, %v3275
  %v3282 = vmul.f32 %v3262, %v3276
  %v3283 = vmul.f32 %v3267, %v3277
  %v3284 = vmul.f32 %v3270, %v3278
  %v3285 = vmul.f32 %v3279, 0.044715
  %v3286 = vmul.f32 %v3280, 0.044715
  %v3287 = vmul.f32 %v3281, 0.044715
  %v3288 = vmul.f32 %v3282, 0.044715
  %v3289 = vmul.f32 %v3283, 0.044715
  %v3290 = vmul.f32 %v3284, 0.044715
  %v3291 = vadd.f32 %v3251, %v3285
  %v3292 = vadd.f32 %v3254, %v3286
  %v3293 = vadd.f32 %v3259, %v3287
  %v3294 = vadd.f32 %v3262, %v3288
  %v3295 = vadd.f32 %v3267, %v3289
  %v3296 = vadd.f32 %v3270, %v3290
  %v3297 = vmul.f32 %v3291, 0.7978846
  %v3298 = vmul.f32 %v3292, 0.7978846
  %v3299 = vmul.f32 %v3293, 0.7978846
  %v3300 = vmul.f32 %v3294, 0.7978846
  %v3301 = vmul.f32 %v3295, 0.7978846
  %v3302 = vmul.f32 %v3296, 0.7978846
  %v3303 = vtanh.pop %v3297
  %v3304 = vtanh.pop %v3298
  %v3305 = vtanh.pop %v3299
  %v3306 = vtanh.pop %v3300
  %v3307 = vtanh.pop %v3301
  %v3308 = vtanh.pop %v3302
  %v3309 = vadd.f32 %v3303, 1.0
  %v3310 = vadd.f32 %v3304, 1.0
  %v3311 = vadd.f32 %v3305, 1.0
  %v3312 = vadd.f32 %v3306, 1.0
  %v3313 = vadd.f32 %v3307, 1.0
  %v3314 = vadd.f32 %v3308, 1.0
  %v3315 = vmul.f32 %v3309, 0.5
  %v3316 = vmul.f32 %v3310, 0.5
  %v3317 = vmul.f32 %v3311, 0.5
  %v3318 = vmul.f32 %v3312, 0.5
  %v3319 = vmul.f32 %v3313, 0.5
  %v3320 = vmul.f32 %v3314, 0.5
  %v3321 = vmul.f32 %v3251, %v3315
  %v3322 = vmul.f32 %v3254, %v3316
  %v3323 = vmul.f32 %v3259, %v3317
  %v3324 = vmul.f32 %v3262, %v3318
  %v3325 = vmul.f32 %v3267, %v3319
  %v3326 = vmul.f32 %v3270, %v3320
  %v3327 = vld [vmem:[%s10] sm:$0xff]
  %v3328 = vld [vmem:[%s10 + $0x8] sm:$0xff]
  %v3329 = vld [vmem:[%s10 + $0x10] sm:$0xff]
  %v3330 = vld [vmem:[%s10 + $0x18] sm:$0xff]
  %v3331 = vld [vmem:[%s10 + $0x20] sm:$0xff]
  %v3332 = vld [vmem:[%s10 + $0x28] sm:$0xff]
  %v3333 = vld [vmem:[%s10 + $0x30] sm:$0xff]
  %v3334 = vld [vmem:[%s10 + $0x38] sm:$0xff]
  %v3335 = vpack.c.bf16 %v3322, %v3321
  %v3336 = vpack.c.bf16 %v3324, %v3323
  %v3337 = vpack.c.bf16 %v3326, %v3325
  %v3338 = vpack.c.bf16 %v3328, %v3327
  %v3339 = vpack.c.bf16 %v3330, %v3329
  %v3340 = vpack.c.bf16 %v3332, %v3331
  %v3341 = vpack.c.bf16 %v3334, %v3333
  %v3342 = vld [vmem:[%s11] sm:$0x1]
  %v3344 = vlaneseq
  %v3345 = vshrl.u32 %v3344, 7
  %v3346 = vsub.s32 0, %v3345
  %v3347 = vrot.slane %v3342, %v3346
  %vm3349 = vcmask 523264
  %v3351 = vsel %vm3349, %v3335, 0
  %v3354 = vsel %vm3349, %v3336, 0
  %v3357 = vsel %vm3349, %v3337, 0
  %3359 = vmatprep.subr.bf16.mxu0 0
  %3360 = vmatpush1.bf16.msra.mxu0 0
  %3361 = vmatprep.subr.bf16.mxu0 0
  %3362 = vmatpush1.bf16.msra.mxu0 0
  %3363 = vmatprep.subr.bf16.mxu0 0
  %3364 = vmatpush1.bf16.msra.mxu0 0
  %3365 = vmatprep.subr.bf16.mxu0 0
  %3366 = vmatpush1.bf16.msra.mxu0 0
  %3367 = vmatprep.subr.bf16.mxu0 0
  %3368 = vmatpush1.bf16.msra.mxu0 %v3341
  %3369 = vmatprep.subr.bf16.mxu0 0
  %3370 = vmatpush1.bf16.msra.mxu0 %v3340
  %3371 = vmatprep.subr.bf16.mxu0 0
  %3372 = vmatpush1.bf16.msra.mxu0 %v3339
  %3373 = vmatprep.subr.bf16.mxu0 0
  %3374 = vmatpush1.bf16.msra.mxu0 %v3338
  %3375 = vmatprep.subr.bf16.mxu0 0
  %3376 = vmatpush2.bf16.msra.mxu0 0
  %3377 = vmatprep.subr.bf16.mxu0 0
  %3378 = vmatpush2.bf16.msra.mxu0 0
  %3379 = vmatprep.subr.bf16.mxu0 0
  %3380 = vmatpush2.bf16.msra.mxu0 0
  %3381 = vmatprep.subr.bf16.mxu0 0
  %3382 = vmatpush2.bf16.msra.mxu0 0
  %3383 = vmatprep.subr.bf16.mxu0 0
  %3384 = vmatpush2.bf16.msra.mxu0 0
  %3385 = vmatprep.subr.bf16.mxu0 0
  %3386 = vmatpush2.bf16.msra.mxu0 0
  %3387 = vmatprep.subr.bf16.mxu0 0
  %3388 = vmatpush2.bf16.msra.mxu0 0
  %3389 = vmatprep.subr.bf16.mxu0 0
  %3390 = vmatpush2.bf16.msra.mxu0 0
  %3391 = vmatprep.mubr.bf16.mxu0 0
  %3392 = vmatmul.mubr.bf16.gmra.mxu0 %v3351
  %v3393 = vpop.f32.mrf.mxu0
  %v3394 = vadd.f32 %v3347, %v3393
  %v3395 = vpop.f32.mrf.mxu0
  %v3396 = vpop.f32.mrf.mxu0
  %v3397 = vadd.f32 %v3347, %v3396
  %v3398 = vpop.f32.mrf.mxu0
  %3399 = vmatprep.mubr.bf16.mxu0 0
  %3400 = vmatmul.mubr.bf16.gmra.mxu0 %v3354
  %v3401 = vpop.f32.mrf.mxu0
  %v3402 = vadd.f32 %v3347, %v3401
  %v3403 = vpop.f32.mrf.mxu0
  %v3404 = vpop.f32.mrf.mxu0
  %v3405 = vadd.f32 %v3347, %v3404
  %v3406 = vpop.f32.mrf.mxu0
  %3407 = vmatprep.mubr.bf16.mxu0 0
  %3408 = vmatmul.mubr.bf16.gmra.mxu0 %v3357
  %v3409 = vpop.f32.mrf.mxu0
  %v3410 = vadd.f32 %v3347, %v3409
  %v3411 = vpop.f32.mrf.mxu0
  %v3412 = vpop.f32.mrf.mxu0
  %v3413 = vadd.f32 %v3347, %v3412
  %v3414 = vpop.f32.mrf.mxu0
  %3415 = vdwg.mxu0
  %v3416 = vadd.f32 %v3394, %v3185
  %v3417 = vadd.f32 %v3397, %v3186
  %v3418 = vadd.f32 %v3402, %v3187
  %v3419 = vadd.f32 %v3405, %v3188
  %v3420 = vadd.f32 %v3410, %v3189
  %v3421 = vadd.f32 %v3413, %v3190
  %v3422 = vsel %vm70, %v3416, 0.0
  %3423 = vadd.xlane.f32.xlu0 %v3422
  %v3424 = vpop.xlane.xlu0 %3423
  %v3425 = vsel %vm70, %v3417, 0.0
  %3426 = vadd.xlane.f32.xlu0 %v3425
  %v3427 = vpop.xlane.xlu0 %3426
  %v3428 = vsel %vm70, %v3418, 0.0
  %3429 = vadd.xlane.f32.xlu0 %v3428
  %v3430 = vpop.xlane.xlu0 %3429
  %v3431 = vsel %vm70, %v3419, 0.0
  %3432 = vadd.xlane.f32.xlu0 %v3431
  %v3433 = vpop.xlane.xlu0 %3432
  %v3434 = vsel %vm70, %v3420, 0.0
  %3435 = vadd.xlane.f32.xlu0 %v3434
  %v3436 = vpop.xlane.xlu0 %3435
  %v3437 = vsel %vm70, %v3421, 0.0
  %3438 = vadd.xlane.f32.xlu0 %v3437
  %v3439 = vpop.xlane.xlu0 %3438
  %v3440 = vmul.f32 %v3424, %v3104
  %v3441 = vmul.f32 %v3427, %v3104
  %v3442 = vmul.f32 %v3430, %v3104
  %v3443 = vmul.f32 %v3433, %v3104
  %v3444 = vmul.f32 %v3436, %v3104
  %v3445 = vmul.f32 %v3439, %v3104
  %v3446 = vsub.f32 %v3416, %v3440
  %v3447 = vsub.f32 %v3417, %v3441
  %v3448 = vsub.f32 %v3418, %v3442
  %v3449 = vsub.f32 %v3419, %v3443
  %v3450 = vsub.f32 %v3420, %v3444
  %v3451 = vsub.f32 %v3421, %v3445
  %v3452 = vmul.f32 %v3446, %v3446
  %v3453 = vmul.f32 %v3447, %v3447
  %v3454 = vmul.f32 %v3448, %v3448
  %v3455 = vmul.f32 %v3449, %v3449
  %v3456 = vmul.f32 %v3450, %v3450
  %v3457 = vmul.f32 %v3451, %v3451
  %v3458 = vsel %vm70, %v3452, 0.0
  %3459 = vadd.xlane.f32.xlu0 %v3458
  %v3460 = vpop.xlane.xlu0 %3459
  %v3461 = vsel %vm70, %v3453, 0.0
  %3462 = vadd.xlane.f32.xlu0 %v3461
  %v3463 = vpop.xlane.xlu0 %3462
  %v3464 = vsel %vm70, %v3454, 0.0
  %3465 = vadd.xlane.f32.xlu0 %v3464
  %v3466 = vpop.xlane.xlu0 %3465
  %v3467 = vsel %vm70, %v3455, 0.0
  %3468 = vadd.xlane.f32.xlu0 %v3467
  %v3469 = vpop.xlane.xlu0 %3468
  %v3470 = vsel %vm70, %v3456, 0.0
  %3471 = vadd.xlane.f32.xlu0 %v3470
  %v3472 = vpop.xlane.xlu0 %3471
  %v3473 = vsel %vm70, %v3457, 0.0
  %3474 = vadd.xlane.f32.xlu0 %v3473
  %v3475 = vpop.xlane.xlu0 %3474
  %v3476 = vmul.f32 %v3460, %v3104
  %v3477 = vmul.f32 %v3463, %v3104
  %v3478 = vmul.f32 %v3466, %v3104
  %v3479 = vmul.f32 %v3469, %v3104
  %v3480 = vmul.f32 %v3472, %v3104
  %v3481 = vmul.f32 %v3475, %v3104
  %v3482 = vadd.f32 %v3476, 1e-12
  %v3483 = vadd.f32 %v3477, 1e-12
  %v3484 = vadd.f32 %v3478, 1e-12
  %v3485 = vadd.f32 %v3479, 1e-12
  %v3486 = vadd.f32 %v3480, 1e-12
  %v3487 = vadd.f32 %v3481, 1e-12
  %v3488 = vrsqrt.pop %v3482
  %v3489 = vrsqrt.pop %v3483
  %v3490 = vrsqrt.pop %v3484
  %v3491 = vrsqrt.pop %v3485
  %v3492 = vrsqrt.pop %v3486
  %v3493 = vrsqrt.pop %v3487
  %v3494 = vmul.f32 %v3446, %v3488
  %v3495 = vmul.f32 %v3447, %v3489
  %v3496 = vmul.f32 %v3448, %v3490
  %v3497 = vmul.f32 %v3449, %v3491
  %v3498 = vmul.f32 %v3450, %v3492
  %v3499 = vmul.f32 %v3451, %v3493
  %v3500 = vld [vmem:[%s12] sm:$0x1]
  %v3502 = vlaneseq
  %v3503 = vshrl.u32 %v3502, 7
  %v3504 = vsub.s32 0, %v3503
  %v3505 = vrot.slane %v3500, %v3504
  %v3507 = vmul.f32 %v3494, %v3505
  %v3508 = vmul.f32 %v3495, %v3505
  %v3509 = vmul.f32 %v3496, %v3505
  %v3510 = vmul.f32 %v3497, %v3505
  %v3511 = vmul.f32 %v3498, %v3505
  %v3512 = vmul.f32 %v3499, %v3505
  %v3513 = vld [vmem:[%s13] sm:$0x1]
  %v3515 = vlaneseq
  %v3516 = vshrl.u32 %v3515, 7
  %v3517 = vsub.s32 0, %v3516
  %v3518 = vrot.slane %v3513, %v3517
  %v3520 = vadd.f32 %v3507, %v3518
  %v3521 = vadd.f32 %v3508, %v3518
  %v3522 = vadd.f32 %v3509, %v3518
  %v3523 = vadd.f32 %v3510, %v3518
  %v3524 = vadd.f32 %v3511, %v3518
  %v3525 = vadd.f32 %v3512, %v3518
  %3526 = vst.msk [vmem:[%s14] sm:$0xff] %vm70, %v3520
  %3527 = vst.msk [vmem:[%s14 + $0x8] sm:$0xff] %vm70, %v3521
  %3528 = vst.msk [vmem:[%s14 + $0x10] sm:$0xff] %vm70, %v3522
  %3529 = vst.msk [vmem:[%s14 + $0x18] sm:$0xff] %vm70, %v3523
  %3530 = vst.msk [vmem:[%s14 + $0x20] sm:$0xff] %vm70, %v3524
  %3531 = vst.msk [vmem:[%s14 + $0x28] sm:$0xff] %vm70, %v3525
  // Predicated region
  $region58: #{summarizer_forward.6} parent=0 // pred_check
    _
  $region59: #{summarizer_forward.6} parent=0 // pred_check_branch
    %3533 = sbr.rel (0) target = $region61
  $region60: #{summarizer_forward.6} parent=0 // pred_region
    _
  $region61: #{summarizer_forward.6} parent=0 // pred_fallthru
    _
  // Predicated region
  $region62: #{summarizer_forward.6} parent=0 // pred_check
    _
  $region63: #{summarizer_forward.6} parent=0 // pred_check_branch
    %3535 = sbr.rel (0) target = $region65
  $region64: #{summarizer_forward.6} parent=0 // pred_region
    _
  $region65: #{summarizer_forward.6} parent=0 // pred_fallthru
    _

</llo_original>
